<compile_context>
chip_gen: v7x
topology: tpu7x:2x2x1
jax: 0.10.0
libtpu: 0.0.40
codegen_flags: <defaults>
</compile_context>

<pallas_src>
import jax
import jax.numpy as jnp
from jax.experimental import pallas as pl
from jax.experimental.pallas import tpu as pltpu

IN_DIM = 512
HID_DIM = 2048
OUT_DIM = 512
HID_CHUNK = 512
N_CHUNKS = HID_DIM // HID_CHUNK


def expert_kernel(x_ref, w1_ref, b1_ref, w2_ref, b2_ref, o_ref):
    # x_ref : (TILE_M, 512)  f32     w1_ref: (512, 2048) bf16   b1_ref: (1, 2048) f32
    # w2_ref: (2048, 512)    bf16    b2_ref: (1, 512)    f32    o_ref : (TILE_M, 512) f32
    x = x_ref[...].astype(jnp.bfloat16)
    acc = jnp.zeros((x_ref.shape[0], OUT_DIM), jnp.float32)
    # Static (fully unrolled) loop over hidden chunks: keeps the live hidden
    # activation bounded at (TILE_M, HID_CHUNK) f32 and avoids vreg spill
    # traffic once TILE_M grows.
    for c in range(N_CHUNKS):
        lo = c * HID_CHUNK
        h = jnp.dot(x, w1_ref[:, lo:lo + HID_CHUNK],
                    preferred_element_type=jnp.float32)
        h = jnp.maximum(h + b1_ref[:, lo:lo + HID_CHUNK], 0.0)
        acc = acc + jnp.dot(h.astype(jnp.bfloat16),
                            w2_ref[lo:lo + HID_CHUNK, :],
                            preferred_element_type=jnp.float32)
    o_ref[...] = (acc + b2_ref[...]).astype(o_ref.dtype)


def expert_forward(x, w1, b1, w2, b2, *, tile_m=None):
    """x: (B, 512) f32. w1: (512, 2048), b1: (2048,), w2: (2048, 512), b2: (512,)."""
    B = x.shape[0]
    if tile_m is None:
        # 256 rows feeds the v6e/v7x 256-wide MXU; small batches just round up
        # to the 8-row sublane granule.
        tile_m = 256 if B >= 256 else max(8, ((B + 7) // 8) * 8)
    b_pad = ((B + tile_m - 1) // tile_m) * tile_m
    if b_pad != B:
        x = jnp.pad(x, ((0, b_pad - B), (0, 0)))

    # Stream weights as bf16 (halves weight HBM bytes); biases stay f32.
    w1 = w1.astype(jnp.bfloat16)
    w2 = w2.astype(jnp.bfloat16)
    b1 = b1.reshape(1, HID_DIM).astype(jnp.float32)
    b2 = b2.reshape(1, OUT_DIM).astype(jnp.float32)

    weight_bytes = (IN_DIM * HID_DIM + HID_DIM * OUT_DIM) * 2        # bf16
    io_bytes = b_pad * (IN_DIM + OUT_DIM) * 4 + (HID_DIM + OUT_DIM) * 4

    out = pl.pallas_call(
        expert_kernel,
        out_shape=jax.ShapeDtypeStruct((b_pad, OUT_DIM), x.dtype),
        grid_spec=pl.GridSpec(
            grid=(b_pad // tile_m,),
            in_specs=[
                pl.BlockSpec((tile_m, IN_DIM), lambda i: (i, 0)),    # x: moves with i
                pl.BlockSpec((IN_DIM, HID_DIM), lambda i: (0, 0)),   # w1: VMEM-resident
                pl.BlockSpec((1, HID_DIM), lambda i: (0, 0)),        # b1: resident
                pl.BlockSpec((HID_DIM, OUT_DIM), lambda i: (0, 0)),  # w2: VMEM-resident
                pl.BlockSpec((1, OUT_DIM), lambda i: (0, 0)),        # b2: resident
            ],
            out_specs=pl.BlockSpec((tile_m, OUT_DIM), lambda i: (i, 0)),
        ),
        compiler_params=pltpu.CompilerParams(
            dimension_semantics=("parallel",),     # v7x: shard batch tiles across 2 TCs
            vmem_limit_bytes=48 << 20,             # headroom under v7x's 64 MiB VMEM
        ),
        cost_estimate=pl.CostEstimate(
            flops=4 * b_pad * IN_DIM * HID_DIM,    # two matmuls, IN_DIM == OUT_DIM
            transcendentals=0,
            bytes_accessed=weight_bytes + io_bytes,
        ),
    )(x, w1, b1, w2, b2)
    return out[:B]


if __name__ == "__main__":
    key = jax.random.PRNGKey(0)
    kx, kw1, kb1, kw2, kb2 = jax.random.split(key, 5)

    B = 8
    x = jax.random.normal(kx, (B, IN_DIM), dtype=jnp.float32)

    # Deterministic parameter init (PyTorch-style uniform bounds).
    bound1 = 1.0 / (IN_DIM ** 0.5)
    w1 = jax.random.uniform(kw1, (IN_DIM, HID_DIM), minval=-bound1, maxval=bound1,
                            dtype=jnp.float32)
    b1 = jax.random.uniform(kb1, (HID_DIM,), minval=-bound1, maxval=bound1,
                            dtype=jnp.float32)
    bound2 = 1.0 / (HID_DIM ** 0.5)
    w2 = jax.random.uniform(kw2, (HID_DIM, OUT_DIM), minval=-bound2, maxval=bound2,
                            dtype=jnp.float32)
    b2 = jax.random.uniform(kb2, (OUT_DIM,), minval=-bound2, maxval=bound2,
                            dtype=jnp.float32)

    out = jax.block_until_ready(expert_forward(x, w1, b1, w2, b2))

    # Reference that mirrors the kernel's bf16 weight/activation rounding
    # (weights streamed as bf16, matmuls accumulated in f32).
    def ref_bf16(x, w1, b1, w2, b2):
        rnd = lambda a: a.astype(jnp.bfloat16).astype(jnp.float32)
        h = jnp.maximum(rnd(x) @ rnd(w1) + b1, 0.0)
        return rnd(h) @ rnd(w2) + b2

    ref = ref_bf16(x, w1, b1, w2, b2)
    assert out.shape == (B, OUT_DIM)
    max_err = jnp.max(jnp.abs(out - ref))
    assert jnp.allclose(out, ref, atol=1e-2, rtol=1e-2), f"mismatch vs reference (max abs err {max_err})"

    # TODO(synk): the `print(x.requires_grad)` debug line has no JAX equivalent (arrays carry no grad flag).
    print("KERNEL_OK")
</pallas_src>

<mosaic_0001>
module attributes {stable_mosaic.version = 11 : i64} {
  func.func @expert_kernel(%arg0: i32, %arg1: memref<8x512xf32, #tpu.memory_space<vmem>>, %arg2: memref<512x2048xbf16, #tpu.memory_space<vmem>>, %arg3: memref<1x2048xf32, #tpu.memory_space<vmem>>, %arg4: memref<2048x512xbf16, #tpu.memory_space<vmem>>, %arg5: memref<1x512xf32, #tpu.memory_space<vmem>>, %arg6: memref<8x512xf32, #tpu.memory_space<vmem>>) attributes {dimension_semantics = [#tpu.dimension_semantics<parallel>], iteration_bounds = array<i64: 1>, scalar_prefetch = 0 : i64, scratch_operands = 0 : i64, tpu.core_type = #tpu.core_type<tc>, window_params = [{transform_indices = @transform_0, window_bounds = array<i64: 8, 512>}, {pipeline_mode = #tpu.pipeline_mode<synchronous>, transform_indices = @transform_1, window_bounds = array<i64: 512, 2048>}, {pipeline_mode = #tpu.pipeline_mode<synchronous>, transform_indices = @transform_2, window_bounds = array<i64: 1, 2048>}, {pipeline_mode = #tpu.pipeline_mode<synchronous>, transform_indices = @transform_3, window_bounds = array<i64: 2048, 512>}, {pipeline_mode = #tpu.pipeline_mode<synchronous>, transform_indices = @transform_4, window_bounds = array<i64: 1, 512>}, {transform_indices = @transform_5, window_bounds = array<i64: 8, 512>}]} {
    %c0 = arith.constant 0 : index
    %c0_0 = arith.constant 0 : index
    %0 = vector.load %arg1[%c0, %c0_0] : memref<8x512xf32, #tpu.memory_space<vmem>>, vector<8x512xf32>
    %1 = arith.truncf %0 : vector<8x512xf32> to vector<8x512xbf16>
    %cst = arith.constant 0.000000e+00 : f32
    %2 = vector.broadcast %cst : f32 to vector<8x512xf32>
    %c0_1 = arith.constant 0 : index
    %c0_2 = arith.constant 0 : index
    %3 = vector.load %arg2[%c0_1, %c0_2] : memref<512x2048xbf16, #tpu.memory_space<vmem>>, vector<512x512xbf16>
    %cst_3 = arith.constant dense<0.000000e+00> : vector<8x512xf32>
    %4 = tpu.matmul %1, %3, %cst_3 {dimension_numbers = #tpu.dot_dimension_numbers<[1], [0], [0], [1], [0, 0, 1, 1], [], []>} : vector<8x512xbf16>, vector<512x512xbf16>, vector<8x512xf32> -> vector<8x512xf32>
    %c0_4 = arith.constant 0 : index
    %c0_5 = arith.constant 0 : index
    %5 = vector.load %arg3[%c0_4, %c0_5] : memref<1x2048xf32, #tpu.memory_space<vmem>>, vector<1x512xf32>
    %6 = vector.broadcast %5 : vector<1x512xf32> to vector<8x512xf32>
    %7 = arith.addf %4, %6 : vector<8x512xf32>
    %cst_6 = arith.constant 0.000000e+00 : f32
    %8 = vector.broadcast %cst_6 : f32 to vector<8x512xf32>
    %9 = arith.maximumf %7, %8 : vector<8x512xf32>
    %10 = arith.truncf %9 : vector<8x512xf32> to vector<8x512xbf16>
    %c0_7 = arith.constant 0 : index
    %c0_8 = arith.constant 0 : index
    %11 = vector.load %arg4[%c0_7, %c0_8] : memref<2048x512xbf16, #tpu.memory_space<vmem>>, vector<512x512xbf16>
    %cst_9 = arith.constant dense<0.000000e+00> : vector<8x512xf32>
    %12 = tpu.matmul %10, %11, %cst_9 {dimension_numbers = #tpu.dot_dimension_numbers<[1], [0], [0], [1], [0, 0, 1, 1], [], []>} : vector<8x512xbf16>, vector<512x512xbf16>, vector<8x512xf32> -> vector<8x512xf32>
    %13 = arith.addf %2, %12 : vector<8x512xf32>
    %c0_10 = arith.constant 0 : index
    %c512 = arith.constant 512 : index
    %14 = vector.load %arg2[%c0_10, %c512] : memref<512x2048xbf16, #tpu.memory_space<vmem>>, vector<512x512xbf16>
    %cst_11 = arith.constant dense<0.000000e+00> : vector<8x512xf32>
    %15 = tpu.matmul %1, %14, %cst_11 {dimension_numbers = #tpu.dot_dimension_numbers<[1], [0], [0], [1], [0, 0, 1, 1], [], []>} : vector<8x512xbf16>, vector<512x512xbf16>, vector<8x512xf32> -> vector<8x512xf32>
    %c0_12 = arith.constant 0 : index
    %c512_13 = arith.constant 512 : index
    %16 = vector.load %arg3[%c0_12, %c512_13] : memref<1x2048xf32, #tpu.memory_space<vmem>>, vector<1x512xf32>
    %17 = vector.broadcast %16 : vector<1x512xf32> to vector<8x512xf32>
    %18 = arith.addf %15, %17 : vector<8x512xf32>
    %cst_14 = arith.constant 0.000000e+00 : f32
    %19 = vector.broadcast %cst_14 : f32 to vector<8x512xf32>
    %20 = arith.maximumf %18, %19 : vector<8x512xf32>
    %21 = arith.truncf %20 : vector<8x512xf32> to vector<8x512xbf16>
    %c512_15 = arith.constant 512 : index
    %c0_16 = arith.constant 0 : index
    %22 = vector.load %arg4[%c512_15, %c0_16] : memref<2048x512xbf16, #tpu.memory_space<vmem>>, vector<512x512xbf16>
    %cst_17 = arith.constant dense<0.000000e+00> : vector<8x512xf32>
    %23 = tpu.matmul %21, %22, %cst_17 {dimension_numbers = #tpu.dot_dimension_numbers<[1], [0], [0], [1], [0, 0, 1, 1], [], []>} : vector<8x512xbf16>, vector<512x512xbf16>, vector<8x512xf32> -> vector<8x512xf32>
    %24 = arith.addf %13, %23 : vector<8x512xf32>
    %c0_18 = arith.constant 0 : index
    %c1024 = arith.constant 1024 : index
    %25 = vector.load %arg2[%c0_18, %c1024] : memref<512x2048xbf16, #tpu.memory_space<vmem>>, vector<512x512xbf16>
    %cst_19 = arith.constant dense<0.000000e+00> : vector<8x512xf32>
    %26 = tpu.matmul %1, %25, %cst_19 {dimension_numbers = #tpu.dot_dimension_numbers<[1], [0], [0], [1], [0, 0, 1, 1], [], []>} : vector<8x512xbf16>, vector<512x512xbf16>, vector<8x512xf32> -> vector<8x512xf32>
    %c0_20 = arith.constant 0 : index
    %c1024_21 = arith.constant 1024 : index
    %27 = vector.load %arg3[%c0_20, %c1024_21] : memref<1x2048xf32, #tpu.memory_space<vmem>>, vector<1x512xf32>
    %28 = vector.broadcast %27 : vector<1x512xf32> to vector<8x512xf32>
    %29 = arith.addf %26, %28 : vector<8x512xf32>
    %cst_22 = arith.constant 0.000000e+00 : f32
    %30 = vector.broadcast %cst_22 : f32 to vector<8x512xf32>
    %31 = arith.maximumf %29, %30 : vector<8x512xf32>
    %32 = arith.truncf %31 : vector<8x512xf32> to vector<8x512xbf16>
    %c1024_23 = arith.constant 1024 : index
    %c0_24 = arith.constant 0 : index
    %33 = vector.load %arg4[%c1024_23, %c0_24] : memref<2048x512xbf16, #tpu.memory_space<vmem>>, vector<512x512xbf16>
    %cst_25 = arith.constant dense<0.000000e+00> : vector<8x512xf32>
    %34 = tpu.matmul %32, %33, %cst_25 {dimension_numbers = #tpu.dot_dimension_numbers<[1], [0], [0], [1], [0, 0, 1, 1], [], []>} : vector<8x512xbf16>, vector<512x512xbf16>, vector<8x512xf32> -> vector<8x512xf32>
    %35 = arith.addf %24, %34 : vector<8x512xf32>
    %c0_26 = arith.constant 0 : index
    %c1536 = arith.constant 1536 : index
    %36 = vector.load %arg2[%c0_26, %c1536] : memref<512x2048xbf16, #tpu.memory_space<vmem>>, vector<512x512xbf16>
    %cst_27 = arith.constant dense<0.000000e+00> : vector<8x512xf32>
    %37 = tpu.matmul %1, %36, %cst_27 {dimension_numbers = #tpu.dot_dimension_numbers<[1], [0], [0], [1], [0, 0, 1, 1], [], []>} : vector<8x512xbf16>, vector<512x512xbf16>, vector<8x512xf32> -> vector<8x512xf32>
    %c0_28 = arith.constant 0 : index
    %c1536_29 = arith.constant 1536 : index
    %38 = vector.load %arg3[%c0_28, %c1536_29] : memref<1x2048xf32, #tpu.memory_space<vmem>>, vector<1x512xf32>
    %39 = vector.broadcast %38 : vector<1x512xf32> to vector<8x512xf32>
    %40 = arith.addf %37, %39 : vector<8x512xf32>
    %cst_30 = arith.constant 0.000000e+00 : f32
    %41 = vector.broadcast %cst_30 : f32 to vector<8x512xf32>
    %42 = arith.maximumf %40, %41 : vector<8x512xf32>
    %43 = arith.truncf %42 : vector<8x512xf32> to vector<8x512xbf16>
    %c1536_31 = arith.constant 1536 : index
    %c0_32 = arith.constant 0 : index
    %44 = vector.load %arg4[%c1536_31, %c0_32] : memref<2048x512xbf16, #tpu.memory_space<vmem>>, vector<512x512xbf16>
    %cst_33 = arith.constant dense<0.000000e+00> : vector<8x512xf32>
    %45 = tpu.matmul %43, %44, %cst_33 {dimension_numbers = #tpu.dot_dimension_numbers<[1], [0], [0], [1], [0, 0, 1, 1], [], []>} : vector<8x512xbf16>, vector<512x512xbf16>, vector<8x512xf32> -> vector<8x512xf32>
    %46 = arith.addf %35, %45 : vector<8x512xf32>
    %c0_34 = arith.constant 0 : index
    %c0_35 = arith.constant 0 : index
    %47 = vector.load %arg5[%c0_34, %c0_35] : memref<1x512xf32, #tpu.memory_space<vmem>>, vector<1x512xf32>
    %48 = vector.broadcast %47 : vector<1x512xf32> to vector<8x512xf32>
    %49 = arith.addf %46, %48 : vector<8x512xf32>
    %c0_36 = arith.constant 0 : index
    %c0_37 = arith.constant 0 : index
    %50 = vector.load %arg6[%c0_36, %c0_37] : memref<8x512xf32, #tpu.memory_space<vmem>>, vector<8x512xf32>
    tpu.vector_store %arg6[%c0_36, %c0_37], %49 {strides = array<i32>} : memref<8x512xf32, #tpu.memory_space<vmem>>, vector<8x512xf32>,
    return
  }
  func.func @transform_0(%arg0: i32) -> (i32, i32) {
    %c0_i32 = arith.constant 0 : i32
    %c0_i32_0 = arith.constant 0 : i32
    return %arg0, %c0_i32 : i32, i32
  }
  func.func @transform_1(%arg0: i32) -> (i32, i32) {
    %c0_i32 = arith.constant 0 : i32
    %c0_i32_0 = arith.constant 0 : i32
    %c0_i32_1 = arith.constant 0 : i32
    return %c0_i32, %c0_i32_0 : i32, i32
  }
  func.func @transform_2(%arg0: i32) -> (i32, i32) {
    %c0_i32 = arith.constant 0 : i32
    %c0_i32_0 = arith.constant 0 : i32
    %c0_i32_1 = arith.constant 0 : i32
    return %c0_i32, %c0_i32_0 : i32, i32
  }
  func.func @transform_3(%arg0: i32) -> (i32, i32) {
    %c0_i32 = arith.constant 0 : i32
    %c0_i32_0 = arith.constant 0 : i32
    %c0_i32_1 = arith.constant 0 : i32
    return %c0_i32, %c0_i32_0 : i32, i32
  }
  func.func @transform_4(%arg0: i32) -> (i32, i32) {
    %c0_i32 = arith.constant 0 : i32
    %c0_i32_0 = arith.constant 0 : i32
    %c0_i32_1 = arith.constant 0 : i32
    return %c0_i32, %c0_i32_0 : i32, i32
  }
  func.func @transform_5(%arg0: i32) -> (i32, i32) {
    %c0_i32 = arith.constant 0 : i32
    %c0_i32_0 = arith.constant 0 : i32
    return %arg0, %c0_i32 : i32, i32
  }
}

</mosaic_0001>

<llo_original>
// kernel: tpu_custom_call.1
$region0: #{tpu_custom_call.1}
  #allocation0 [shape = 'u32[]', space=smem, size = 0x4, offset = 0x4, fixed_abs, tag = 'smem constant byte address 0x4 - core index']
  #allocation1 [shape = 'u32[144,128]{1,0:T(1,128)}', space=vmem, size = 0x12000, scoped, tag = 'internal scratch']
  %s0 = inlined_call_operand.hbm [shape: f32[8,512], index: 0, kind: input, shape index: {}]
  %s1 = inlined_call_operand.hbm [shape: bf16[512,2048], index: 1, kind: input, shape index: {}]
  %s2 = inlined_call_operand.hbm [shape: f32[1,2048], index: 2, kind: input, shape index: {}]
  %s3 = inlined_call_operand.hbm [shape: bf16[2048,512], index: 3, kind: input, shape index: {}]
  %s4 = inlined_call_operand.hbm [shape: f32[1,512], index: 4, kind: input, shape index: {}]
  %s5 = inlined_call_operand.hbm [shape: f32[8,512], index: 5, kind: output, shape index: {}]
  %s6 = sld [smem:[#allocation0]]
  $region50: #{tpu_custom_call.1} parent=0
    _
  %s8 = ssub.s32 1, %s6
  %s9 = scalar_select 0, %s8, %s6
  $region1: #{tpu_custom_call.1} parent=0
    #allocation2 [shape = 'u8[16384]{0}', space=vmem, size = 0x4000, scoped, tag = 'input window, operand 0, single buffered']
    #allocation3 [shape = 's32[1]{0}', space=sflag, size = 0x4, scoped, tag = 'scoped memory for tpu_custom_call.1']
    #allocation4 [shape = 's32[1]{0}', space=sflag, size = 0x4, scoped, tag = 'scoped memory for tpu_custom_call.1']
    #allocation5 [shape = 'u8[2097152]{0}', space=vmem, size = 0x200000, scoped, tag = 'input window, operand 1, single buffered']
    #allocation6 [shape = 's32[1]{0}', space=sflag, size = 0x4, scoped, tag = 'scoped memory for tpu_custom_call.1']
    #allocation7 [shape = 'u8[8192]{0}', space=vmem, size = 0x2000, scoped, tag = 'input window, operand 2, single buffered']
    #allocation8 [shape = 'u8[2097152]{0}', space=vmem, size = 0x200000, scoped, tag = 'input window, operand 3, single buffered']
    #allocation9 [shape = 's32[1]{0}', space=sflag, size = 0x4, scoped, tag = 'scoped memory for tpu_custom_call.1']
    #allocation10 [shape = 'u8[2048]{0}', space=vmem, size = 0x800, scoped, tag = 'input window, operand 4, single buffered']
    #allocation11 [shape = 'u8[16384]{0}', space=vmem, size = 0x4000, scoped, tag = 'output window, operand 0, single buffered']
    %10 = vsyncpa [#allocation3], 0
    %11 = vsyncpa [#allocation6], 0
    %12 = vsyncpa [#allocation9], 0
    %13 = vsyncpa [#allocation4], 0
    // Predicated region
    $region2: #{tpu_custom_call.1} parent=1 // pred_check
      _
    $region3: #{tpu_custom_call.1} parent=1 // pred_check_branch
      %15 = sbr.rel (0) target = $region5
    $region4: #{tpu_custom_call.1} parent=1 // pred_region
      %s17 = ssub.s32 512, 512
      %18 = vsyncadd [#allocation3], %s17
      %s20 = sshll.u32 [#allocation2], 4
      %s21 = int_to_ptr.vmem [resolvable:$true] %s20
      %23 = dma.hbm_to_vmem [thread:$0]  %s0, 512, %s21, [#allocation3]
    $region5: #{tpu_custom_call.1} parent=1 // pred_fallthru
      _
    // Predicated region
    $region6: #{tpu_custom_call.1} parent=1 // pred_check
      _
    $region7: #{tpu_custom_call.1} parent=1 // pred_check_branch
      %25 = sbr.rel (0) target = $region9
    $region8: #{tpu_custom_call.1} parent=1 // pred_region
      %s27 = ssub.s32 65536, 65536
      %28 = vsyncadd [#allocation6], %s27
      %s29 = sshll.u32 [#allocation5], 4
      %s30 = int_to_ptr.vmem [resolvable:$true] %s29
      %35 = dma.hbm_to_vmem [thread:$0]  %s1, 65536, %s30, [#allocation6], 1024, 1024, 64
    $region9: #{tpu_custom_call.1} parent=1 // pred_fallthru
      _
    // Predicated region
    $region10: #{tpu_custom_call.1} parent=1 // pred_check
      _
    $region11: #{tpu_custom_call.1} parent=1 // pred_check_branch
      %37 = sbr.rel (0) target = $region13
    $region12: #{tpu_custom_call.1} parent=1 // pred_region
      %s39 = ssub.s32 256, 256
      %40 = vsyncadd [#allocation6], %s39
      %s42 = sshll.u32 [#allocation7], 4
      %s43 = int_to_ptr.vmem [resolvable:$true] %s42
      %45 = dma.hbm_to_vmem [thread:$0]  %s2, 256, %s43, [#allocation6]
    $region13: #{tpu_custom_call.1} parent=1 // pred_fallthru
      _
    // Predicated region
    $region14: #{tpu_custom_call.1} parent=1 // pred_check
      _
    $region15: #{tpu_custom_call.1} parent=1 // pred_check_branch
      %47 = sbr.rel (0) target = $region17
    $region16: #{tpu_custom_call.1} parent=1 // pred_region
      %s49 = ssub.s32 65536, 65536
      %50 = vsyncadd [#allocation9], %s49
      %s51 = sshll.u32 [#allocation8], 4
      %s52 = int_to_ptr.vmem [resolvable:$true] %s51
      %57 = dma.hbm_to_vmem [thread:$0]  %s3, 65536, %s52, [#allocation9], 256, 256, 16
    $region17: #{tpu_custom_call.1} parent=1 // pred_fallthru
      _
    // Predicated region
    $region18: #{tpu_custom_call.1} parent=1 // pred_check
      _
    $region19: #{tpu_custom_call.1} parent=1 // pred_check_branch
      %59 = sbr.rel (0) target = $region21
    $region20: #{tpu_custom_call.1} parent=1 // pred_region
      %s61 = ssub.s32 64, 64
      %62 = vsyncadd [#allocation9], %s61
      %s64 = sshll.u32 [#allocation10], 4
      %s65 = int_to_ptr.vmem [resolvable:$true] %s64
      %67 = dma.hbm_to_vmem [thread:$0]  %s4, 64, %s65, [#allocation9]
    $region21: #{tpu_custom_call.1} parent=1 // pred_fallthru
      _
    // Predicated region
    $region22: #{tpu_custom_call.1} parent=1 // pred_check
      _
    $region23: #{tpu_custom_call.1} parent=1 // pred_check_branch
      %69 = sbr.rel (0) target = $region25
    $region24: #{tpu_custom_call.1} parent=1 // pred_region
      %70 = dma.done [#allocation3], 512
    $region25: #{tpu_custom_call.1} parent=1 // pred_fallthru
      _
    // Predicated region
    $region26: #{tpu_custom_call.1} parent=1 // pred_check
      _
    $region27: #{tpu_custom_call.1} parent=1 // pred_check_branch
      %72 = sbr.rel (0) target = $region29
    $region28: #{tpu_custom_call.1} parent=1 // pred_region
      %73 = dma.done [#allocation6], 65536
    $region29: #{tpu_custom_call.1} parent=1 // pred_fallthru
      _
    // Predicated region
    $region30: #{tpu_custom_call.1} parent=1 // pred_check
      _
    $region31: #{tpu_custom_call.1} parent=1 // pred_check_branch
      %75 = sbr.rel (0) target = $region33
    $region32: #{tpu_custom_call.1} parent=1 // pred_region
      %76 = dma.done [#allocation6], 256
    $region33: #{tpu_custom_call.1} parent=1 // pred_fallthru
      _
    // Predicated region
    $region34: #{tpu_custom_call.1} parent=1 // pred_check
      _
    $region35: #{tpu_custom_call.1} parent=1 // pred_check_branch
      %78 = sbr.rel (0) target = $region37
    $region36: #{tpu_custom_call.1} parent=1 // pred_region
      %79 = dma.done [#allocation9], 65536
    $region37: #{tpu_custom_call.1} parent=1 // pred_fallthru
      _
    // Predicated region
    $region38: #{tpu_custom_call.1} parent=1 // pred_check
      _
    $region39: #{tpu_custom_call.1} parent=1 // pred_check_branch
      %81 = sbr.rel (0) target = $region41
    $region40: #{tpu_custom_call.1} parent=1 // pred_region
      %82 = dma.done [#allocation9], 64
    $region41: #{tpu_custom_call.1} parent=1 // pred_fallthru
      _
    %v83 = vld [vmem:[#allocation2] sm:$0xff]
    %v84 = vld [vmem:[#allocation2 + $0x8] sm:$0xff]
    %v85 = vld [vmem:[#allocation2 + $0x10] sm:$0xff]
    %v86 = vld [vmem:[#allocation2 + $0x18] sm:$0xff]
    %v87 = vpack.c.bf16 %v83, %v83
    %v88 = vpack.c.bf16 %v84, %v84
    %v89 = vpack.c.bf16 %v85, %v85
    %v90 = vpack.c.bf16 %v86, %v86
    %v91 = vld [vmem:[#allocation5] sm:$0xff]
    %v92 = vld [vmem:[#allocation5 + $0x8] sm:$0xff]
    %v93 = vld [vmem:[#allocation5 + $0x40] sm:$0xff]
    %v94 = vld [vmem:[#allocation5 + $0x48] sm:$0xff]
    %v95 = vld [vmem:[#allocation5 + $0x80] sm:$0xff]
    %v96 = vld [vmem:[#allocation5 + $0x88] sm:$0xff]
    %v97 = vld [vmem:[#allocation5 + $0xc0] sm:$0xff]
    %v98 = vld [vmem:[#allocation5 + $0xc8] sm:$0xff]
    %v99 = vld [vmem:[#allocation5 + $0x100] sm:$0xff]
    %v100 = vld [vmem:[#allocation5 + $0x108] sm:$0xff]
    %v101 = vld [vmem:[#allocation5 + $0x140] sm:$0xff]
    %v102 = vld [vmem:[#allocation5 + $0x148] sm:$0xff]
    %v103 = vld [vmem:[#allocation5 + $0x180] sm:$0xff]
    %v104 = vld [vmem:[#allocation5 + $0x188] sm:$0xff]
    %v105 = vld [vmem:[#allocation5 + $0x1c0] sm:$0xff]
    %v106 = vld [vmem:[#allocation5 + $0x1c8] sm:$0xff]
    %v107 = vld [vmem:[#allocation5 + $0x200] sm:$0xff]
    %v108 = vld [vmem:[#allocation5 + $0x208] sm:$0xff]
    %v109 = vld [vmem:[#allocation5 + $0x240] sm:$0xff]
    %v110 = vld [vmem:[#allocation5 + $0x248] sm:$0xff]
    %v111 = vld [vmem:[#allocation5 + $0x280] sm:$0xff]
    %v112 = vld [vmem:[#allocation5 + $0x288] sm:$0xff]
    %v113 = vld [vmem:[#allocation5 + $0x2c0] sm:$0xff]
    %v114 = vld [vmem:[#allocation5 + $0x2c8] sm:$0xff]
    %v115 = vld [vmem:[#allocation5 + $0x300] sm:$0xff]
    %v116 = vld [vmem:[#allocation5 + $0x308] sm:$0xff]
    %v117 = vld [vmem:[#allocation5 + $0x340] sm:$0xff]
    %v118 = vld [vmem:[#allocation5 + $0x348] sm:$0xff]
    %v119 = vld [vmem:[#allocation5 + $0x380] sm:$0xff]
    %v120 = vld [vmem:[#allocation5 + $0x388] sm:$0xff]
    %v121 = vld [vmem:[#allocation5 + $0x3c0] sm:$0xff]
    %v122 = vld [vmem:[#allocation5 + $0x3c8] sm:$0xff]
    %v123 = vld [vmem:[#allocation5 + $0x400] sm:$0xff]
    %v124 = vld [vmem:[#allocation5 + $0x408] sm:$0xff]
    %v125 = vld [vmem:[#allocation5 + $0x440] sm:$0xff]
    %v126 = vld [vmem:[#allocation5 + $0x448] sm:$0xff]
    %v127 = vld [vmem:[#allocation5 + $0x480] sm:$0xff]
    %v128 = vld [vmem:[#allocation5 + $0x488] sm:$0xff]
    %v129 = vld [vmem:[#allocation5 + $0x4c0] sm:$0xff]
    %v130 = vld [vmem:[#allocation5 + $0x4c8] sm:$0xff]
    %v131 = vld [vmem:[#allocation5 + $0x500] sm:$0xff]
    %v132 = vld [vmem:[#allocation5 + $0x508] sm:$0xff]
    %v133 = vld [vmem:[#allocation5 + $0x540] sm:$0xff]
    %v134 = vld [vmem:[#allocation5 + $0x548] sm:$0xff]
    %v135 = vld [vmem:[#allocation5 + $0x580] sm:$0xff]
    %v136 = vld [vmem:[#allocation5 + $0x588] sm:$0xff]
    %v137 = vld [vmem:[#allocation5 + $0x5c0] sm:$0xff]
    %v138 = vld [vmem:[#allocation5 + $0x5c8] sm:$0xff]
    %v139 = vld [vmem:[#allocation5 + $0x600] sm:$0xff]
    %v140 = vld [vmem:[#allocation5 + $0x608] sm:$0xff]
    %v141 = vld [vmem:[#allocation5 + $0x640] sm:$0xff]
    %v142 = vld [vmem:[#allocation5 + $0x648] sm:$0xff]
    %v143 = vld [vmem:[#allocation5 + $0x680] sm:$0xff]
    %v144 = vld [vmem:[#allocation5 + $0x688] sm:$0xff]
    %v145 = vld [vmem:[#allocation5 + $0x6c0] sm:$0xff]
    %v146 = vld [vmem:[#allocation5 + $0x6c8] sm:$0xff]
    %v147 = vld [vmem:[#allocation5 + $0x700] sm:$0xff]
    %v148 = vld [vmem:[#allocation5 + $0x708] sm:$0xff]
    %v149 = vld [vmem:[#allocation5 + $0x740] sm:$0xff]
    %v150 = vld [vmem:[#allocation5 + $0x748] sm:$0xff]
    %v151 = vld [vmem:[#allocation5 + $0x780] sm:$0xff]
    %v152 = vld [vmem:[#allocation5 + $0x788] sm:$0xff]
    %v153 = vld [vmem:[#allocation5 + $0x7c0] sm:$0xff]
    %v154 = vld [vmem:[#allocation5 + $0x7c8] sm:$0xff]
    %v155 = vld [vmem:[#allocation5 + $0x800] sm:$0xff]
    %v156 = vld [vmem:[#allocation5 + $0x808] sm:$0xff]
    %v157 = vld [vmem:[#allocation5 + $0x840] sm:$0xff]
    %v158 = vld [vmem:[#allocation5 + $0x848] sm:$0xff]
    %v159 = vld [vmem:[#allocation5 + $0x880] sm:$0xff]
    %v160 = vld [vmem:[#allocation5 + $0x888] sm:$0xff]
    %v161 = vld [vmem:[#allocation5 + $0x8c0] sm:$0xff]
    %v162 = vld [vmem:[#allocation5 + $0x8c8] sm:$0xff]
    %v163 = vld [vmem:[#allocation5 + $0x900] sm:$0xff]
    %v164 = vld [vmem:[#allocation5 + $0x908] sm:$0xff]
    %v165 = vld [vmem:[#allocation5 + $0x940] sm:$0xff]
    %v166 = vld [vmem:[#allocation5 + $0x948] sm:$0xff]
    %v167 = vld [vmem:[#allocation5 + $0x980] sm:$0xff]
    %v168 = vld [vmem:[#allocation5 + $0x988] sm:$0xff]
    %v169 = vld [vmem:[#allocation5 + $0x9c0] sm:$0xff]
    %v170 = vld [vmem:[#allocation5 + $0x9c8] sm:$0xff]
    %v171 = vld [vmem:[#allocation5 + $0xa00] sm:$0xff]
    %v172 = vld [vmem:[#allocation5 + $0xa08] sm:$0xff]
    %v173 = vld [vmem:[#allocation5 + $0xa40] sm:$0xff]
    %v174 = vld [vmem:[#allocation5 + $0xa48] sm:$0xff]
    %v175 = vld [vmem:[#allocation5 + $0xa80] sm:$0xff]
    %v176 = vld [vmem:[#allocation5 + $0xa88] sm:$0xff]
    %v177 = vld [vmem:[#allocation5 + $0xac0] sm:$0xff]
    %v178 = vld [vmem:[#allocation5 + $0xac8] sm:$0xff]
    %v179 = vld [vmem:[#allocation5 + $0xb00] sm:$0xff]
    %v180 = vld [vmem:[#allocation5 + $0xb08] sm:$0xff]
    %v181 = vld [vmem:[#allocation5 + $0xb40] sm:$0xff]
    %v182 = vld [vmem:[#allocation5 + $0xb48] sm:$0xff]
    %v183 = vld [vmem:[#allocation5 + $0xb80] sm:$0xff]
    %v184 = vld [vmem:[#allocation5 + $0xb88] sm:$0xff]
    %v185 = vld [vmem:[#allocation5 + $0xbc0] sm:$0xff]
    %v186 = vld [vmem:[#allocation5 + $0xbc8] sm:$0xff]
    %v187 = vld [vmem:[#allocation5 + $0xc00] sm:$0xff]
    %v188 = vld [vmem:[#allocation5 + $0xc08] sm:$0xff]
    %v189 = vld [vmem:[#allocation5 + $0xc40] sm:$0xff]
    %v190 = vld [vmem:[#allocation5 + $0xc48] sm:$0xff]
    %v191 = vld [vmem:[#allocation5 + $0xc80] sm:$0xff]
    %v192 = vld [vmem:[#allocation5 + $0xc88] sm:$0xff]
    %v193 = vld [vmem:[#allocation5 + $0xcc0] sm:$0xff]
    %v194 = vld [vmem:[#allocation5 + $0xcc8] sm:$0xff]
    %v195 = vld [vmem:[#allocation5 + $0xd00] sm:$0xff]
    %v196 = vld [vmem:[#allocation5 + $0xd08] sm:$0xff]
    %v197 = vld [vmem:[#allocation5 + $0xd40] sm:$0xff]
    %v198 = vld [vmem:[#allocation5 + $0xd48] sm:$0xff]
    %v199 = vld [vmem:[#allocation5 + $0xd80] sm:$0xff]
    %v200 = vld [vmem:[#allocation5 + $0xd88] sm:$0xff]
    %v201 = vld [vmem:[#allocation5 + $0xdc0] sm:$0xff]
    %v202 = vld [vmem:[#allocation5 + $0xdc8] sm:$0xff]
    %v203 = vld [vmem:[#allocation5 + $0xe00] sm:$0xff]
    %v204 = vld [vmem:[#allocation5 + $0xe08] sm:$0xff]
    %v205 = vld [vmem:[#allocation5 + $0xe40] sm:$0xff]
    %v206 = vld [vmem:[#allocation5 + $0xe48] sm:$0xff]
    %v207 = vld [vmem:[#allocation5 + $0xe80] sm:$0xff]
    %v208 = vld [vmem:[#allocation5 + $0xe88] sm:$0xff]
    %v209 = vld [vmem:[#allocation5 + $0xec0] sm:$0xff]
    %v210 = vld [vmem:[#allocation5 + $0xec8] sm:$0xff]
    %v211 = vld [vmem:[#allocation5 + $0xf00] sm:$0xff]
    %v212 = vld [vmem:[#allocation5 + $0xf08] sm:$0xff]
    %v213 = vld [vmem:[#allocation5 + $0xf40] sm:$0xff]
    %v214 = vld [vmem:[#allocation5 + $0xf48] sm:$0xff]
    %v215 = vld [vmem:[#allocation5 + $0xf80] sm:$0xff]
    %v216 = vld [vmem:[#allocation5 + $0xf88] sm:$0xff]
    %v217 = vld [vmem:[#allocation5 + $0xfc0] sm:$0xff]
    %v218 = vld [vmem:[#allocation5 + $0xfc8] sm:$0xff]
    %v219 = vld [vmem:[#allocation7] sm:$0xf]
    %v221 = vlaneseq
    %v222 = vshrl.u32 %v221, 7
    %v223 = vsub.s32 0, %v222
    %v224 = vrot.slane %v219, %v223
    %v225 = vlaneseq
    %v226 = vshrl.u32 %v225, 7
    %v227 = vsub.s32 1, %v226
    %v228 = vrot.slane %v219, %v227
    %v229 = vlaneseq
    %v230 = vshrl.u32 %v229, 7
    %v231 = vsub.s32 2, %v230
    %v232 = vrot.slane %v219, %v231
    %v233 = vlaneseq
    %v234 = vshrl.u32 %v233, 7
    %v235 = vsub.s32 3, %v234
    %v236 = vrot.slane %v219, %v235
    %v369 = vunpack.c.l.b16 %v91
    %v370 = vunpack.c.h.b16 %v91
    %v371 = vunpack.c.l.b16 %v92
    %v372 = vunpack.c.h.b16 %v92
    %v373 = vunpack.c.l.b16 %v93
    %v374 = vunpack.c.h.b16 %v93
    %v375 = vunpack.c.l.b16 %v94
    %v376 = vunpack.c.h.b16 %v94
    %v377 = vunpack.c.l.b16 %v95
    %v378 = vunpack.c.h.b16 %v95
    %v379 = vunpack.c.l.b16 %v96
    %v380 = vunpack.c.h.b16 %v96
    %v381 = vunpack.c.l.b16 %v97
    %v382 = vunpack.c.h.b16 %v97
    %v383 = vunpack.c.l.b16 %v98
    %v384 = vunpack.c.h.b16 %v98
    %v385 = vunpack.c.l.b16 %v99
    %v386 = vunpack.c.h.b16 %v99
    %v387 = vunpack.c.l.b16 %v100
    %v388 = vunpack.c.h.b16 %v100
    %v389 = vunpack.c.l.b16 %v101
    %v390 = vunpack.c.h.b16 %v101
    %v391 = vunpack.c.l.b16 %v102
    %v392 = vunpack.c.h.b16 %v102
    %v393 = vunpack.c.l.b16 %v103
    %v394 = vunpack.c.h.b16 %v103
    %v395 = vunpack.c.l.b16 %v104
    %v396 = vunpack.c.h.b16 %v104
    %v397 = vunpack.c.l.b16 %v105
    %v398 = vunpack.c.h.b16 %v105
    %v399 = vunpack.c.l.b16 %v106
    %v400 = vunpack.c.h.b16 %v106
    %v401 = vunpack.c.l.b16 %v107
    %v402 = vunpack.c.h.b16 %v107
    %v403 = vunpack.c.l.b16 %v108
    %v404 = vunpack.c.h.b16 %v108
    %v405 = vunpack.c.l.b16 %v109
    %v406 = vunpack.c.h.b16 %v109
    %v407 = vunpack.c.l.b16 %v110
    %v408 = vunpack.c.h.b16 %v110
    %v409 = vunpack.c.l.b16 %v111
    %v410 = vunpack.c.h.b16 %v111
    %v411 = vunpack.c.l.b16 %v112
    %v412 = vunpack.c.h.b16 %v112
    %v413 = vunpack.c.l.b16 %v113
    %v414 = vunpack.c.h.b16 %v113
    %v415 = vunpack.c.l.b16 %v114
    %v416 = vunpack.c.h.b16 %v114
    %v417 = vunpack.c.l.b16 %v115
    %v418 = vunpack.c.h.b16 %v115
    %v419 = vunpack.c.l.b16 %v116
    %v420 = vunpack.c.h.b16 %v116
    %v421 = vunpack.c.l.b16 %v117
    %v422 = vunpack.c.h.b16 %v117
    %v423 = vunpack.c.l.b16 %v118
    %v424 = vunpack.c.h.b16 %v118
    %v425 = vunpack.c.l.b16 %v119
    %v426 = vunpack.c.h.b16 %v119
    %v427 = vunpack.c.l.b16 %v120
    %v428 = vunpack.c.h.b16 %v120
    %v429 = vunpack.c.l.b16 %v121
    %v430 = vunpack.c.h.b16 %v121
    %v431 = vunpack.c.l.b16 %v122
    %v432 = vunpack.c.h.b16 %v122
    %v433 = vunpack.c.l.b16 %v123
    %v434 = vunpack.c.h.b16 %v123
    %v435 = vunpack.c.l.b16 %v124
    %v436 = vunpack.c.h.b16 %v124
    %v437 = vunpack.c.l.b16 %v125
    %v438 = vunpack.c.h.b16 %v125
    %v439 = vunpack.c.l.b16 %v126
    %v440 = vunpack.c.h.b16 %v126
    %v441 = vunpack.c.l.b16 %v127
    %v442 = vunpack.c.h.b16 %v127
    %v443 = vunpack.c.l.b16 %v128
    %v444 = vunpack.c.h.b16 %v128
    %v445 = vunpack.c.l.b16 %v129
    %v446 = vunpack.c.h.b16 %v129
    %v447 = vunpack.c.l.b16 %v130
    %v448 = vunpack.c.h.b16 %v130
    %v449 = vunpack.c.l.b16 %v131
    %v450 = vunpack.c.h.b16 %v131
    %v451 = vunpack.c.l.b16 %v132
    %v452 = vunpack.c.h.b16 %v132
    %v453 = vunpack.c.l.b16 %v133
    %v454 = vunpack.c.h.b16 %v133
    %v455 = vunpack.c.l.b16 %v134
    %v456 = vunpack.c.h.b16 %v134
    %v457 = vunpack.c.l.b16 %v135
    %v458 = vunpack.c.h.b16 %v135
    %v459 = vunpack.c.l.b16 %v136
    %v460 = vunpack.c.h.b16 %v136
    %v461 = vunpack.c.l.b16 %v137
    %v462 = vunpack.c.h.b16 %v137
    %v463 = vunpack.c.l.b16 %v138
    %v464 = vunpack.c.h.b16 %v138
    %v465 = vunpack.c.l.b16 %v139
    %v466 = vunpack.c.h.b16 %v139
    %v467 = vunpack.c.l.b16 %v140
    %v468 = vunpack.c.h.b16 %v140
    %v469 = vunpack.c.l.b16 %v141
    %v470 = vunpack.c.h.b16 %v141
    %v471 = vunpack.c.l.b16 %v142
    %v472 = vunpack.c.h.b16 %v142
    %v473 = vunpack.c.l.b16 %v143
    %v474 = vunpack.c.h.b16 %v143
    %v475 = vunpack.c.l.b16 %v144
    %v476 = vunpack.c.h.b16 %v144
    %v477 = vunpack.c.l.b16 %v145
    %v478 = vunpack.c.h.b16 %v145
    %v479 = vunpack.c.l.b16 %v146
    %v480 = vunpack.c.h.b16 %v146
    %v481 = vunpack.c.l.b16 %v147
    %v482 = vunpack.c.h.b16 %v147
    %v483 = vunpack.c.l.b16 %v148
    %v484 = vunpack.c.h.b16 %v148
    %v485 = vunpack.c.l.b16 %v149
    %v486 = vunpack.c.h.b16 %v149
    %v487 = vunpack.c.l.b16 %v150
    %v488 = vunpack.c.h.b16 %v150
    %v489 = vunpack.c.l.b16 %v151
    %v490 = vunpack.c.h.b16 %v151
    %v491 = vunpack.c.l.b16 %v152
    %v492 = vunpack.c.h.b16 %v152
    %v493 = vunpack.c.l.b16 %v153
    %v494 = vunpack.c.h.b16 %v153
    %v495 = vunpack.c.l.b16 %v154
    %v496 = vunpack.c.h.b16 %v154
    %v497 = vunpack.c.l.b16 %v155
    %v498 = vunpack.c.h.b16 %v155
    %v499 = vunpack.c.l.b16 %v156
    %v500 = vunpack.c.h.b16 %v156
    %v501 = vunpack.c.l.b16 %v157
    %v502 = vunpack.c.h.b16 %v157
    %v503 = vunpack.c.l.b16 %v158
    %v504 = vunpack.c.h.b16 %v158
    %v505 = vunpack.c.l.b16 %v159
    %v506 = vunpack.c.h.b16 %v159
    %v507 = vunpack.c.l.b16 %v160
    %v508 = vunpack.c.h.b16 %v160
    %v509 = vunpack.c.l.b16 %v161
    %v510 = vunpack.c.h.b16 %v161
    %v511 = vunpack.c.l.b16 %v162
    %v512 = vunpack.c.h.b16 %v162
    %v513 = vunpack.c.l.b16 %v163
    %v514 = vunpack.c.h.b16 %v163
    %v515 = vunpack.c.l.b16 %v164
    %v516 = vunpack.c.h.b16 %v164
    %v517 = vunpack.c.l.b16 %v165
    %v518 = vunpack.c.h.b16 %v165
    %v519 = vunpack.c.l.b16 %v166
    %v520 = vunpack.c.h.b16 %v166
    %v521 = vunpack.c.l.b16 %v167
    %v522 = vunpack.c.h.b16 %v167
    %v523 = vunpack.c.l.b16 %v168
    %v524 = vunpack.c.h.b16 %v168
    %v525 = vunpack.c.l.b16 %v169
    %v526 = vunpack.c.h.b16 %v169
    %v527 = vunpack.c.l.b16 %v170
    %v528 = vunpack.c.h.b16 %v170
    %v529 = vunpack.c.l.b16 %v171
    %v530 = vunpack.c.h.b16 %v171
    %v531 = vunpack.c.l.b16 %v172
    %v532 = vunpack.c.h.b16 %v172
    %v533 = vunpack.c.l.b16 %v173
    %v534 = vunpack.c.h.b16 %v173
    %v535 = vunpack.c.l.b16 %v174
    %v536 = vunpack.c.h.b16 %v174
    %v537 = vunpack.c.l.b16 %v175
    %v538 = vunpack.c.h.b16 %v175
    %v539 = vunpack.c.l.b16 %v176
    %v540 = vunpack.c.h.b16 %v176
    %v541 = vunpack.c.l.b16 %v177
    %v542 = vunpack.c.h.b16 %v177
    %v543 = vunpack.c.l.b16 %v178
    %v544 = vunpack.c.h.b16 %v178
    %v545 = vunpack.c.l.b16 %v179
    %v546 = vunpack.c.h.b16 %v179
    %v547 = vunpack.c.l.b16 %v180
    %v548 = vunpack.c.h.b16 %v180
    %v549 = vunpack.c.l.b16 %v181
    %v550 = vunpack.c.h.b16 %v181
    %v551 = vunpack.c.l.b16 %v182
    %v552 = vunpack.c.h.b16 %v182
    %v553 = vunpack.c.l.b16 %v183
    %v554 = vunpack.c.h.b16 %v183
    %v555 = vunpack.c.l.b16 %v184
    %v556 = vunpack.c.h.b16 %v184
    %v557 = vunpack.c.l.b16 %v185
    %v558 = vunpack.c.h.b16 %v185
    %v559 = vunpack.c.l.b16 %v186
    %v560 = vunpack.c.h.b16 %v186
    %v561 = vunpack.c.l.b16 %v187
    %v562 = vunpack.c.h.b16 %v187
    %v563 = vunpack.c.l.b16 %v188
    %v564 = vunpack.c.h.b16 %v188
    %v565 = vunpack.c.l.b16 %v189
    %v566 = vunpack.c.h.b16 %v189
    %v567 = vunpack.c.l.b16 %v190
    %v568 = vunpack.c.h.b16 %v190
    %v569 = vunpack.c.l.b16 %v191
    %v570 = vunpack.c.h.b16 %v191
    %v571 = vunpack.c.l.b16 %v192
    %v572 = vunpack.c.h.b16 %v192
    %v573 = vunpack.c.l.b16 %v193
    %v574 = vunpack.c.h.b16 %v193
    %v575 = vunpack.c.l.b16 %v194
    %v576 = vunpack.c.h.b16 %v194
    %v577 = vunpack.c.l.b16 %v195
    %v578 = vunpack.c.h.b16 %v195
    %v579 = vunpack.c.l.b16 %v196
    %v580 = vunpack.c.h.b16 %v196
    %v581 = vunpack.c.l.b16 %v197
    %v582 = vunpack.c.h.b16 %v197
    %v583 = vunpack.c.l.b16 %v198
    %v584 = vunpack.c.h.b16 %v198
    %v585 = vunpack.c.l.b16 %v199
    %v586 = vunpack.c.h.b16 %v199
    %v587 = vunpack.c.l.b16 %v200
    %v588 = vunpack.c.h.b16 %v200
    %v589 = vunpack.c.l.b16 %v201
    %v590 = vunpack.c.h.b16 %v201
    %v591 = vunpack.c.l.b16 %v202
    %v592 = vunpack.c.h.b16 %v202
    %v593 = vunpack.c.l.b16 %v203
    %v594 = vunpack.c.h.b16 %v203
    %v595 = vunpack.c.l.b16 %v204
    %v596 = vunpack.c.h.b16 %v204
    %v597 = vunpack.c.l.b16 %v205
    %v598 = vunpack.c.h.b16 %v205
    %v599 = vunpack.c.l.b16 %v206
    %v600 = vunpack.c.h.b16 %v206
    %v601 = vunpack.c.l.b16 %v207
    %v602 = vunpack.c.h.b16 %v207
    %v603 = vunpack.c.l.b16 %v208
    %v604 = vunpack.c.h.b16 %v208
    %v605 = vunpack.c.l.b16 %v209
    %v606 = vunpack.c.h.b16 %v209
    %v607 = vunpack.c.l.b16 %v210
    %v608 = vunpack.c.h.b16 %v210
    %v609 = vunpack.c.l.b16 %v211
    %v610 = vunpack.c.h.b16 %v211
    %v611 = vunpack.c.l.b16 %v212
    %v612 = vunpack.c.h.b16 %v212
    %v613 = vunpack.c.l.b16 %v213
    %v614 = vunpack.c.h.b16 %v213
    %v615 = vunpack.c.l.b16 %v214
    %v616 = vunpack.c.h.b16 %v214
    %v617 = vunpack.c.l.b16 %v215
    %v618 = vunpack.c.h.b16 %v215
    %v619 = vunpack.c.l.b16 %v216
    %v620 = vunpack.c.h.b16 %v216
    %v621 = vunpack.c.l.b16 %v217
    %v622 = vunpack.c.h.b16 %v217
    %v623 = vunpack.c.l.b16 %v218
    %v624 = vunpack.c.h.b16 %v218
    %v625 = vpack.c.b16 %v373, %v369
    %v626 = vpack.c.b16 %v374, %v370
    %v627 = vpack.c.b16 %v375, %v371
    %v628 = vpack.c.b16 %v376, %v372
    %v629 = vpack.c.b16 %v381, %v377
    %v630 = vpack.c.b16 %v382, %v378
    %v631 = vpack.c.b16 %v383, %v379
    %v632 = vpack.c.b16 %v384, %v380
    %v633 = vpack.c.b16 %v389, %v385
    %v634 = vpack.c.b16 %v390, %v386
    %v635 = vpack.c.b16 %v391, %v387
    %v636 = vpack.c.b16 %v392, %v388
    %v637 = vpack.c.b16 %v397, %v393
    %v638 = vpack.c.b16 %v398, %v394
    %v639 = vpack.c.b16 %v399, %v395
    %v640 = vpack.c.b16 %v400, %v396
    %v641 = vpack.c.b16 %v405, %v401
    %v642 = vpack.c.b16 %v406, %v402
    %v643 = vpack.c.b16 %v407, %v403
    %v644 = vpack.c.b16 %v408, %v404
    %v645 = vpack.c.b16 %v413, %v409
    %v646 = vpack.c.b16 %v414, %v410
    %v647 = vpack.c.b16 %v415, %v411
    %v648 = vpack.c.b16 %v416, %v412
    %v649 = vpack.c.b16 %v421, %v417
    %v650 = vpack.c.b16 %v422, %v418
    %v651 = vpack.c.b16 %v423, %v419
    %v652 = vpack.c.b16 %v424, %v420
    %v653 = vpack.c.b16 %v429, %v425
    %v654 = vpack.c.b16 %v430, %v426
    %v655 = vpack.c.b16 %v431, %v427
    %v656 = vpack.c.b16 %v432, %v428
    %v657 = vpack.c.b16 %v437, %v433
    %v658 = vpack.c.b16 %v438, %v434
    %v659 = vpack.c.b16 %v439, %v435
    %v660 = vpack.c.b16 %v440, %v436
    %v661 = vpack.c.b16 %v445, %v441
    %v662 = vpack.c.b16 %v446, %v442
    %v663 = vpack.c.b16 %v447, %v443
    %v664 = vpack.c.b16 %v448, %v444
    %v665 = vpack.c.b16 %v453, %v449
    %v666 = vpack.c.b16 %v454, %v450
    %v667 = vpack.c.b16 %v455, %v451
    %v668 = vpack.c.b16 %v456, %v452
    %v669 = vpack.c.b16 %v461, %v457
    %v670 = vpack.c.b16 %v462, %v458
    %v671 = vpack.c.b16 %v463, %v459
    %v672 = vpack.c.b16 %v464, %v460
    %v673 = vpack.c.b16 %v469, %v465
    %v674 = vpack.c.b16 %v470, %v466
    %v675 = vpack.c.b16 %v471, %v467
    %v676 = vpack.c.b16 %v472, %v468
    %v677 = vpack.c.b16 %v477, %v473
    %v678 = vpack.c.b16 %v478, %v474
    %v679 = vpack.c.b16 %v479, %v475
    %v680 = vpack.c.b16 %v480, %v476
    %v681 = vpack.c.b16 %v485, %v481
    %v682 = vpack.c.b16 %v486, %v482
    %v683 = vpack.c.b16 %v487, %v483
    %v684 = vpack.c.b16 %v488, %v484
    %v685 = vpack.c.b16 %v493, %v489
    %v686 = vpack.c.b16 %v494, %v490
    %v687 = vpack.c.b16 %v495, %v491
    %v688 = vpack.c.b16 %v496, %v492
    %v689 = vpack.c.b16 %v501, %v497
    %v690 = vpack.c.b16 %v502, %v498
    %v691 = vpack.c.b16 %v503, %v499
    %v692 = vpack.c.b16 %v504, %v500
    %v693 = vpack.c.b16 %v509, %v505
    %v694 = vpack.c.b16 %v510, %v506
    %v695 = vpack.c.b16 %v511, %v507
    %v696 = vpack.c.b16 %v512, %v508
    %v697 = vpack.c.b16 %v517, %v513
    %v698 = vpack.c.b16 %v518, %v514
    %v699 = vpack.c.b16 %v519, %v515
    %v700 = vpack.c.b16 %v520, %v516
    %v701 = vpack.c.b16 %v525, %v521
    %v702 = vpack.c.b16 %v526, %v522
    %v703 = vpack.c.b16 %v527, %v523
    %v704 = vpack.c.b16 %v528, %v524
    %v705 = vpack.c.b16 %v533, %v529
    %v706 = vpack.c.b16 %v534, %v530
    %v707 = vpack.c.b16 %v535, %v531
    %v708 = vpack.c.b16 %v536, %v532
    %v709 = vpack.c.b16 %v541, %v537
    %v710 = vpack.c.b16 %v542, %v538
    %v711 = vpack.c.b16 %v543, %v539
    %v712 = vpack.c.b16 %v544, %v540
    %v713 = vpack.c.b16 %v549, %v545
    %v714 = vpack.c.b16 %v550, %v546
    %v715 = vpack.c.b16 %v551, %v547
    %v716 = vpack.c.b16 %v552, %v548
    %v717 = vpack.c.b16 %v557, %v553
    %v718 = vpack.c.b16 %v558, %v554
    %v719 = vpack.c.b16 %v559, %v555
    %v720 = vpack.c.b16 %v560, %v556
    %v721 = vpack.c.b16 %v565, %v561
    %v722 = vpack.c.b16 %v566, %v562
    %v723 = vpack.c.b16 %v567, %v563
    %v724 = vpack.c.b16 %v568, %v564
    %v725 = vpack.c.b16 %v573, %v569
    %v726 = vpack.c.b16 %v574, %v570
    %v727 = vpack.c.b16 %v575, %v571
    %v728 = vpack.c.b16 %v576, %v572
    %v729 = vpack.c.b16 %v581, %v577
    %v730 = vpack.c.b16 %v582, %v578
    %v731 = vpack.c.b16 %v583, %v579
    %v732 = vpack.c.b16 %v584, %v580
    %v733 = vpack.c.b16 %v589, %v585
    %v734 = vpack.c.b16 %v590, %v586
    %v735 = vpack.c.b16 %v591, %v587
    %v736 = vpack.c.b16 %v592, %v588
    %v737 = vpack.c.b16 %v597, %v593
    %v738 = vpack.c.b16 %v598, %v594
    %v739 = vpack.c.b16 %v599, %v595
    %v740 = vpack.c.b16 %v600, %v596
    %v741 = vpack.c.b16 %v605, %v601
    %v742 = vpack.c.b16 %v606, %v602
    %v743 = vpack.c.b16 %v607, %v603
    %v744 = vpack.c.b16 %v608, %v604
    %v745 = vpack.c.b16 %v613, %v609
    %v746 = vpack.c.b16 %v614, %v610
    %v747 = vpack.c.b16 %v615, %v611
    %v748 = vpack.c.b16 %v616, %v612
    %v749 = vpack.c.b16 %v621, %v617
    %v750 = vpack.c.b16 %v622, %v618
    %v751 = vpack.c.b16 %v623, %v619
    %v752 = vpack.c.b16 %v624, %v620
    %881 = vmatprep.subr.bf16.mxu0 %v626
    %882 = vmatpush1.bf16.msra.mxu0 %v625
    %883 = vmatprep.subr.bf16.mxu0 %v630
    %884 = vmatpush1.bf16.msra.mxu0 %v629
    %885 = vmatprep.subr.bf16.mxu0 %v634
    %886 = vmatpush1.bf16.msra.mxu0 %v633
    %887 = vmatprep.subr.bf16.mxu0 %v638
    %888 = vmatpush1.bf16.msra.mxu0 %v637
    %889 = vmatprep.subr.bf16.mxu0 %v642
    %890 = vmatpush1.bf16.msra.mxu0 %v641
    %891 = vmatprep.subr.bf16.mxu0 %v646
    %892 = vmatpush1.bf16.msra.mxu0 %v645
    %893 = vmatprep.subr.bf16.mxu0 %v650
    %894 = vmatpush1.bf16.msra.mxu0 %v649
    %895 = vmatprep.subr.bf16.mxu0 %v654
    %896 = vmatpush1.bf16.msra.mxu0 %v653
    %897 = vmatprep.subr.bf16.mxu0 %v658
    %898 = vmatpush1.bf16.msra.mxu0 %v657
    %899 = vmatprep.subr.bf16.mxu0 %v662
    %900 = vmatpush1.bf16.msra.mxu0 %v661
    %901 = vmatprep.subr.bf16.mxu0 %v666
    %902 = vmatpush1.bf16.msra.mxu0 %v665
    %903 = vmatprep.subr.bf16.mxu0 %v670
    %904 = vmatpush1.bf16.msra.mxu0 %v669
    %905 = vmatprep.subr.bf16.mxu0 %v674
    %906 = vmatpush1.bf16.msra.mxu0 %v673
    %907 = vmatprep.subr.bf16.mxu0 %v678
    %908 = vmatpush1.bf16.msra.mxu0 %v677
    %909 = vmatprep.subr.bf16.mxu0 %v682
    %910 = vmatpush1.bf16.msra.mxu0 %v681
    %911 = vmatprep.subr.bf16.mxu0 %v686
    %912 = vmatpush1.bf16.msra.mxu0 %v685
    %913 = vmatprep.mubr.bf16.mxu0 %v88
    %914 = vmatmul.mubr.bf16.gmra.mrb[0].mxu0 %v87
    %v915 = vpop.f32.mrb[0].mxu0
    %v916 = vadd.f32 %v224, %v915
    %v917 = vpop.f32.mrb[0].mxu0
    %v918 = vadd.f32 %v228, %v917
    %v919 = vpop.f32.mrb[0].mxu0
    %v920 = vpop.f32.mrb[0].mxu0
    %921 = vdwg.mxu0
    %922 = vmatprep.subr.bf16.mxu0 %v690
    %923 = vmatpush1.bf16.msra.mxu0 %v689
    %924 = vmatprep.subr.bf16.mxu0 %v694
    %925 = vmatpush1.bf16.msra.mxu0 %v693
    %926 = vmatprep.subr.bf16.mxu0 %v698
    %927 = vmatpush1.bf16.msra.mxu0 %v697
    %928 = vmatprep.subr.bf16.mxu0 %v702
    %929 = vmatpush1.bf16.msra.mxu0 %v701
    %930 = vmatprep.subr.bf16.mxu0 %v706
    %931 = vmatpush1.bf16.msra.mxu0 %v705
    %932 = vmatprep.subr.bf16.mxu0 %v710
    %933 = vmatpush1.bf16.msra.mxu0 %v709
    %934 = vmatprep.subr.bf16.mxu0 %v714
    %935 = vmatpush1.bf16.msra.mxu0 %v713
    %936 = vmatprep.subr.bf16.mxu0 %v718
    %937 = vmatpush1.bf16.msra.mxu0 %v717
    %938 = vmatprep.subr.bf16.mxu0 %v722
    %939 = vmatpush1.bf16.msra.mxu0 %v721
    %940 = vmatprep.subr.bf16.mxu0 %v726
    %941 = vmatpush1.bf16.msra.mxu0 %v725
    %942 = vmatprep.subr.bf16.mxu0 %v730
    %943 = vmatpush1.bf16.msra.mxu0 %v729
    %944 = vmatprep.subr.bf16.mxu0 %v734
    %945 = vmatpush1.bf16.msra.mxu0 %v733
    %946 = vmatprep.subr.bf16.mxu0 %v738
    %947 = vmatpush1.bf16.msra.mxu0 %v737
    %948 = vmatprep.subr.bf16.mxu0 %v742
    %949 = vmatpush1.bf16.msra.mxu0 %v741
    %950 = vmatprep.subr.bf16.mxu0 %v746
    %951 = vmatpush1.bf16.msra.mxu0 %v745
    %952 = vmatprep.subr.bf16.mxu0 %v750
    %953 = vmatpush1.bf16.msra.mxu0 %v749
    %954 = vmatprep.mubr.bf16.mxu0 %v90
    %955 = vmatmul.mubr.bf16.gmra.mrb[0].mxu0 %v89
    %v956 = vpop.f32.mrb[0].mxu0
    %v957 = vadd.f32 %v916, %v956
    %v958 = vpop.f32.mrb[0].mxu0
    %v959 = vadd.f32 %v918, %v958
    %v960 = vpop.f32.mrb[0].mxu0
    %v961 = vpop.f32.mrb[0].mxu0
    %962 = vdwg.mxu0
    %963 = vmatprep.subr.bf16.mxu0 %v628
    %964 = vmatpush1.bf16.msra.mxu0 %v627
    %965 = vmatprep.subr.bf16.mxu0 %v632
    %966 = vmatpush1.bf16.msra.mxu0 %v631
    %967 = vmatprep.subr.bf16.mxu0 %v636
    %968 = vmatpush1.bf16.msra.mxu0 %v635
    %969 = vmatprep.subr.bf16.mxu0 %v640
    %970 = vmatpush1.bf16.msra.mxu0 %v639
    %971 = vmatprep.subr.bf16.mxu0 %v644
    %972 = vmatpush1.bf16.msra.mxu0 %v643
    %973 = vmatprep.subr.bf16.mxu0 %v648
    %974 = vmatpush1.bf16.msra.mxu0 %v647
    %975 = vmatprep.subr.bf16.mxu0 %v652
    %976 = vmatpush1.bf16.msra.mxu0 %v651
    %977 = vmatprep.subr.bf16.mxu0 %v656
    %978 = vmatpush1.bf16.msra.mxu0 %v655
    %979 = vmatprep.subr.bf16.mxu0 %v660
    %980 = vmatpush1.bf16.msra.mxu0 %v659
    %981 = vmatprep.subr.bf16.mxu0 %v664
    %982 = vmatpush1.bf16.msra.mxu0 %v663
    %983 = vmatprep.subr.bf16.mxu0 %v668
    %984 = vmatpush1.bf16.msra.mxu0 %v667
    %985 = vmatprep.subr.bf16.mxu0 %v672
    %986 = vmatpush1.bf16.msra.mxu0 %v671
    %987 = vmatprep.subr.bf16.mxu0 %v676
    %988 = vmatpush1.bf16.msra.mxu0 %v675
    %989 = vmatprep.subr.bf16.mxu0 %v680
    %990 = vmatpush1.bf16.msra.mxu0 %v679
    %991 = vmatprep.subr.bf16.mxu0 %v684
    %992 = vmatpush1.bf16.msra.mxu0 %v683
    %993 = vmatprep.subr.bf16.mxu0 %v688
    %994 = vmatpush1.bf16.msra.mxu0 %v687
    %995 = vmatprep.mubr.bf16.mxu0 %v88
    %996 = vmatmul.mubr.bf16.gmra.mrb[0].mxu0 %v87
    %v997 = vpop.f32.mrb[0].mxu0
    %v998 = vadd.f32 %v232, %v997
    %v999 = vpop.f32.mrb[0].mxu0
    %v1000 = vadd.f32 %v236, %v999
    %v1001 = vpop.f32.mrb[0].mxu0
    %v1002 = vpop.f32.mrb[0].mxu0
    %1003 = vdwg.mxu0
    %1004 = vmatprep.subr.bf16.mxu0 %v692
    %1005 = vmatpush1.bf16.msra.mxu0 %v691
    %1006 = vmatprep.subr.bf16.mxu0 %v696
    %1007 = vmatpush1.bf16.msra.mxu0 %v695
    %1008 = vmatprep.subr.bf16.mxu0 %v700
    %1009 = vmatpush1.bf16.msra.mxu0 %v699
    %1010 = vmatprep.subr.bf16.mxu0 %v704
    %1011 = vmatpush1.bf16.msra.mxu0 %v703
    %1012 = vmatprep.subr.bf16.mxu0 %v708
    %1013 = vmatpush1.bf16.msra.mxu0 %v707
    %1014 = vmatprep.subr.bf16.mxu0 %v712
    %1015 = vmatpush1.bf16.msra.mxu0 %v711
    %1016 = vmatprep.subr.bf16.mxu0 %v716
    %1017 = vmatpush1.bf16.msra.mxu0 %v715
    %1018 = vmatprep.subr.bf16.mxu0 %v720
    %1019 = vmatpush1.bf16.msra.mxu0 %v719
    %1020 = vmatprep.subr.bf16.mxu0 %v724
    %1021 = vmatpush1.bf16.msra.mxu0 %v723
    %1022 = vmatprep.subr.bf16.mxu0 %v728
    %1023 = vmatpush1.bf16.msra.mxu0 %v727
    %1024 = vmatprep.subr.bf16.mxu0 %v732
    %1025 = vmatpush1.bf16.msra.mxu0 %v731
    %1026 = vmatprep.subr.bf16.mxu0 %v736
    %1027 = vmatpush1.bf16.msra.mxu0 %v735
    %1028 = vmatprep.subr.bf16.mxu0 %v740
    %1029 = vmatpush1.bf16.msra.mxu0 %v739
    %1030 = vmatprep.subr.bf16.mxu0 %v744
    %1031 = vmatpush1.bf16.msra.mxu0 %v743
    %1032 = vmatprep.subr.bf16.mxu0 %v748
    %1033 = vmatpush1.bf16.msra.mxu0 %v747
    %1034 = vmatprep.subr.bf16.mxu0 %v752
    %1035 = vmatpush1.bf16.msra.mxu0 %v751
    %1036 = vmatprep.mubr.bf16.mxu0 %v90
    %1037 = vmatmul.mubr.bf16.gmra.mrb[0].mxu0 %v89
    %v1038 = vpop.f32.mrb[0].mxu0
    %v1039 = vadd.f32 %v998, %v1038
    %v1040 = vpop.f32.mrb[0].mxu0
    %v1041 = vadd.f32 %v1000, %v1040
    %v1042 = vpop.f32.mrb[0].mxu0
    %v1043 = vpop.f32.mrb[0].mxu0
    %1044 = vdwg.mxu0
    %v1045 = vmax.f32 %v957, 0.0
    %v1046 = vmax.f32 %v959, 0.0
    %v1047 = vmax.f32 %v1039, 0.0
    %v1048 = vmax.f32 %v1041, 0.0
    %v1049 = vpack.c.bf16 %v1045, %v1045
    %v1050 = vpack.c.bf16 %v1046, %v1046
    %v1051 = vpack.c.bf16 %v1047, %v1047
    %v1052 = vpack.c.bf16 %v1048, %v1048
    %v1053 = vld [vmem:[#allocation8] sm:$0xff]
    %v1054 = vld [vmem:[#allocation8 + $0x8] sm:$0xff]
    %v1055 = vld [vmem:[#allocation8 + $0x10] sm:$0xff]
    %v1056 = vld [vmem:[#allocation8 + $0x18] sm:$0xff]
    %v1057 = vld [vmem:[#allocation8 + $0x20] sm:$0xff]
    %v1058 = vld [vmem:[#allocation8 + $0x28] sm:$0xff]
    %v1059 = vld [vmem:[#allocation8 + $0x30] sm:$0xff]
    %v1060 = vld [vmem:[#allocation8 + $0x38] sm:$0xff]
    %v1061 = vld [vmem:[#allocation8 + $0x40] sm:$0xff]
    %v1062 = vld [vmem:[#allocation8 + $0x48] sm:$0xff]
    %v1063 = vld [vmem:[#allocation8 + $0x50] sm:$0xff]
    %v1064 = vld [vmem:[#allocation8 + $0x58] sm:$0xff]
    %v1065 = vld [vmem:[#allocation8 + $0x60] sm:$0xff]
    %v1066 = vld [vmem:[#allocation8 + $0x68] sm:$0xff]
    %v1067 = vld [vmem:[#allocation8 + $0x70] sm:$0xff]
    %v1068 = vld [vmem:[#allocation8 + $0x78] sm:$0xff]
    %v1069 = vld [vmem:[#allocation8 + $0x80] sm:$0xff]
    %v1070 = vld [vmem:[#allocation8 + $0x88] sm:$0xff]
    %v1071 = vld [vmem:[#allocation8 + $0x90] sm:$0xff]
    %v1072 = vld [vmem:[#allocation8 + $0x98] sm:$0xff]
    %v1073 = vld [vmem:[#allocation8 + $0xa0] sm:$0xff]
    %v1074 = vld [vmem:[#allocation8 + $0xa8] sm:$0xff]
    %v1075 = vld [vmem:[#allocation8 + $0xb0] sm:$0xff]
    %v1076 = vld [vmem:[#allocation8 + $0xb8] sm:$0xff]
    %v1077 = vld [vmem:[#allocation8 + $0xc0] sm:$0xff]
    %v1078 = vld [vmem:[#allocation8 + $0xc8] sm:$0xff]
    %v1079 = vld [vmem:[#allocation8 + $0xd0] sm:$0xff]
    %v1080 = vld [vmem:[#allocation8 + $0xd8] sm:$0xff]
    %v1081 = vld [vmem:[#allocation8 + $0xe0] sm:$0xff]
    %v1082 = vld [vmem:[#allocation8 + $0xe8] sm:$0xff]
    %v1083 = vld [vmem:[#allocation8 + $0xf0] sm:$0xff]
    %v1084 = vld [vmem:[#allocation8 + $0xf8] sm:$0xff]
    %v1085 = vld [vmem:[#allocation8 + $0x100] sm:$0xff]
    %v1086 = vld [vmem:[#allocation8 + $0x108] sm:$0xff]
    %v1087 = vld [vmem:[#allocation8 + $0x110] sm:$0xff]
    %v1088 = vld [vmem:[#allocation8 + $0x118] sm:$0xff]
    %v1089 = vld [vmem:[#allocation8 + $0x120] sm:$0xff]
    %v1090 = vld [vmem:[#allocation8 + $0x128] sm:$0xff]
    %v1091 = vld [vmem:[#allocation8 + $0x130] sm:$0xff]
    %v1092 = vld [vmem:[#allocation8 + $0x138] sm:$0xff]
    %v1093 = vld [vmem:[#allocation8 + $0x140] sm:$0xff]
    %v1094 = vld [vmem:[#allocation8 + $0x148] sm:$0xff]
    %v1095 = vld [vmem:[#allocation8 + $0x150] sm:$0xff]
    %v1096 = vld [vmem:[#allocation8 + $0x158] sm:$0xff]
    %v1097 = vld [vmem:[#allocation8 + $0x160] sm:$0xff]
    %v1098 = vld [vmem:[#allocation8 + $0x168] sm:$0xff]
    %v1099 = vld [vmem:[#allocation8 + $0x170] sm:$0xff]
    %v1100 = vld [vmem:[#allocation8 + $0x178] sm:$0xff]
    %v1101 = vld [vmem:[#allocation8 + $0x180] sm:$0xff]
    %v1102 = vld [vmem:[#allocation8 + $0x188] sm:$0xff]
    %v1103 = vld [vmem:[#allocation8 + $0x190] sm:$0xff]
    %v1104 = vld [vmem:[#allocation8 + $0x198] sm:$0xff]
    %v1105 = vld [vmem:[#allocation8 + $0x1a0] sm:$0xff]
    %v1106 = vld [vmem:[#allocation8 + $0x1a8] sm:$0xff]
    %v1107 = vld [vmem:[#allocation8 + $0x1b0] sm:$0xff]
    %v1108 = vld [vmem:[#allocation8 + $0x1b8] sm:$0xff]
    %v1109 = vld [vmem:[#allocation8 + $0x1c0] sm:$0xff]
    %v1110 = vld [vmem:[#allocation8 + $0x1c8] sm:$0xff]
    %v1111 = vld [vmem:[#allocation8 + $0x1d0] sm:$0xff]
    %v1112 = vld [vmem:[#allocation8 + $0x1d8] sm:$0xff]
    %v1113 = vld [vmem:[#allocation8 + $0x1e0] sm:$0xff]
    %v1114 = vld [vmem:[#allocation8 + $0x1e8] sm:$0xff]
    %v1115 = vld [vmem:[#allocation8 + $0x1f0] sm:$0xff]
    %v1116 = vld [vmem:[#allocation8 + $0x1f8] sm:$0xff]
    %v1117 = vld [vmem:[#allocation8 + $0x200] sm:$0xff]
    %v1118 = vld [vmem:[#allocation8 + $0x208] sm:$0xff]
    %v1119 = vld [vmem:[#allocation8 + $0x210] sm:$0xff]
    %v1120 = vld [vmem:[#allocation8 + $0x218] sm:$0xff]
    %v1121 = vld [vmem:[#allocation8 + $0x220] sm:$0xff]
    %v1122 = vld [vmem:[#allocation8 + $0x228] sm:$0xff]
    %v1123 = vld [vmem:[#allocation8 + $0x230] sm:$0xff]
    %v1124 = vld [vmem:[#allocation8 + $0x238] sm:$0xff]
    %v1125 = vld [vmem:[#allocation8 + $0x240] sm:$0xff]
    %v1126 = vld [vmem:[#allocation8 + $0x248] sm:$0xff]
    %v1127 = vld [vmem:[#allocation8 + $0x250] sm:$0xff]
    %v1128 = vld [vmem:[#allocation8 + $0x258] sm:$0xff]
    %v1129 = vld [vmem:[#allocation8 + $0x260] sm:$0xff]
    %v1130 = vld [vmem:[#allocation8 + $0x268] sm:$0xff]
    %v1131 = vld [vmem:[#allocation8 + $0x270] sm:$0xff]
    %v1132 = vld [vmem:[#allocation8 + $0x278] sm:$0xff]
    %v1133 = vld [vmem:[#allocation8 + $0x280] sm:$0xff]
    %v1134 = vld [vmem:[#allocation8 + $0x288] sm:$0xff]
    %v1135 = vld [vmem:[#allocation8 + $0x290] sm:$0xff]
    %v1136 = vld [vmem:[#allocation8 + $0x298] sm:$0xff]
    %v1137 = vld [vmem:[#allocation8 + $0x2a0] sm:$0xff]
    %v1138 = vld [vmem:[#allocation8 + $0x2a8] sm:$0xff]
    %v1139 = vld [vmem:[#allocation8 + $0x2b0] sm:$0xff]
    %v1140 = vld [vmem:[#allocation8 + $0x2b8] sm:$0xff]
    %v1141 = vld [vmem:[#allocation8 + $0x2c0] sm:$0xff]
    %v1142 = vld [vmem:[#allocation8 + $0x2c8] sm:$0xff]
    %v1143 = vld [vmem:[#allocation8 + $0x2d0] sm:$0xff]
    %v1144 = vld [vmem:[#allocation8 + $0x2d8] sm:$0xff]
    %v1145 = vld [vmem:[#allocation8 + $0x2e0] sm:$0xff]
    %v1146 = vld [vmem:[#allocation8 + $0x2e8] sm:$0xff]
    %v1147 = vld [vmem:[#allocation8 + $0x2f0] sm:$0xff]
    %v1148 = vld [vmem:[#allocation8 + $0x2f8] sm:$0xff]
    %v1149 = vld [vmem:[#allocation8 + $0x300] sm:$0xff]
    %v1150 = vld [vmem:[#allocation8 + $0x308] sm:$0xff]
    %v1151 = vld [vmem:[#allocation8 + $0x310] sm:$0xff]
    %v1152 = vld [vmem:[#allocation8 + $0x318] sm:$0xff]
    %v1153 = vld [vmem:[#allocation8 + $0x320] sm:$0xff]
    %v1154 = vld [vmem:[#allocation8 + $0x328] sm:$0xff]
    %v1155 = vld [vmem:[#allocation8 + $0x330] sm:$0xff]
    %v1156 = vld [vmem:[#allocation8 + $0x338] sm:$0xff]
    %v1157 = vld [vmem:[#allocation8 + $0x340] sm:$0xff]
    %v1158 = vld [vmem:[#allocation8 + $0x348] sm:$0xff]
    %v1159 = vld [vmem:[#allocation8 + $0x350] sm:$0xff]
    %v1160 = vld [vmem:[#allocation8 + $0x358] sm:$0xff]
    %v1161 = vld [vmem:[#allocation8 + $0x360] sm:$0xff]
    %v1162 = vld [vmem:[#allocation8 + $0x368] sm:$0xff]
    %v1163 = vld [vmem:[#allocation8 + $0x370] sm:$0xff]
    %v1164 = vld [vmem:[#allocation8 + $0x378] sm:$0xff]
    %v1165 = vld [vmem:[#allocation8 + $0x380] sm:$0xff]
    %v1166 = vld [vmem:[#allocation8 + $0x388] sm:$0xff]
    %v1167 = vld [vmem:[#allocation8 + $0x390] sm:$0xff]
    %v1168 = vld [vmem:[#allocation8 + $0x398] sm:$0xff]
    %v1169 = vld [vmem:[#allocation8 + $0x3a0] sm:$0xff]
    %v1170 = vld [vmem:[#allocation8 + $0x3a8] sm:$0xff]
    %v1171 = vld [vmem:[#allocation8 + $0x3b0] sm:$0xff]
    %v1172 = vld [vmem:[#allocation8 + $0x3b8] sm:$0xff]
    %v1173 = vld [vmem:[#allocation8 + $0x3c0] sm:$0xff]
    %v1174 = vld [vmem:[#allocation8 + $0x3c8] sm:$0xff]
    %v1175 = vld [vmem:[#allocation8 + $0x3d0] sm:$0xff]
    %v1176 = vld [vmem:[#allocation8 + $0x3d8] sm:$0xff]
    %v1177 = vld [vmem:[#allocation8 + $0x3e0] sm:$0xff]
    %v1178 = vld [vmem:[#allocation8 + $0x3e8] sm:$0xff]
    %v1179 = vld [vmem:[#allocation8 + $0x3f0] sm:$0xff]
    %v1180 = vld [vmem:[#allocation8 + $0x3f8] sm:$0xff]
    %v1181 = vld [vmem:[#allocation5 + $0x10] sm:$0xff]
    %v1182 = vld [vmem:[#allocation5 + $0x18] sm:$0xff]
    %v1183 = vld [vmem:[#allocation5 + $0x50] sm:$0xff]
    %v1184 = vld [vmem:[#allocation5 + $0x58] sm:$0xff]
    %v1185 = vld [vmem:[#allocation5 + $0x90] sm:$0xff]
    %v1186 = vld [vmem:[#allocation5 + $0x98] sm:$0xff]
    %v1187 = vld [vmem:[#allocation5 + $0xd0] sm:$0xff]
    %v1188 = vld [vmem:[#allocation5 + $0xd8] sm:$0xff]
    %v1189 = vld [vmem:[#allocation5 + $0x110] sm:$0xff]
    %v1190 = vld [vmem:[#allocation5 + $0x118] sm:$0xff]
    %v1191 = vld [vmem:[#allocation5 + $0x150] sm:$0xff]
    %v1192 = vld [vmem:[#allocation5 + $0x158] sm:$0xff]
    %v1193 = vld [vmem:[#allocation5 + $0x190] sm:$0xff]
    %v1194 = vld [vmem:[#allocation5 + $0x198] sm:$0xff]
    %v1195 = vld [vmem:[#allocation5 + $0x1d0] sm:$0xff]
    %v1196 = vld [vmem:[#allocation5 + $0x1d8] sm:$0xff]
    %v1197 = vld [vmem:[#allocation5 + $0x210] sm:$0xff]
    %v1198 = vld [vmem:[#allocation5 + $0x218] sm:$0xff]
    %v1199 = vld [vmem:[#allocation5 + $0x250] sm:$0xff]
    %v1200 = vld [vmem:[#allocation5 + $0x258] sm:$0xff]
    %v1201 = vld [vmem:[#allocation5 + $0x290] sm:$0xff]
    %v1202 = vld [vmem:[#allocation5 + $0x298] sm:$0xff]
    %v1203 = vld [vmem:[#allocation5 + $0x2d0] sm:$0xff]
    %v1204 = vld [vmem:[#allocation5 + $0x2d8] sm:$0xff]
    %v1205 = vld [vmem:[#allocation5 + $0x310] sm:$0xff]
    %v1206 = vld [vmem:[#allocation5 + $0x318] sm:$0xff]
    %v1207 = vld [vmem:[#allocation5 + $0x350] sm:$0xff]
    %v1208 = vld [vmem:[#allocation5 + $0x358] sm:$0xff]
    %v1209 = vld [vmem:[#allocation5 + $0x390] sm:$0xff]
    %v1210 = vld [vmem:[#allocation5 + $0x398] sm:$0xff]
    %v1211 = vld [vmem:[#allocation5 + $0x3d0] sm:$0xff]
    %v1212 = vld [vmem:[#allocation5 + $0x3d8] sm:$0xff]
    %v1213 = vld [vmem:[#allocation5 + $0x410] sm:$0xff]
    %v1214 = vld [vmem:[#allocation5 + $0x418] sm:$0xff]
    %v1215 = vld [vmem:[#allocation5 + $0x450] sm:$0xff]
    %v1216 = vld [vmem:[#allocation5 + $0x458] sm:$0xff]
    %v1217 = vld [vmem:[#allocation5 + $0x490] sm:$0xff]
    %v1218 = vld [vmem:[#allocation5 + $0x498] sm:$0xff]
    %v1219 = vld [vmem:[#allocation5 + $0x4d0] sm:$0xff]
    %v1220 = vld [vmem:[#allocation5 + $0x4d8] sm:$0xff]
    %v1221 = vld [vmem:[#allocation5 + $0x510] sm:$0xff]
    %v1222 = vld [vmem:[#allocation5 + $0x518] sm:$0xff]
    %v1223 = vld [vmem:[#allocation5 + $0x550] sm:$0xff]
    %v1224 = vld [vmem:[#allocation5 + $0x558] sm:$0xff]
    %v1225 = vld [vmem:[#allocation5 + $0x590] sm:$0xff]
    %v1226 = vld [vmem:[#allocation5 + $0x598] sm:$0xff]
    %v1227 = vld [vmem:[#allocation5 + $0x5d0] sm:$0xff]
    %v1228 = vld [vmem:[#allocation5 + $0x5d8] sm:$0xff]
    %v1229 = vld [vmem:[#allocation5 + $0x610] sm:$0xff]
    %v1230 = vld [vmem:[#allocation5 + $0x618] sm:$0xff]
    %v1231 = vld [vmem:[#allocation5 + $0x650] sm:$0xff]
    %v1232 = vld [vmem:[#allocation5 + $0x658] sm:$0xff]
    %v1233 = vld [vmem:[#allocation5 + $0x690] sm:$0xff]
    %v1234 = vld [vmem:[#allocation5 + $0x698] sm:$0xff]
    %v1235 = vld [vmem:[#allocation5 + $0x6d0] sm:$0xff]
    %v1236 = vld [vmem:[#allocation5 + $0x6d8] sm:$0xff]
    %v1237 = vld [vmem:[#allocation5 + $0x710] sm:$0xff]
    %v1238 = vld [vmem:[#allocation5 + $0x718] sm:$0xff]
    %v1239 = vld [vmem:[#allocation5 + $0x750] sm:$0xff]
    %v1240 = vld [vmem:[#allocation5 + $0x758] sm:$0xff]
    %v1241 = vld [vmem:[#allocation5 + $0x790] sm:$0xff]
    %v1242 = vld [vmem:[#allocation5 + $0x798] sm:$0xff]
    %v1243 = vld [vmem:[#allocation5 + $0x7d0] sm:$0xff]
    %v1244 = vld [vmem:[#allocation5 + $0x7d8] sm:$0xff]
    %v1245 = vld [vmem:[#allocation5 + $0x810] sm:$0xff]
    %v1246 = vld [vmem:[#allocation5 + $0x818] sm:$0xff]
    %v1247 = vld [vmem:[#allocation5 + $0x850] sm:$0xff]
    %v1248 = vld [vmem:[#allocation5 + $0x858] sm:$0xff]
    %v1249 = vld [vmem:[#allocation5 + $0x890] sm:$0xff]
    %v1250 = vld [vmem:[#allocation5 + $0x898] sm:$0xff]
    %v1251 = vld [vmem:[#allocation5 + $0x8d0] sm:$0xff]
    %v1252 = vld [vmem:[#allocation5 + $0x8d8] sm:$0xff]
    %v1253 = vld [vmem:[#allocation5 + $0x910] sm:$0xff]
    %v1254 = vld [vmem:[#allocation5 + $0x918] sm:$0xff]
    %v1255 = vld [vmem:[#allocation5 + $0x950] sm:$0xff]
    %v1256 = vld [vmem:[#allocation5 + $0x958] sm:$0xff]
    %v1257 = vld [vmem:[#allocation5 + $0x990] sm:$0xff]
    %v1258 = vld [vmem:[#allocation5 + $0x998] sm:$0xff]
    %v1259 = vld [vmem:[#allocation5 + $0x9d0] sm:$0xff]
    %v1260 = vld [vmem:[#allocation5 + $0x9d8] sm:$0xff]
    %v1261 = vld [vmem:[#allocation5 + $0xa10] sm:$0xff]
    %v1262 = vld [vmem:[#allocation5 + $0xa18] sm:$0xff]
    %v1263 = vld [vmem:[#allocation5 + $0xa50] sm:$0xff]
    %v1264 = vld [vmem:[#allocation5 + $0xa58] sm:$0xff]
    %v1265 = vld [vmem:[#allocation5 + $0xa90] sm:$0xff]
    %v1266 = vld [vmem:[#allocation5 + $0xa98] sm:$0xff]
    %v1267 = vld [vmem:[#allocation5 + $0xad0] sm:$0xff]
    %v1268 = vld [vmem:[#allocation5 + $0xad8] sm:$0xff]
    %v1269 = vld [vmem:[#allocation5 + $0xb10] sm:$0xff]
    %v1270 = vld [vmem:[#allocation5 + $0xb18] sm:$0xff]
    %v1271 = vld [vmem:[#allocation5 + $0xb50] sm:$0xff]
    %v1272 = vld [vmem:[#allocation5 + $0xb58] sm:$0xff]
    %v1273 = vld [vmem:[#allocation5 + $0xb90] sm:$0xff]
    %v1274 = vld [vmem:[#allocation5 + $0xb98] sm:$0xff]
    %v1275 = vld [vmem:[#allocation5 + $0xbd0] sm:$0xff]
    %v1276 = vld [vmem:[#allocation5 + $0xbd8] sm:$0xff]
    %v1277 = vld [vmem:[#allocation5 + $0xc10] sm:$0xff]
    %v1278 = vld [vmem:[#allocation5 + $0xc18] sm:$0xff]
    %v1279 = vld [vmem:[#allocation5 + $0xc50] sm:$0xff]
    %v1280 = vld [vmem:[#allocation5 + $0xc58] sm:$0xff]
    %v1281 = vld [vmem:[#allocation5 + $0xc90] sm:$0xff]
    %v1282 = vld [vmem:[#allocation5 + $0xc98] sm:$0xff]
    %v1283 = vld [vmem:[#allocation5 + $0xcd0] sm:$0xff]
    %v1284 = vld [vmem:[#allocation5 + $0xcd8] sm:$0xff]
    %v1285 = vld [vmem:[#allocation5 + $0xd10] sm:$0xff]
    %v1286 = vld [vmem:[#allocation5 + $0xd18] sm:$0xff]
    %v1287 = vld [vmem:[#allocation5 + $0xd50] sm:$0xff]
    %v1288 = vld [vmem:[#allocation5 + $0xd58] sm:$0xff]
    %v1289 = vld [vmem:[#allocation5 + $0xd90] sm:$0xff]
    %v1290 = vld [vmem:[#allocation5 + $0xd98] sm:$0xff]
    %v1291 = vld [vmem:[#allocation5 + $0xdd0] sm:$0xff]
    %v1292 = vld [vmem:[#allocation5 + $0xdd8] sm:$0xff]
    %v1293 = vld [vmem:[#allocation5 + $0xe10] sm:$0xff]
    %v1294 = vld [vmem:[#allocation5 + $0xe18] sm:$0xff]
    %v1295 = vld [vmem:[#allocation5 + $0xe50] sm:$0xff]
    %v1296 = vld [vmem:[#allocation5 + $0xe58] sm:$0xff]
    %v1297 = vld [vmem:[#allocation5 + $0xe90] sm:$0xff]
    %v1298 = vld [vmem:[#allocation5 + $0xe98] sm:$0xff]
    %v1299 = vld [vmem:[#allocation5 + $0xed0] sm:$0xff]
    %v1300 = vld [vmem:[#allocation5 + $0xed8] sm:$0xff]
    %v1301 = vld [vmem:[#allocation5 + $0xf10] sm:$0xff]
    %v1302 = vld [vmem:[#allocation5 + $0xf18] sm:$0xff]
    %v1303 = vld [vmem:[#allocation5 + $0xf50] sm:$0xff]
    %v1304 = vld [vmem:[#allocation5 + $0xf58] sm:$0xff]
    %v1305 = vld [vmem:[#allocation5 + $0xf90] sm:$0xff]
    %v1306 = vld [vmem:[#allocation5 + $0xf98] sm:$0xff]
    %v1307 = vld [vmem:[#allocation5 + $0xfd0] sm:$0xff]
    %v1308 = vld [vmem:[#allocation5 + $0xfd8] sm:$0xff]
    %v1309 = vld [vmem:[#allocation7 + $0x4] sm:$0xf]
    %v1311 = vlaneseq
    %v1312 = vshrl.u32 %v1311, 7
    %v1313 = vsub.s32 0, %v1312
    %v1314 = vrot.slane %v1309, %v1313
    %v1315 = vlaneseq
    %v1316 = vshrl.u32 %v1315, 7
    %v1317 = vsub.s32 1, %v1316
    %v1318 = vrot.slane %v1309, %v1317
    %v1319 = vlaneseq
    %v1320 = vshrl.u32 %v1319, 7
    %v1321 = vsub.s32 2, %v1320
    %v1322 = vrot.slane %v1309, %v1321
    %v1323 = vlaneseq
    %v1324 = vshrl.u32 %v1323, 7
    %v1325 = vsub.s32 3, %v1324
    %v1326 = vrot.slane %v1309, %v1325
    %v1459 = vunpack.c.l.b16 %v1181
    %v1460 = vunpack.c.h.b16 %v1181
    %v1461 = vunpack.c.l.b16 %v1182
    %v1462 = vunpack.c.h.b16 %v1182
    %v1463 = vunpack.c.l.b16 %v1183
    %v1464 = vunpack.c.h.b16 %v1183
    %v1465 = vunpack.c.l.b16 %v1184
    %v1466 = vunpack.c.h.b16 %v1184
    %v1467 = vunpack.c.l.b16 %v1185
    %v1468 = vunpack.c.h.b16 %v1185
    %v1469 = vunpack.c.l.b16 %v1186
    %v1470 = vunpack.c.h.b16 %v1186
    %v1471 = vunpack.c.l.b16 %v1187
    %v1472 = vunpack.c.h.b16 %v1187
    %v1473 = vunpack.c.l.b16 %v1188
    %v1474 = vunpack.c.h.b16 %v1188
    %v1475 = vunpack.c.l.b16 %v1189
    %v1476 = vunpack.c.h.b16 %v1189
    %v1477 = vunpack.c.l.b16 %v1190
    %v1478 = vunpack.c.h.b16 %v1190
    %v1479 = vunpack.c.l.b16 %v1191
    %v1480 = vunpack.c.h.b16 %v1191
    %v1481 = vunpack.c.l.b16 %v1192
    %v1482 = vunpack.c.h.b16 %v1192
    %v1483 = vunpack.c.l.b16 %v1193
    %v1484 = vunpack.c.h.b16 %v1193
    %v1485 = vunpack.c.l.b16 %v1194
    %v1486 = vunpack.c.h.b16 %v1194
    %v1487 = vunpack.c.l.b16 %v1195
    %v1488 = vunpack.c.h.b16 %v1195
    %v1489 = vunpack.c.l.b16 %v1196
    %v1490 = vunpack.c.h.b16 %v1196
    %v1491 = vunpack.c.l.b16 %v1197
    %v1492 = vunpack.c.h.b16 %v1197
    %v1493 = vunpack.c.l.b16 %v1198
    %v1494 = vunpack.c.h.b16 %v1198
    %v1495 = vunpack.c.l.b16 %v1199
    %v1496 = vunpack.c.h.b16 %v1199
    %v1497 = vunpack.c.l.b16 %v1200
    %v1498 = vunpack.c.h.b16 %v1200
    %v1499 = vunpack.c.l.b16 %v1201
    %v1500 = vunpack.c.h.b16 %v1201
    %v1501 = vunpack.c.l.b16 %v1202
    %v1502 = vunpack.c.h.b16 %v1202
    %v1503 = vunpack.c.l.b16 %v1203
    %v1504 = vunpack.c.h.b16 %v1203
    %v1505 = vunpack.c.l.b16 %v1204
    %v1506 = vunpack.c.h.b16 %v1204
    %v1507 = vunpack.c.l.b16 %v1205
    %v1508 = vunpack.c.h.b16 %v1205
    %v1509 = vunpack.c.l.b16 %v1206
    %v1510 = vunpack.c.h.b16 %v1206
    %v1511 = vunpack.c.l.b16 %v1207
    %v1512 = vunpack.c.h.b16 %v1207
    %v1513 = vunpack.c.l.b16 %v1208
    %v1514 = vunpack.c.h.b16 %v1208
    %v1515 = vunpack.c.l.b16 %v1209
    %v1516 = vunpack.c.h.b16 %v1209
    %v1517 = vunpack.c.l.b16 %v1210
    %v1518 = vunpack.c.h.b16 %v1210
    %v1519 = vunpack.c.l.b16 %v1211
    %v1520 = vunpack.c.h.b16 %v1211
    %v1521 = vunpack.c.l.b16 %v1212
    %v1522 = vunpack.c.h.b16 %v1212
    %v1523 = vunpack.c.l.b16 %v1213
    %v1524 = vunpack.c.h.b16 %v1213
    %v1525 = vunpack.c.l.b16 %v1214
    %v1526 = vunpack.c.h.b16 %v1214
    %v1527 = vunpack.c.l.b16 %v1215
    %v1528 = vunpack.c.h.b16 %v1215
    %v1529 = vunpack.c.l.b16 %v1216
    %v1530 = vunpack.c.h.b16 %v1216
    %v1531 = vunpack.c.l.b16 %v1217
    %v1532 = vunpack.c.h.b16 %v1217
    %v1533 = vunpack.c.l.b16 %v1218
    %v1534 = vunpack.c.h.b16 %v1218
    %v1535 = vunpack.c.l.b16 %v1219
    %v1536 = vunpack.c.h.b16 %v1219
    %v1537 = vunpack.c.l.b16 %v1220
    %v1538 = vunpack.c.h.b16 %v1220
    %v1539 = vunpack.c.l.b16 %v1221
    %v1540 = vunpack.c.h.b16 %v1221
    %v1541 = vunpack.c.l.b16 %v1222
    %v1542 = vunpack.c.h.b16 %v1222
    %v1543 = vunpack.c.l.b16 %v1223
    %v1544 = vunpack.c.h.b16 %v1223
    %v1545 = vunpack.c.l.b16 %v1224
    %v1546 = vunpack.c.h.b16 %v1224
    %v1547 = vunpack.c.l.b16 %v1225
    %v1548 = vunpack.c.h.b16 %v1225
    %v1549 = vunpack.c.l.b16 %v1226
    %v1550 = vunpack.c.h.b16 %v1226
    %v1551 = vunpack.c.l.b16 %v1227
    %v1552 = vunpack.c.h.b16 %v1227
    %v1553 = vunpack.c.l.b16 %v1228
    %v1554 = vunpack.c.h.b16 %v1228
    %v1555 = vunpack.c.l.b16 %v1229
    %v1556 = vunpack.c.h.b16 %v1229
    %v1557 = vunpack.c.l.b16 %v1230
    %v1558 = vunpack.c.h.b16 %v1230
    %v1559 = vunpack.c.l.b16 %v1231
    %v1560 = vunpack.c.h.b16 %v1231
    %v1561 = vunpack.c.l.b16 %v1232
    %v1562 = vunpack.c.h.b16 %v1232
    %v1563 = vunpack.c.l.b16 %v1233
    %v1564 = vunpack.c.h.b16 %v1233
    %v1565 = vunpack.c.l.b16 %v1234
    %v1566 = vunpack.c.h.b16 %v1234
    %v1567 = vunpack.c.l.b16 %v1235
    %v1568 = vunpack.c.h.b16 %v1235
    %v1569 = vunpack.c.l.b16 %v1236
    %v1570 = vunpack.c.h.b16 %v1236
    %v1571 = vunpack.c.l.b16 %v1237
    %v1572 = vunpack.c.h.b16 %v1237
    %v1573 = vunpack.c.l.b16 %v1238
    %v1574 = vunpack.c.h.b16 %v1238
    %v1575 = vunpack.c.l.b16 %v1239
    %v1576 = vunpack.c.h.b16 %v1239
    %v1577 = vunpack.c.l.b16 %v1240
    %v1578 = vunpack.c.h.b16 %v1240
    %v1579 = vunpack.c.l.b16 %v1241
    %v1580 = vunpack.c.h.b16 %v1241
    %v1581 = vunpack.c.l.b16 %v1242
    %v1582 = vunpack.c.h.b16 %v1242
    %v1583 = vunpack.c.l.b16 %v1243
    %v1584 = vunpack.c.h.b16 %v1243
    %v1585 = vunpack.c.l.b16 %v1244
    %v1586 = vunpack.c.h.b16 %v1244
    %v1587 = vunpack.c.l.b16 %v1245
    %v1588 = vunpack.c.h.b16 %v1245
    %v1589 = vunpack.c.l.b16 %v1246
    %v1590 = vunpack.c.h.b16 %v1246
    %v1591 = vunpack.c.l.b16 %v1247
    %v1592 = vunpack.c.h.b16 %v1247
    %v1593 = vunpack.c.l.b16 %v1248
    %v1594 = vunpack.c.h.b16 %v1248
    %v1595 = vunpack.c.l.b16 %v1249
    %v1596 = vunpack.c.h.b16 %v1249
    %v1597 = vunpack.c.l.b16 %v1250
    %v1598 = vunpack.c.h.b16 %v1250
    %v1599 = vunpack.c.l.b16 %v1251
    %v1600 = vunpack.c.h.b16 %v1251
    %v1601 = vunpack.c.l.b16 %v1252
    %v1602 = vunpack.c.h.b16 %v1252
    %v1603 = vunpack.c.l.b16 %v1253
    %v1604 = vunpack.c.h.b16 %v1253
    %v1605 = vunpack.c.l.b16 %v1254
    %v1606 = vunpack.c.h.b16 %v1254
    %v1607 = vunpack.c.l.b16 %v1255
    %v1608 = vunpack.c.h.b16 %v1255
    %v1609 = vunpack.c.l.b16 %v1256
    %v1610 = vunpack.c.h.b16 %v1256
    %v1611 = vunpack.c.l.b16 %v1257
    %v1612 = vunpack.c.h.b16 %v1257
    %v1613 = vunpack.c.l.b16 %v1258
    %v1614 = vunpack.c.h.b16 %v1258
    %v1615 = vunpack.c.l.b16 %v1259
    %v1616 = vunpack.c.h.b16 %v1259
    %v1617 = vunpack.c.l.b16 %v1260
    %v1618 = vunpack.c.h.b16 %v1260
    %v1619 = vunpack.c.l.b16 %v1261
    %v1620 = vunpack.c.h.b16 %v1261
    %v1621 = vunpack.c.l.b16 %v1262
    %v1622 = vunpack.c.h.b16 %v1262
    %v1623 = vunpack.c.l.b16 %v1263
    %v1624 = vunpack.c.h.b16 %v1263
    %v1625 = vunpack.c.l.b16 %v1264
    %v1626 = vunpack.c.h.b16 %v1264
    %v1627 = vunpack.c.l.b16 %v1265
    %v1628 = vunpack.c.h.b16 %v1265
    %v1629 = vunpack.c.l.b16 %v1266
    %v1630 = vunpack.c.h.b16 %v1266
    %v1631 = vunpack.c.l.b16 %v1267
    %v1632 = vunpack.c.h.b16 %v1267
    %v1633 = vunpack.c.l.b16 %v1268
    %v1634 = vunpack.c.h.b16 %v1268
    %v1635 = vunpack.c.l.b16 %v1269
    %v1636 = vunpack.c.h.b16 %v1269
    %v1637 = vunpack.c.l.b16 %v1270
    %v1638 = vunpack.c.h.b16 %v1270
    %v1639 = vunpack.c.l.b16 %v1271
    %v1640 = vunpack.c.h.b16 %v1271
    %v1641 = vunpack.c.l.b16 %v1272
    %v1642 = vunpack.c.h.b16 %v1272
    %v1643 = vunpack.c.l.b16 %v1273
    %v1644 = vunpack.c.h.b16 %v1273
    %v1645 = vunpack.c.l.b16 %v1274
    %v1646 = vunpack.c.h.b16 %v1274
    %v1647 = vunpack.c.l.b16 %v1275
    %v1648 = vunpack.c.h.b16 %v1275
    %v1649 = vunpack.c.l.b16 %v1276
    %v1650 = vunpack.c.h.b16 %v1276
    %v1651 = vunpack.c.l.b16 %v1277
    %v1652 = vunpack.c.h.b16 %v1277
    %v1653 = vunpack.c.l.b16 %v1278
    %v1654 = vunpack.c.h.b16 %v1278
    %v1655 = vunpack.c.l.b16 %v1279
    %v1656 = vunpack.c.h.b16 %v1279
    %v1657 = vunpack.c.l.b16 %v1280
    %v1658 = vunpack.c.h.b16 %v1280
    %v1659 = vunpack.c.l.b16 %v1281
    %v1660 = vunpack.c.h.b16 %v1281
    %v1661 = vunpack.c.l.b16 %v1282
    %v1662 = vunpack.c.h.b16 %v1282
    %v1663 = vunpack.c.l.b16 %v1283
    %v1664 = vunpack.c.h.b16 %v1283
    %v1665 = vunpack.c.l.b16 %v1284
    %v1666 = vunpack.c.h.b16 %v1284
    %v1667 = vunpack.c.l.b16 %v1285
    %v1668 = vunpack.c.h.b16 %v1285
    %v1669 = vunpack.c.l.b16 %v1286
    %v1670 = vunpack.c.h.b16 %v1286
    %v1671 = vunpack.c.l.b16 %v1287
    %v1672 = vunpack.c.h.b16 %v1287
    %v1673 = vunpack.c.l.b16 %v1288
    %v1674 = vunpack.c.h.b16 %v1288
    %v1675 = vunpack.c.l.b16 %v1289
    %v1676 = vunpack.c.h.b16 %v1289
    %v1677 = vunpack.c.l.b16 %v1290
    %v1678 = vunpack.c.h.b16 %v1290
    %v1679 = vunpack.c.l.b16 %v1291
    %v1680 = vunpack.c.h.b16 %v1291
    %v1681 = vunpack.c.l.b16 %v1292
    %v1682 = vunpack.c.h.b16 %v1292
    %v1683 = vunpack.c.l.b16 %v1293
    %v1684 = vunpack.c.h.b16 %v1293
    %v1685 = vunpack.c.l.b16 %v1294
    %v1686 = vunpack.c.h.b16 %v1294
    %v1687 = vunpack.c.l.b16 %v1295
    %v1688 = vunpack.c.h.b16 %v1295
    %v1689 = vunpack.c.l.b16 %v1296
    %v1690 = vunpack.c.h.b16 %v1296
    %v1691 = vunpack.c.l.b16 %v1297
    %v1692 = vunpack.c.h.b16 %v1297
    %v1693 = vunpack.c.l.b16 %v1298
    %v1694 = vunpack.c.h.b16 %v1298
    %v1695 = vunpack.c.l.b16 %v1299
    %v1696 = vunpack.c.h.b16 %v1299
    %v1697 = vunpack.c.l.b16 %v1300
    %v1698 = vunpack.c.h.b16 %v1300
    %v1699 = vunpack.c.l.b16 %v1301
    %v1700 = vunpack.c.h.b16 %v1301
    %v1701 = vunpack.c.l.b16 %v1302
    %v1702 = vunpack.c.h.b16 %v1302
    %v1703 = vunpack.c.l.b16 %v1303
    %v1704 = vunpack.c.h.b16 %v1303
    %v1705 = vunpack.c.l.b16 %v1304
    %v1706 = vunpack.c.h.b16 %v1304
    %v1707 = vunpack.c.l.b16 %v1305
    %v1708 = vunpack.c.h.b16 %v1305
    %v1709 = vunpack.c.l.b16 %v1306
    %v1710 = vunpack.c.h.b16 %v1306
    %v1711 = vunpack.c.l.b16 %v1307
    %v1712 = vunpack.c.h.b16 %v1307
    %v1713 = vunpack.c.l.b16 %v1308
    %v1714 = vunpack.c.h.b16 %v1308
    %v1715 = vpack.c.b16 %v1463, %v1459
    %v1716 = vpack.c.b16 %v1464, %v1460
    %v1717 = vpack.c.b16 %v1465, %v1461
    %v1718 = vpack.c.b16 %v1466, %v1462
    %v1719 = vpack.c.b16 %v1471, %v1467
    %v1720 = vpack.c.b16 %v1472, %v1468
    %v1721 = vpack.c.b16 %v1473, %v1469
    %v1722 = vpack.c.b16 %v1474, %v1470
    %v1723 = vpack.c.b16 %v1479, %v1475
    %v1724 = vpack.c.b16 %v1480, %v1476
    %v1725 = vpack.c.b16 %v1481, %v1477
    %v1726 = vpack.c.b16 %v1482, %v1478
    %v1727 = vpack.c.b16 %v1487, %v1483
    %v1728 = vpack.c.b16 %v1488, %v1484
    %v1729 = vpack.c.b16 %v1489, %v1485
    %v1730 = vpack.c.b16 %v1490, %v1486
    %v1731 = vpack.c.b16 %v1495, %v1491
    %v1732 = vpack.c.b16 %v1496, %v1492
    %v1733 = vpack.c.b16 %v1497, %v1493
    %v1734 = vpack.c.b16 %v1498, %v1494
    %v1735 = vpack.c.b16 %v1503, %v1499
    %v1736 = vpack.c.b16 %v1504, %v1500
    %v1737 = vpack.c.b16 %v1505, %v1501
    %v1738 = vpack.c.b16 %v1506, %v1502
    %v1739 = vpack.c.b16 %v1511, %v1507
    %v1740 = vpack.c.b16 %v1512, %v1508
    %v1741 = vpack.c.b16 %v1513, %v1509
    %v1742 = vpack.c.b16 %v1514, %v1510
    %v1743 = vpack.c.b16 %v1519, %v1515
    %v1744 = vpack.c.b16 %v1520, %v1516
    %v1745 = vpack.c.b16 %v1521, %v1517
    %v1746 = vpack.c.b16 %v1522, %v1518
    %v1747 = vpack.c.b16 %v1527, %v1523
    %v1748 = vpack.c.b16 %v1528, %v1524
    %v1749 = vpack.c.b16 %v1529, %v1525
    %v1750 = vpack.c.b16 %v1530, %v1526
    %v1751 = vpack.c.b16 %v1535, %v1531
    %v1752 = vpack.c.b16 %v1536, %v1532
    %v1753 = vpack.c.b16 %v1537, %v1533
    %v1754 = vpack.c.b16 %v1538, %v1534
    %v1755 = vpack.c.b16 %v1543, %v1539
    %v1756 = vpack.c.b16 %v1544, %v1540
    %v1757 = vpack.c.b16 %v1545, %v1541
    %v1758 = vpack.c.b16 %v1546, %v1542
    %v1759 = vpack.c.b16 %v1551, %v1547
    %v1760 = vpack.c.b16 %v1552, %v1548
    %v1761 = vpack.c.b16 %v1553, %v1549
    %v1762 = vpack.c.b16 %v1554, %v1550
    %v1763 = vpack.c.b16 %v1559, %v1555
    %v1764 = vpack.c.b16 %v1560, %v1556
    %v1765 = vpack.c.b16 %v1561, %v1557
    %v1766 = vpack.c.b16 %v1562, %v1558
    %v1767 = vpack.c.b16 %v1567, %v1563
    %v1768 = vpack.c.b16 %v1568, %v1564
    %v1769 = vpack.c.b16 %v1569, %v1565
    %v1770 = vpack.c.b16 %v1570, %v1566
    %v1771 = vpack.c.b16 %v1575, %v1571
    %v1772 = vpack.c.b16 %v1576, %v1572
    %v1773 = vpack.c.b16 %v1577, %v1573
    %v1774 = vpack.c.b16 %v1578, %v1574
    %v1775 = vpack.c.b16 %v1583, %v1579
    %v1776 = vpack.c.b16 %v1584, %v1580
    %v1777 = vpack.c.b16 %v1585, %v1581
    %v1778 = vpack.c.b16 %v1586, %v1582
    %v1779 = vpack.c.b16 %v1591, %v1587
    %v1780 = vpack.c.b16 %v1592, %v1588
    %v1781 = vpack.c.b16 %v1593, %v1589
    %v1782 = vpack.c.b16 %v1594, %v1590
    %v1783 = vpack.c.b16 %v1599, %v1595
    %v1784 = vpack.c.b16 %v1600, %v1596
    %v1785 = vpack.c.b16 %v1601, %v1597
    %v1786 = vpack.c.b16 %v1602, %v1598
    %v1787 = vpack.c.b16 %v1607, %v1603
    %v1788 = vpack.c.b16 %v1608, %v1604
    %v1789 = vpack.c.b16 %v1609, %v1605
    %v1790 = vpack.c.b16 %v1610, %v1606
    %v1791 = vpack.c.b16 %v1615, %v1611
    %v1792 = vpack.c.b16 %v1616, %v1612
    %v1793 = vpack.c.b16 %v1617, %v1613
    %v1794 = vpack.c.b16 %v1618, %v1614
    %v1795 = vpack.c.b16 %v1623, %v1619
    %v1796 = vpack.c.b16 %v1624, %v1620
    %v1797 = vpack.c.b16 %v1625, %v1621
    %v1798 = vpack.c.b16 %v1626, %v1622
    %v1799 = vpack.c.b16 %v1631, %v1627
    %v1800 = vpack.c.b16 %v1632, %v1628
    %v1801 = vpack.c.b16 %v1633, %v1629
    %v1802 = vpack.c.b16 %v1634, %v1630
    %v1803 = vpack.c.b16 %v1639, %v1635
    %v1804 = vpack.c.b16 %v1640, %v1636
    %v1805 = vpack.c.b16 %v1641, %v1637
    %v1806 = vpack.c.b16 %v1642, %v1638
    %v1807 = vpack.c.b16 %v1647, %v1643
    %v1808 = vpack.c.b16 %v1648, %v1644
    %v1809 = vpack.c.b16 %v1649, %v1645
    %v1810 = vpack.c.b16 %v1650, %v1646
    %v1811 = vpack.c.b16 %v1655, %v1651
    %v1812 = vpack.c.b16 %v1656, %v1652
    %v1813 = vpack.c.b16 %v1657, %v1653
    %v1814 = vpack.c.b16 %v1658, %v1654
    %v1815 = vpack.c.b16 %v1663, %v1659
    %v1816 = vpack.c.b16 %v1664, %v1660
    %v1817 = vpack.c.b16 %v1665, %v1661
    %v1818 = vpack.c.b16 %v1666, %v1662
    %v1819 = vpack.c.b16 %v1671, %v1667
    %v1820 = vpack.c.b16 %v1672, %v1668
    %v1821 = vpack.c.b16 %v1673, %v1669
    %v1822 = vpack.c.b16 %v1674, %v1670
    %v1823 = vpack.c.b16 %v1679, %v1675
    %v1824 = vpack.c.b16 %v1680, %v1676
    %v1825 = vpack.c.b16 %v1681, %v1677
    %v1826 = vpack.c.b16 %v1682, %v1678
    %v1827 = vpack.c.b16 %v1687, %v1683
    %v1828 = vpack.c.b16 %v1688, %v1684
    %v1829 = vpack.c.b16 %v1689, %v1685
    %v1830 = vpack.c.b16 %v1690, %v1686
    %v1831 = vpack.c.b16 %v1695, %v1691
    %v1832 = vpack.c.b16 %v1696, %v1692
    %v1833 = vpack.c.b16 %v1697, %v1693
    %v1834 = vpack.c.b16 %v1698, %v1694
    %v1835 = vpack.c.b16 %v1703, %v1699
    %v1836 = vpack.c.b16 %v1704, %v1700
    %v1837 = vpack.c.b16 %v1705, %v1701
    %v1838 = vpack.c.b16 %v1706, %v1702
    %v1839 = vpack.c.b16 %v1711, %v1707
    %v1840 = vpack.c.b16 %v1712, %v1708
    %v1841 = vpack.c.b16 %v1713, %v1709
    %v1842 = vpack.c.b16 %v1714, %v1710
    %1971 = vmatprep.subr.bf16.mxu0 %v1716
    %1972 = vmatpush1.bf16.msra.mxu0 %v1715
    %1973 = vmatprep.subr.bf16.mxu0 %v1720
    %1974 = vmatpush1.bf16.msra.mxu0 %v1719
    %1975 = vmatprep.subr.bf16.mxu0 %v1724
    %1976 = vmatpush1.bf16.msra.mxu0 %v1723
    %1977 = vmatprep.subr.bf16.mxu0 %v1728
    %1978 = vmatpush1.bf16.msra.mxu0 %v1727
    %1979 = vmatprep.subr.bf16.mxu0 %v1732
    %1980 = vmatpush1.bf16.msra.mxu0 %v1731
    %1981 = vmatprep.subr.bf16.mxu0 %v1736
    %1982 = vmatpush1.bf16.msra.mxu0 %v1735
    %1983 = vmatprep.subr.bf16.mxu0 %v1740
    %1984 = vmatpush1.bf16.msra.mxu0 %v1739
    %1985 = vmatprep.subr.bf16.mxu0 %v1744
    %1986 = vmatpush1.bf16.msra.mxu0 %v1743
    %1987 = vmatprep.subr.bf16.mxu0 %v1748
    %1988 = vmatpush1.bf16.msra.mxu0 %v1747
    %1989 = vmatprep.subr.bf16.mxu0 %v1752
    %1990 = vmatpush1.bf16.msra.mxu0 %v1751
    %1991 = vmatprep.subr.bf16.mxu0 %v1756
    %1992 = vmatpush1.bf16.msra.mxu0 %v1755
    %1993 = vmatprep.subr.bf16.mxu0 %v1760
    %1994 = vmatpush1.bf16.msra.mxu0 %v1759
    %1995 = vmatprep.subr.bf16.mxu0 %v1764
    %1996 = vmatpush1.bf16.msra.mxu0 %v1763
    %1997 = vmatprep.subr.bf16.mxu0 %v1768
    %1998 = vmatpush1.bf16.msra.mxu0 %v1767
    %1999 = vmatprep.subr.bf16.mxu0 %v1772
    %2000 = vmatpush1.bf16.msra.mxu0 %v1771
    %2001 = vmatprep.subr.bf16.mxu0 %v1776
    %2002 = vmatpush1.bf16.msra.mxu0 %v1775
    %2003 = vmatprep.mubr.bf16.mxu0 %v88
    %2004 = vmatmul.mubr.bf16.gmra.mrb[0].mxu0 %v87
    %v2005 = vpop.f32.mrb[0].mxu0
    %v2006 = vadd.f32 %v1314, %v2005
    %v2007 = vpop.f32.mrb[0].mxu0
    %v2008 = vadd.f32 %v1318, %v2007
    %v2009 = vpop.f32.mrb[0].mxu0
    %v2010 = vpop.f32.mrb[0].mxu0
    %2011 = vdwg.mxu0
    %2012 = vmatprep.subr.bf16.mxu0 %v1780
    %2013 = vmatpush1.bf16.msra.mxu0 %v1779
    %2014 = vmatprep.subr.bf16.mxu0 %v1784
    %2015 = vmatpush1.bf16.msra.mxu0 %v1783
    %2016 = vmatprep.subr.bf16.mxu0 %v1788
    %2017 = vmatpush1.bf16.msra.mxu0 %v1787
    %2018 = vmatprep.subr.bf16.mxu0 %v1792
    %2019 = vmatpush1.bf16.msra.mxu0 %v1791
    %2020 = vmatprep.subr.bf16.mxu0 %v1796
    %2021 = vmatpush1.bf16.msra.mxu0 %v1795
    %2022 = vmatprep.subr.bf16.mxu0 %v1800
    %2023 = vmatpush1.bf16.msra.mxu0 %v1799
    %2024 = vmatprep.subr.bf16.mxu0 %v1804
    %2025 = vmatpush1.bf16.msra.mxu0 %v1803
    %2026 = vmatprep.subr.bf16.mxu0 %v1808
    %2027 = vmatpush1.bf16.msra.mxu0 %v1807
    %2028 = vmatprep.subr.bf16.mxu0 %v1812
    %2029 = vmatpush1.bf16.msra.mxu0 %v1811
    %2030 = vmatprep.subr.bf16.mxu0 %v1816
    %2031 = vmatpush1.bf16.msra.mxu0 %v1815
    %2032 = vmatprep.subr.bf16.mxu0 %v1820
    %2033 = vmatpush1.bf16.msra.mxu0 %v1819
    %2034 = vmatprep.subr.bf16.mxu0 %v1824
    %2035 = vmatpush1.bf16.msra.mxu0 %v1823
    %2036 = vmatprep.subr.bf16.mxu0 %v1828
    %2037 = vmatpush1.bf16.msra.mxu0 %v1827
    %2038 = vmatprep.subr.bf16.mxu0 %v1832
    %2039 = vmatpush1.bf16.msra.mxu0 %v1831
    %2040 = vmatprep.subr.bf16.mxu0 %v1836
    %2041 = vmatpush1.bf16.msra.mxu0 %v1835
    %2042 = vmatprep.subr.bf16.mxu0 %v1840
    %2043 = vmatpush1.bf16.msra.mxu0 %v1839
    %2044 = vmatprep.mubr.bf16.mxu0 %v90
    %2045 = vmatmul.mubr.bf16.gmra.mrb[0].mxu0 %v89
    %v2046 = vpop.f32.mrb[0].mxu0
    %v2047 = vadd.f32 %v2006, %v2046
    %v2048 = vpop.f32.mrb[0].mxu0
    %v2049 = vadd.f32 %v2008, %v2048
    %v2050 = vpop.f32.mrb[0].mxu0
    %v2051 = vpop.f32.mrb[0].mxu0
    %2052 = vdwg.mxu0
    %2053 = vmatprep.subr.bf16.mxu0 %v1718
    %2054 = vmatpush1.bf16.msra.mxu0 %v1717
    %2055 = vmatprep.subr.bf16.mxu0 %v1722
    %2056 = vmatpush1.bf16.msra.mxu0 %v1721
    %2057 = vmatprep.subr.bf16.mxu0 %v1726
    %2058 = vmatpush1.bf16.msra.mxu0 %v1725
    %2059 = vmatprep.subr.bf16.mxu0 %v1730
    %2060 = vmatpush1.bf16.msra.mxu0 %v1729
    %2061 = vmatprep.subr.bf16.mxu0 %v1734
    %2062 = vmatpush1.bf16.msra.mxu0 %v1733
    %2063 = vmatprep.subr.bf16.mxu0 %v1738
    %2064 = vmatpush1.bf16.msra.mxu0 %v1737
    %2065 = vmatprep.subr.bf16.mxu0 %v1742
    %2066 = vmatpush1.bf16.msra.mxu0 %v1741
    %2067 = vmatprep.subr.bf16.mxu0 %v1746
    %2068 = vmatpush1.bf16.msra.mxu0 %v1745
    %2069 = vmatprep.subr.bf16.mxu0 %v1750
    %2070 = vmatpush1.bf16.msra.mxu0 %v1749
    %2071 = vmatprep.subr.bf16.mxu0 %v1754
    %2072 = vmatpush1.bf16.msra.mxu0 %v1753
    %2073 = vmatprep.subr.bf16.mxu0 %v1758
    %2074 = vmatpush1.bf16.msra.mxu0 %v1757
    %2075 = vmatprep.subr.bf16.mxu0 %v1762
    %2076 = vmatpush1.bf16.msra.mxu0 %v1761
    %2077 = vmatprep.subr.bf16.mxu0 %v1766
    %2078 = vmatpush1.bf16.msra.mxu0 %v1765
    %2079 = vmatprep.subr.bf16.mxu0 %v1770
    %2080 = vmatpush1.bf16.msra.mxu0 %v1769
    %2081 = vmatprep.subr.bf16.mxu0 %v1774
    %2082 = vmatpush1.bf16.msra.mxu0 %v1773
    %2083 = vmatprep.subr.bf16.mxu0 %v1778
    %2084 = vmatpush1.bf16.msra.mxu0 %v1777
    %2085 = vmatprep.mubr.bf16.mxu0 %v88
    %2086 = vmatmul.mubr.bf16.gmra.mrb[0].mxu0 %v87
    %v2087 = vpop.f32.mrb[0].mxu0
    %v2088 = vadd.f32 %v1322, %v2087
    %v2089 = vpop.f32.mrb[0].mxu0
    %v2090 = vadd.f32 %v1326, %v2089
    %v2091 = vpop.f32.mrb[0].mxu0
    %v2092 = vpop.f32.mrb[0].mxu0
    %2093 = vdwg.mxu0
    %2094 = vmatprep.subr.bf16.mxu0 %v1782
    %2095 = vmatpush1.bf16.msra.mxu0 %v1781
    %2096 = vmatprep.subr.bf16.mxu0 %v1786
    %2097 = vmatpush1.bf16.msra.mxu0 %v1785
    %2098 = vmatprep.subr.bf16.mxu0 %v1790
    %2099 = vmatpush1.bf16.msra.mxu0 %v1789
    %2100 = vmatprep.subr.bf16.mxu0 %v1794
    %2101 = vmatpush1.bf16.msra.mxu0 %v1793
    %2102 = vmatprep.subr.bf16.mxu0 %v1798
    %2103 = vmatpush1.bf16.msra.mxu0 %v1797
    %2104 = vmatprep.subr.bf16.mxu0 %v1802
    %2105 = vmatpush1.bf16.msra.mxu0 %v1801
    %2106 = vmatprep.subr.bf16.mxu0 %v1806
    %2107 = vmatpush1.bf16.msra.mxu0 %v1805
    %2108 = vmatprep.subr.bf16.mxu0 %v1810
    %2109 = vmatpush1.bf16.msra.mxu0 %v1809
    %2110 = vmatprep.subr.bf16.mxu0 %v1814
    %2111 = vmatpush1.bf16.msra.mxu0 %v1813
    %2112 = vmatprep.subr.bf16.mxu0 %v1818
    %2113 = vmatpush1.bf16.msra.mxu0 %v1817
    %2114 = vmatprep.subr.bf16.mxu0 %v1822
    %2115 = vmatpush1.bf16.msra.mxu0 %v1821
    %2116 = vmatprep.subr.bf16.mxu0 %v1826
    %2117 = vmatpush1.bf16.msra.mxu0 %v1825
    %2118 = vmatprep.subr.bf16.mxu0 %v1830
    %2119 = vmatpush1.bf16.msra.mxu0 %v1829
    %2120 = vmatprep.subr.bf16.mxu0 %v1834
    %2121 = vmatpush1.bf16.msra.mxu0 %v1833
    %2122 = vmatprep.subr.bf16.mxu0 %v1838
    %2123 = vmatpush1.bf16.msra.mxu0 %v1837
    %2124 = vmatprep.subr.bf16.mxu0 %v1842
    %2125 = vmatpush1.bf16.msra.mxu0 %v1841
    %2126 = vmatprep.mubr.bf16.mxu0 %v90
    %2127 = vmatmul.mubr.bf16.gmra.mrb[0].mxu0 %v89
    %v2128 = vpop.f32.mrb[0].mxu0
    %v2129 = vadd.f32 %v2088, %v2128
    %v2130 = vpop.f32.mrb[0].mxu0
    %v2131 = vadd.f32 %v2090, %v2130
    %v2132 = vpop.f32.mrb[0].mxu0
    %v2133 = vpop.f32.mrb[0].mxu0
    %2134 = vdwg.mxu0
    %v2135 = vmax.f32 %v2047, 0.0
    %v2136 = vmax.f32 %v2049, 0.0
    %v2137 = vmax.f32 %v2129, 0.0
    %v2138 = vmax.f32 %v2131, 0.0
    %v2139 = vpack.c.bf16 %v2135, %v2135
    %v2140 = vpack.c.bf16 %v2136, %v2136
    %v2141 = vpack.c.bf16 %v2137, %v2137
    %v2142 = vpack.c.bf16 %v2138, %v2138
    %v2143 = vld [vmem:[#allocation8 + $0x400] sm:$0xff]
    %v2144 = vld [vmem:[#allocation8 + $0x408] sm:$0xff]
    %v2145 = vld [vmem:[#allocation8 + $0x410] sm:$0xff]
    %v2146 = vld [vmem:[#allocation8 + $0x418] sm:$0xff]
    %v2147 = vld [vmem:[#allocation8 + $0x420] sm:$0xff]
    %v2148 = vld [vmem:[#allocation8 + $0x428] sm:$0xff]
    %v2149 = vld [vmem:[#allocation8 + $0x430] sm:$0xff]
    %v2150 = vld [vmem:[#allocation8 + $0x438] sm:$0xff]
    %v2151 = vld [vmem:[#allocation8 + $0x440] sm:$0xff]
    %v2152 = vld [vmem:[#allocation8 + $0x448] sm:$0xff]
    %v2153 = vld [vmem:[#allocation8 + $0x450] sm:$0xff]
    %v2154 = vld [vmem:[#allocation8 + $0x458] sm:$0xff]
    %v2155 = vld [vmem:[#allocation8 + $0x460] sm:$0xff]
    %v2156 = vld [vmem:[#allocation8 + $0x468] sm:$0xff]
    %v2157 = vld [vmem:[#allocation8 + $0x470] sm:$0xff]
    %v2158 = vld [vmem:[#allocation8 + $0x478] sm:$0xff]
    %v2159 = vld [vmem:[#allocation8 + $0x480] sm:$0xff]
    %v2160 = vld [vmem:[#allocation8 + $0x488] sm:$0xff]
    %v2161 = vld [vmem:[#allocation8 + $0x490] sm:$0xff]
    %v2162 = vld [vmem:[#allocation8 + $0x498] sm:$0xff]
    %v2163 = vld [vmem:[#allocation8 + $0x4a0] sm:$0xff]
    %v2164 = vld [vmem:[#allocation8 + $0x4a8] sm:$0xff]
    %v2165 = vld [vmem:[#allocation8 + $0x4b0] sm:$0xff]
    %v2166 = vld [vmem:[#allocation8 + $0x4b8] sm:$0xff]
    %v2167 = vld [vmem:[#allocation8 + $0x4c0] sm:$0xff]
    %v2168 = vld [vmem:[#allocation8 + $0x4c8] sm:$0xff]
    %v2169 = vld [vmem:[#allocation8 + $0x4d0] sm:$0xff]
    %v2170 = vld [vmem:[#allocation8 + $0x4d8] sm:$0xff]
    %v2171 = vld [vmem:[#allocation8 + $0x4e0] sm:$0xff]
    %v2172 = vld [vmem:[#allocation8 + $0x4e8] sm:$0xff]
    %v2173 = vld [vmem:[#allocation8 + $0x4f0] sm:$0xff]
    %v2174 = vld [vmem:[#allocation8 + $0x4f8] sm:$0xff]
    %v2175 = vld [vmem:[#allocation8 + $0x500] sm:$0xff]
    %v2176 = vld [vmem:[#allocation8 + $0x508] sm:$0xff]
    %v2177 = vld [vmem:[#allocation8 + $0x510] sm:$0xff]
    %v2178 = vld [vmem:[#allocation8 + $0x518] sm:$0xff]
    %v2179 = vld [vmem:[#allocation8 + $0x520] sm:$0xff]
    %v2180 = vld [vmem:[#allocation8 + $0x528] sm:$0xff]
    %v2181 = vld [vmem:[#allocation8 + $0x530] sm:$0xff]
    %v2182 = vld [vmem:[#allocation8 + $0x538] sm:$0xff]
    %v2183 = vld [vmem:[#allocation8 + $0x540] sm:$0xff]
    %v2184 = vld [vmem:[#allocation8 + $0x548] sm:$0xff]
    %v2185 = vld [vmem:[#allocation8 + $0x550] sm:$0xff]
    %v2186 = vld [vmem:[#allocation8 + $0x558] sm:$0xff]
    %v2187 = vld [vmem:[#allocation8 + $0x560] sm:$0xff]
    %v2188 = vld [vmem:[#allocation8 + $0x568] sm:$0xff]
    %v2189 = vld [vmem:[#allocation8 + $0x570] sm:$0xff]
    %v2190 = vld [vmem:[#allocation8 + $0x578] sm:$0xff]
    %v2191 = vld [vmem:[#allocation8 + $0x580] sm:$0xff]
    %v2192 = vld [vmem:[#allocation8 + $0x588] sm:$0xff]
    %v2193 = vld [vmem:[#allocation8 + $0x590] sm:$0xff]
    %v2194 = vld [vmem:[#allocation8 + $0x598] sm:$0xff]
    %v2195 = vld [vmem:[#allocation8 + $0x5a0] sm:$0xff]
    %v2196 = vld [vmem:[#allocation8 + $0x5a8] sm:$0xff]
    %v2197 = vld [vmem:[#allocation8 + $0x5b0] sm:$0xff]
    %v2198 = vld [vmem:[#allocation8 + $0x5b8] sm:$0xff]
    %v2199 = vld [vmem:[#allocation8 + $0x5c0] sm:$0xff]
    %v2200 = vld [vmem:[#allocation8 + $0x5c8] sm:$0xff]
    %v2201 = vld [vmem:[#allocation8 + $0x5d0] sm:$0xff]
    %v2202 = vld [vmem:[#allocation8 + $0x5d8] sm:$0xff]
    %v2203 = vld [vmem:[#allocation8 + $0x5e0] sm:$0xff]
    %v2204 = vld [vmem:[#allocation8 + $0x5e8] sm:$0xff]
    %v2205 = vld [vmem:[#allocation8 + $0x5f0] sm:$0xff]
    %v2206 = vld [vmem:[#allocation8 + $0x5f8] sm:$0xff]
    %v2207 = vld [vmem:[#allocation8 + $0x600] sm:$0xff]
    %v2208 = vld [vmem:[#allocation8 + $0x608] sm:$0xff]
    %v2209 = vld [vmem:[#allocation8 + $0x610] sm:$0xff]
    %v2210 = vld [vmem:[#allocation8 + $0x618] sm:$0xff]
    %v2211 = vld [vmem:[#allocation8 + $0x620] sm:$0xff]
    %v2212 = vld [vmem:[#allocation8 + $0x628] sm:$0xff]
    %v2213 = vld [vmem:[#allocation8 + $0x630] sm:$0xff]
    %v2214 = vld [vmem:[#allocation8 + $0x638] sm:$0xff]
    %v2215 = vld [vmem:[#allocation8 + $0x640] sm:$0xff]
    %v2216 = vld [vmem:[#allocation8 + $0x648] sm:$0xff]
    %v2217 = vld [vmem:[#allocation8 + $0x650] sm:$0xff]
    %v2218 = vld [vmem:[#allocation8 + $0x658] sm:$0xff]
    %v2219 = vld [vmem:[#allocation8 + $0x660] sm:$0xff]
    %v2220 = vld [vmem:[#allocation8 + $0x668] sm:$0xff]
    %v2221 = vld [vmem:[#allocation8 + $0x670] sm:$0xff]
    %v2222 = vld [vmem:[#allocation8 + $0x678] sm:$0xff]
    %v2223 = vld [vmem:[#allocation8 + $0x680] sm:$0xff]
    %v2224 = vld [vmem:[#allocation8 + $0x688] sm:$0xff]
    %v2225 = vld [vmem:[#allocation8 + $0x690] sm:$0xff]
    %v2226 = vld [vmem:[#allocation8 + $0x698] sm:$0xff]
    %v2227 = vld [vmem:[#allocation8 + $0x6a0] sm:$0xff]
    %v2228 = vld [vmem:[#allocation8 + $0x6a8] sm:$0xff]
    %v2229 = vld [vmem:[#allocation8 + $0x6b0] sm:$0xff]
    %v2230 = vld [vmem:[#allocation8 + $0x6b8] sm:$0xff]
    %v2231 = vld [vmem:[#allocation8 + $0x6c0] sm:$0xff]
    %v2232 = vld [vmem:[#allocation8 + $0x6c8] sm:$0xff]
    %v2233 = vld [vmem:[#allocation8 + $0x6d0] sm:$0xff]
    %v2234 = vld [vmem:[#allocation8 + $0x6d8] sm:$0xff]
    %v2235 = vld [vmem:[#allocation8 + $0x6e0] sm:$0xff]
    %v2236 = vld [vmem:[#allocation8 + $0x6e8] sm:$0xff]
    %v2237 = vld [vmem:[#allocation8 + $0x6f0] sm:$0xff]
    %v2238 = vld [vmem:[#allocation8 + $0x6f8] sm:$0xff]
    %v2239 = vld [vmem:[#allocation8 + $0x700] sm:$0xff]
    %v2240 = vld [vmem:[#allocation8 + $0x708] sm:$0xff]
    %v2241 = vld [vmem:[#allocation8 + $0x710] sm:$0xff]
    %v2242 = vld [vmem:[#allocation8 + $0x718] sm:$0xff]
    %v2243 = vld [vmem:[#allocation8 + $0x720] sm:$0xff]
    %v2244 = vld [vmem:[#allocation8 + $0x728] sm:$0xff]
    %v2245 = vld [vmem:[#allocation8 + $0x730] sm:$0xff]
    %v2246 = vld [vmem:[#allocation8 + $0x738] sm:$0xff]
    %v2247 = vld [vmem:[#allocation8 + $0x740] sm:$0xff]
    %v2248 = vld [vmem:[#allocation8 + $0x748] sm:$0xff]
    %v2249 = vld [vmem:[#allocation8 + $0x750] sm:$0xff]
    %v2250 = vld [vmem:[#allocation8 + $0x758] sm:$0xff]
    %v2251 = vld [vmem:[#allocation8 + $0x760] sm:$0xff]
    %v2252 = vld [vmem:[#allocation8 + $0x768] sm:$0xff]
    %v2253 = vld [vmem:[#allocation8 + $0x770] sm:$0xff]
    %v2254 = vld [vmem:[#allocation8 + $0x778] sm:$0xff]
    %v2255 = vld [vmem:[#allocation8 + $0x780] sm:$0xff]
    %v2256 = vld [vmem:[#allocation8 + $0x788] sm:$0xff]
    %v2257 = vld [vmem:[#allocation8 + $0x790] sm:$0xff]
    %v2258 = vld [vmem:[#allocation8 + $0x798] sm:$0xff]
    %v2259 = vld [vmem:[#allocation8 + $0x7a0] sm:$0xff]
    %v2260 = vld [vmem:[#allocation8 + $0x7a8] sm:$0xff]
    %v2261 = vld [vmem:[#allocation8 + $0x7b0] sm:$0xff]
    %v2262 = vld [vmem:[#allocation8 + $0x7b8] sm:$0xff]
    %v2263 = vld [vmem:[#allocation8 + $0x7c0] sm:$0xff]
    %v2264 = vld [vmem:[#allocation8 + $0x7c8] sm:$0xff]
    %v2265 = vld [vmem:[#allocation8 + $0x7d0] sm:$0xff]
    %v2266 = vld [vmem:[#allocation8 + $0x7d8] sm:$0xff]
    %v2267 = vld [vmem:[#allocation8 + $0x7e0] sm:$0xff]
    %v2268 = vld [vmem:[#allocation8 + $0x7e8] sm:$0xff]
    %v2269 = vld [vmem:[#allocation8 + $0x7f0] sm:$0xff]
    %v2270 = vld [vmem:[#allocation8 + $0x7f8] sm:$0xff]
    %v2399 = vunpack.c.l.b16 %v2143
    %v2400 = vunpack.c.h.b16 %v2143
    %v2401 = vunpack.c.l.b16 %v2144
    %v2402 = vunpack.c.h.b16 %v2144
    %v2403 = vunpack.c.l.b16 %v2145
    %v2404 = vunpack.c.h.b16 %v2145
    %v2405 = vunpack.c.l.b16 %v2146
    %v2406 = vunpack.c.h.b16 %v2146
    %v2407 = vunpack.c.l.b16 %v2147
    %v2408 = vunpack.c.h.b16 %v2147
    %v2409 = vunpack.c.l.b16 %v2148
    %v2410 = vunpack.c.h.b16 %v2148
    %v2411 = vunpack.c.l.b16 %v2149
    %v2412 = vunpack.c.h.b16 %v2149
    %v2413 = vunpack.c.l.b16 %v2150
    %v2414 = vunpack.c.h.b16 %v2150
    %v2415 = vunpack.c.l.b16 %v2151
    %v2416 = vunpack.c.h.b16 %v2151
    %v2417 = vunpack.c.l.b16 %v2152
    %v2418 = vunpack.c.h.b16 %v2152
    %v2419 = vunpack.c.l.b16 %v2153
    %v2420 = vunpack.c.h.b16 %v2153
    %v2421 = vunpack.c.l.b16 %v2154
    %v2422 = vunpack.c.h.b16 %v2154
    %v2423 = vunpack.c.l.b16 %v2155
    %v2424 = vunpack.c.h.b16 %v2155
    %v2425 = vunpack.c.l.b16 %v2156
    %v2426 = vunpack.c.h.b16 %v2156
    %v2427 = vunpack.c.l.b16 %v2157
    %v2428 = vunpack.c.h.b16 %v2157
    %v2429 = vunpack.c.l.b16 %v2158
    %v2430 = vunpack.c.h.b16 %v2158
    %v2431 = vunpack.c.l.b16 %v2159
    %v2432 = vunpack.c.h.b16 %v2159
    %v2433 = vunpack.c.l.b16 %v2160
    %v2434 = vunpack.c.h.b16 %v2160
    %v2435 = vunpack.c.l.b16 %v2161
    %v2436 = vunpack.c.h.b16 %v2161
    %v2437 = vunpack.c.l.b16 %v2162
    %v2438 = vunpack.c.h.b16 %v2162
    %v2439 = vunpack.c.l.b16 %v2163
    %v2440 = vunpack.c.h.b16 %v2163
    %v2441 = vunpack.c.l.b16 %v2164
    %v2442 = vunpack.c.h.b16 %v2164
    %v2443 = vunpack.c.l.b16 %v2165
    %v2444 = vunpack.c.h.b16 %v2165
    %v2445 = vunpack.c.l.b16 %v2166
    %v2446 = vunpack.c.h.b16 %v2166
    %v2447 = vunpack.c.l.b16 %v2167
    %v2448 = vunpack.c.h.b16 %v2167
    %v2449 = vunpack.c.l.b16 %v2168
    %v2450 = vunpack.c.h.b16 %v2168
    %v2451 = vunpack.c.l.b16 %v2169
    %v2452 = vunpack.c.h.b16 %v2169
    %v2453 = vunpack.c.l.b16 %v2170
    %v2454 = vunpack.c.h.b16 %v2170
    %v2455 = vunpack.c.l.b16 %v2171
    %v2456 = vunpack.c.h.b16 %v2171
    %v2457 = vunpack.c.l.b16 %v2172
    %v2458 = vunpack.c.h.b16 %v2172
    %v2459 = vunpack.c.l.b16 %v2173
    %v2460 = vunpack.c.h.b16 %v2173
    %v2461 = vunpack.c.l.b16 %v2174
    %v2462 = vunpack.c.h.b16 %v2174
    %v2463 = vunpack.c.l.b16 %v2175
    %v2464 = vunpack.c.h.b16 %v2175
    %v2465 = vunpack.c.l.b16 %v2176
    %v2466 = vunpack.c.h.b16 %v2176
    %v2467 = vunpack.c.l.b16 %v2177
    %v2468 = vunpack.c.h.b16 %v2177
    %v2469 = vunpack.c.l.b16 %v2178
    %v2470 = vunpack.c.h.b16 %v2178
    %v2471 = vunpack.c.l.b16 %v2179
    %v2472 = vunpack.c.h.b16 %v2179
    %v2473 = vunpack.c.l.b16 %v2180
    %v2474 = vunpack.c.h.b16 %v2180
    %v2475 = vunpack.c.l.b16 %v2181
    %v2476 = vunpack.c.h.b16 %v2181
    %v2477 = vunpack.c.l.b16 %v2182
    %v2478 = vunpack.c.h.b16 %v2182
    %v2479 = vunpack.c.l.b16 %v2183
    %v2480 = vunpack.c.h.b16 %v2183
    %v2481 = vunpack.c.l.b16 %v2184
    %v2482 = vunpack.c.h.b16 %v2184
    %v2483 = vunpack.c.l.b16 %v2185
    %v2484 = vunpack.c.h.b16 %v2185
    %v2485 = vunpack.c.l.b16 %v2186
    %v2486 = vunpack.c.h.b16 %v2186
    %v2487 = vunpack.c.l.b16 %v2187
    %v2488 = vunpack.c.h.b16 %v2187
    %v2489 = vunpack.c.l.b16 %v2188
    %v2490 = vunpack.c.h.b16 %v2188
    %v2491 = vunpack.c.l.b16 %v2189
    %v2492 = vunpack.c.h.b16 %v2189
    %v2493 = vunpack.c.l.b16 %v2190
    %v2494 = vunpack.c.h.b16 %v2190
    %v2495 = vunpack.c.l.b16 %v2191
    %v2496 = vunpack.c.h.b16 %v2191
    %v2497 = vunpack.c.l.b16 %v2192
    %v2498 = vunpack.c.h.b16 %v2192
    %v2499 = vunpack.c.l.b16 %v2193
    %v2500 = vunpack.c.h.b16 %v2193
    %v2501 = vunpack.c.l.b16 %v2194
    %v2502 = vunpack.c.h.b16 %v2194
    %v2503 = vunpack.c.l.b16 %v2195
    %v2504 = vunpack.c.h.b16 %v2195
    %v2505 = vunpack.c.l.b16 %v2196
    %v2506 = vunpack.c.h.b16 %v2196
    %v2507 = vunpack.c.l.b16 %v2197
    %v2508 = vunpack.c.h.b16 %v2197
    %v2509 = vunpack.c.l.b16 %v2198
    %v2510 = vunpack.c.h.b16 %v2198
    %v2511 = vunpack.c.l.b16 %v2199
    %v2512 = vunpack.c.h.b16 %v2199
    %v2513 = vunpack.c.l.b16 %v2200
    %v2514 = vunpack.c.h.b16 %v2200
    %v2515 = vunpack.c.l.b16 %v2201
    %v2516 = vunpack.c.h.b16 %v2201
    %v2517 = vunpack.c.l.b16 %v2202
    %v2518 = vunpack.c.h.b16 %v2202
    %v2519 = vunpack.c.l.b16 %v2203
    %v2520 = vunpack.c.h.b16 %v2203
    %v2521 = vunpack.c.l.b16 %v2204
    %v2522 = vunpack.c.h.b16 %v2204
    %v2523 = vunpack.c.l.b16 %v2205
    %v2524 = vunpack.c.h.b16 %v2205
    %v2525 = vunpack.c.l.b16 %v2206
    %v2526 = vunpack.c.h.b16 %v2206
    %v2527 = vunpack.c.l.b16 %v2207
    %v2528 = vunpack.c.h.b16 %v2207
    %v2529 = vunpack.c.l.b16 %v2208
    %v2530 = vunpack.c.h.b16 %v2208
    %v2531 = vunpack.c.l.b16 %v2209
    %v2532 = vunpack.c.h.b16 %v2209
    %v2533 = vunpack.c.l.b16 %v2210
    %v2534 = vunpack.c.h.b16 %v2210
    %v2535 = vunpack.c.l.b16 %v2211
    %v2536 = vunpack.c.h.b16 %v2211
    %v2537 = vunpack.c.l.b16 %v2212
    %v2538 = vunpack.c.h.b16 %v2212
    %v2539 = vunpack.c.l.b16 %v2213
    %v2540 = vunpack.c.h.b16 %v2213
    %v2541 = vunpack.c.l.b16 %v2214
    %v2542 = vunpack.c.h.b16 %v2214
    %v2543 = vunpack.c.l.b16 %v2215
    %v2544 = vunpack.c.h.b16 %v2215
    %v2545 = vunpack.c.l.b16 %v2216
    %v2546 = vunpack.c.h.b16 %v2216
    %v2547 = vunpack.c.l.b16 %v2217
    %v2548 = vunpack.c.h.b16 %v2217
    %v2549 = vunpack.c.l.b16 %v2218
    %v2550 = vunpack.c.h.b16 %v2218
    %v2551 = vunpack.c.l.b16 %v2219
    %v2552 = vunpack.c.h.b16 %v2219
    %v2553 = vunpack.c.l.b16 %v2220
    %v2554 = vunpack.c.h.b16 %v2220
    %v2555 = vunpack.c.l.b16 %v2221
    %v2556 = vunpack.c.h.b16 %v2221
    %v2557 = vunpack.c.l.b16 %v2222
    %v2558 = vunpack.c.h.b16 %v2222
    %v2559 = vunpack.c.l.b16 %v2223
    %v2560 = vunpack.c.h.b16 %v2223
    %v2561 = vunpack.c.l.b16 %v2224
    %v2562 = vunpack.c.h.b16 %v2224
    %v2563 = vunpack.c.l.b16 %v2225
    %v2564 = vunpack.c.h.b16 %v2225
    %v2565 = vunpack.c.l.b16 %v2226
    %v2566 = vunpack.c.h.b16 %v2226
    %v2567 = vunpack.c.l.b16 %v2227
    %v2568 = vunpack.c.h.b16 %v2227
    %v2569 = vunpack.c.l.b16 %v2228
    %v2570 = vunpack.c.h.b16 %v2228
    %v2571 = vunpack.c.l.b16 %v2229
    %v2572 = vunpack.c.h.b16 %v2229
    %v2573 = vunpack.c.l.b16 %v2230
    %v2574 = vunpack.c.h.b16 %v2230
    %v2575 = vunpack.c.l.b16 %v2231
    %v2576 = vunpack.c.h.b16 %v2231
    %v2577 = vunpack.c.l.b16 %v2232
    %v2578 = vunpack.c.h.b16 %v2232
    %v2579 = vunpack.c.l.b16 %v2233
    %v2580 = vunpack.c.h.b16 %v2233
    %v2581 = vunpack.c.l.b16 %v2234
    %v2582 = vunpack.c.h.b16 %v2234
    %v2583 = vunpack.c.l.b16 %v2235
    %v2584 = vunpack.c.h.b16 %v2235
    %v2585 = vunpack.c.l.b16 %v2236
    %v2586 = vunpack.c.h.b16 %v2236
    %v2587 = vunpack.c.l.b16 %v2237
    %v2588 = vunpack.c.h.b16 %v2237
    %v2589 = vunpack.c.l.b16 %v2238
    %v2590 = vunpack.c.h.b16 %v2238
    %v2591 = vunpack.c.l.b16 %v2239
    %v2592 = vunpack.c.h.b16 %v2239
    %v2593 = vunpack.c.l.b16 %v2240
    %v2594 = vunpack.c.h.b16 %v2240
    %v2595 = vunpack.c.l.b16 %v2241
    %v2596 = vunpack.c.h.b16 %v2241
    %v2597 = vunpack.c.l.b16 %v2242
    %v2598 = vunpack.c.h.b16 %v2242
    %v2599 = vunpack.c.l.b16 %v2243
    %v2600 = vunpack.c.h.b16 %v2243
    %v2601 = vunpack.c.l.b16 %v2244
    %v2602 = vunpack.c.h.b16 %v2244
    %v2603 = vunpack.c.l.b16 %v2245
    %v2604 = vunpack.c.h.b16 %v2245
    %v2605 = vunpack.c.l.b16 %v2246
    %v2606 = vunpack.c.h.b16 %v2246
    %v2607 = vunpack.c.l.b16 %v2247
    %v2608 = vunpack.c.h.b16 %v2247
    %v2609 = vunpack.c.l.b16 %v2248
    %v2610 = vunpack.c.h.b16 %v2248
    %v2611 = vunpack.c.l.b16 %v2249
    %v2612 = vunpack.c.h.b16 %v2249
    %v2613 = vunpack.c.l.b16 %v2250
    %v2614 = vunpack.c.h.b16 %v2250
    %v2615 = vunpack.c.l.b16 %v2251
    %v2616 = vunpack.c.h.b16 %v2251
    %v2617 = vunpack.c.l.b16 %v2252
    %v2618 = vunpack.c.h.b16 %v2252
    %v2619 = vunpack.c.l.b16 %v2253
    %v2620 = vunpack.c.h.b16 %v2253
    %v2621 = vunpack.c.l.b16 %v2254
    %v2622 = vunpack.c.h.b16 %v2254
    %v2623 = vunpack.c.l.b16 %v2255
    %v2624 = vunpack.c.h.b16 %v2255
    %v2625 = vunpack.c.l.b16 %v2256
    %v2626 = vunpack.c.h.b16 %v2256
    %v2627 = vunpack.c.l.b16 %v2257
    %v2628 = vunpack.c.h.b16 %v2257
    %v2629 = vunpack.c.l.b16 %v2258
    %v2630 = vunpack.c.h.b16 %v2258
    %v2631 = vunpack.c.l.b16 %v2259
    %v2632 = vunpack.c.h.b16 %v2259
    %v2633 = vunpack.c.l.b16 %v2260
    %v2634 = vunpack.c.h.b16 %v2260
    %v2635 = vunpack.c.l.b16 %v2261
    %v2636 = vunpack.c.h.b16 %v2261
    %v2637 = vunpack.c.l.b16 %v2262
    %v2638 = vunpack.c.h.b16 %v2262
    %v2639 = vunpack.c.l.b16 %v2263
    %v2640 = vunpack.c.h.b16 %v2263
    %v2641 = vunpack.c.l.b16 %v2264
    %v2642 = vunpack.c.h.b16 %v2264
    %v2643 = vunpack.c.l.b16 %v2265
    %v2644 = vunpack.c.h.b16 %v2265
    %v2645 = vunpack.c.l.b16 %v2266
    %v2646 = vunpack.c.h.b16 %v2266
    %v2647 = vunpack.c.l.b16 %v2267
    %v2648 = vunpack.c.h.b16 %v2267
    %v2649 = vunpack.c.l.b16 %v2268
    %v2650 = vunpack.c.h.b16 %v2268
    %v2651 = vunpack.c.l.b16 %v2269
    %v2652 = vunpack.c.h.b16 %v2269
    %v2653 = vunpack.c.l.b16 %v2270
    %v2654 = vunpack.c.h.b16 %v2270
    %v2655 = vpack.c.b16 %v2403, %v2399
    %v2656 = vpack.c.b16 %v2404, %v2400
    %v2657 = vpack.c.b16 %v2405, %v2401
    %v2658 = vpack.c.b16 %v2406, %v2402
    %v2659 = vpack.c.b16 %v2411, %v2407
    %v2660 = vpack.c.b16 %v2412, %v2408
    %v2661 = vpack.c.b16 %v2413, %v2409
    %v2662 = vpack.c.b16 %v2414, %v2410
    %v2663 = vpack.c.b16 %v2419, %v2415
    %v2664 = vpack.c.b16 %v2420, %v2416
    %v2665 = vpack.c.b16 %v2421, %v2417
    %v2666 = vpack.c.b16 %v2422, %v2418
    %v2667 = vpack.c.b16 %v2427, %v2423
    %v2668 = vpack.c.b16 %v2428, %v2424
    %v2669 = vpack.c.b16 %v2429, %v2425
    %v2670 = vpack.c.b16 %v2430, %v2426
    %v2671 = vpack.c.b16 %v2435, %v2431
    %v2672 = vpack.c.b16 %v2436, %v2432
    %v2673 = vpack.c.b16 %v2437, %v2433
    %v2674 = vpack.c.b16 %v2438, %v2434
    %v2675 = vpack.c.b16 %v2443, %v2439
    %v2676 = vpack.c.b16 %v2444, %v2440
    %v2677 = vpack.c.b16 %v2445, %v2441
    %v2678 = vpack.c.b16 %v2446, %v2442
    %v2679 = vpack.c.b16 %v2451, %v2447
    %v2680 = vpack.c.b16 %v2452, %v2448
    %v2681 = vpack.c.b16 %v2453, %v2449
    %v2682 = vpack.c.b16 %v2454, %v2450
    %v2683 = vpack.c.b16 %v2459, %v2455
    %v2684 = vpack.c.b16 %v2460, %v2456
    %v2685 = vpack.c.b16 %v2461, %v2457
    %v2686 = vpack.c.b16 %v2462, %v2458
    %v2687 = vpack.c.b16 %v2467, %v2463
    %v2688 = vpack.c.b16 %v2468, %v2464
    %v2689 = vpack.c.b16 %v2469, %v2465
    %v2690 = vpack.c.b16 %v2470, %v2466
    %v2691 = vpack.c.b16 %v2475, %v2471
    %v2692 = vpack.c.b16 %v2476, %v2472
    %v2693 = vpack.c.b16 %v2477, %v2473
    %v2694 = vpack.c.b16 %v2478, %v2474
    %v2695 = vpack.c.b16 %v2483, %v2479
    %v2696 = vpack.c.b16 %v2484, %v2480
    %v2697 = vpack.c.b16 %v2485, %v2481
    %v2698 = vpack.c.b16 %v2486, %v2482
    %v2699 = vpack.c.b16 %v2491, %v2487
    %v2700 = vpack.c.b16 %v2492, %v2488
    %v2701 = vpack.c.b16 %v2493, %v2489
    %v2702 = vpack.c.b16 %v2494, %v2490
    %v2703 = vpack.c.b16 %v2499, %v2495
    %v2704 = vpack.c.b16 %v2500, %v2496
    %v2705 = vpack.c.b16 %v2501, %v2497
    %v2706 = vpack.c.b16 %v2502, %v2498
    %v2707 = vpack.c.b16 %v2507, %v2503
    %v2708 = vpack.c.b16 %v2508, %v2504
    %v2709 = vpack.c.b16 %v2509, %v2505
    %v2710 = vpack.c.b16 %v2510, %v2506
    %v2711 = vpack.c.b16 %v2515, %v2511
    %v2712 = vpack.c.b16 %v2516, %v2512
    %v2713 = vpack.c.b16 %v2517, %v2513
    %v2714 = vpack.c.b16 %v2518, %v2514
    %v2715 = vpack.c.b16 %v2523, %v2519
    %v2716 = vpack.c.b16 %v2524, %v2520
    %v2717 = vpack.c.b16 %v2525, %v2521
    %v2718 = vpack.c.b16 %v2526, %v2522
    %v2719 = vpack.c.b16 %v2531, %v2527
    %v2720 = vpack.c.b16 %v2532, %v2528
    %v2721 = vpack.c.b16 %v2533, %v2529
    %v2722 = vpack.c.b16 %v2534, %v2530
    %v2723 = vpack.c.b16 %v2539, %v2535
    %v2724 = vpack.c.b16 %v2540, %v2536
    %v2725 = vpack.c.b16 %v2541, %v2537
    %v2726 = vpack.c.b16 %v2542, %v2538
    %v2727 = vpack.c.b16 %v2547, %v2543
    %v2728 = vpack.c.b16 %v2548, %v2544
    %v2729 = vpack.c.b16 %v2549, %v2545
    %v2730 = vpack.c.b16 %v2550, %v2546
    %v2731 = vpack.c.b16 %v2555, %v2551
    %v2732 = vpack.c.b16 %v2556, %v2552
    %v2733 = vpack.c.b16 %v2557, %v2553
    %v2734 = vpack.c.b16 %v2558, %v2554
    %v2735 = vpack.c.b16 %v2563, %v2559
    %v2736 = vpack.c.b16 %v2564, %v2560
    %v2737 = vpack.c.b16 %v2565, %v2561
    %v2738 = vpack.c.b16 %v2566, %v2562
    %v2739 = vpack.c.b16 %v2571, %v2567
    %v2740 = vpack.c.b16 %v2572, %v2568
    %v2741 = vpack.c.b16 %v2573, %v2569
    %v2742 = vpack.c.b16 %v2574, %v2570
    %v2743 = vpack.c.b16 %v2579, %v2575
    %v2744 = vpack.c.b16 %v2580, %v2576
    %v2745 = vpack.c.b16 %v2581, %v2577
    %v2746 = vpack.c.b16 %v2582, %v2578
    %v2747 = vpack.c.b16 %v2587, %v2583
    %v2748 = vpack.c.b16 %v2588, %v2584
    %v2749 = vpack.c.b16 %v2589, %v2585
    %v2750 = vpack.c.b16 %v2590, %v2586
    %v2751 = vpack.c.b16 %v2595, %v2591
    %v2752 = vpack.c.b16 %v2596, %v2592
    %v2753 = vpack.c.b16 %v2597, %v2593
    %v2754 = vpack.c.b16 %v2598, %v2594
    %v2755 = vpack.c.b16 %v2603, %v2599
    %v2756 = vpack.c.b16 %v2604, %v2600
    %v2757 = vpack.c.b16 %v2605, %v2601
    %v2758 = vpack.c.b16 %v2606, %v2602
    %v2759 = vpack.c.b16 %v2611, %v2607
    %v2760 = vpack.c.b16 %v2612, %v2608
    %v2761 = vpack.c.b16 %v2613, %v2609
    %v2762 = vpack.c.b16 %v2614, %v2610
    %v2763 = vpack.c.b16 %v2619, %v2615
    %v2764 = vpack.c.b16 %v2620, %v2616
    %v2765 = vpack.c.b16 %v2621, %v2617
    %v2766 = vpack.c.b16 %v2622, %v2618
    %v2767 = vpack.c.b16 %v2627, %v2623
    %v2768 = vpack.c.b16 %v2628, %v2624
    %v2769 = vpack.c.b16 %v2629, %v2625
    %v2770 = vpack.c.b16 %v2630, %v2626
    %v2771 = vpack.c.b16 %v2635, %v2631
    %v2772 = vpack.c.b16 %v2636, %v2632
    %v2773 = vpack.c.b16 %v2637, %v2633
    %v2774 = vpack.c.b16 %v2638, %v2634
    %v2775 = vpack.c.b16 %v2643, %v2639
    %v2776 = vpack.c.b16 %v2644, %v2640
    %v2777 = vpack.c.b16 %v2645, %v2641
    %v2778 = vpack.c.b16 %v2646, %v2642
    %v2779 = vpack.c.b16 %v2651, %v2647
    %v2780 = vpack.c.b16 %v2652, %v2648
    %v2781 = vpack.c.b16 %v2653, %v2649
    %v2782 = vpack.c.b16 %v2654, %v2650
    %2911 = vmatprep.subr.bf16.mxu0 %v2656
    %2912 = vmatpush1.bf16.msra.mxu0 %v2655
    %2913 = vmatprep.subr.bf16.mxu0 %v2660
    %2914 = vmatpush1.bf16.msra.mxu0 %v2659
    %2915 = vmatprep.subr.bf16.mxu0 %v2664
    %2916 = vmatpush1.bf16.msra.mxu0 %v2663
    %2917 = vmatprep.subr.bf16.mxu0 %v2668
    %2918 = vmatpush1.bf16.msra.mxu0 %v2667
    %2919 = vmatprep.subr.bf16.mxu0 %v2672
    %2920 = vmatpush1.bf16.msra.mxu0 %v2671
    %2921 = vmatprep.subr.bf16.mxu0 %v2676
    %2922 = vmatpush1.bf16.msra.mxu0 %v2675
    %2923 = vmatprep.subr.bf16.mxu0 %v2680
    %2924 = vmatpush1.bf16.msra.mxu0 %v2679
    %2925 = vmatprep.subr.bf16.mxu0 %v2684
    %2926 = vmatpush1.bf16.msra.mxu0 %v2683
    %2927 = vmatprep.subr.bf16.mxu0 %v2688
    %2928 = vmatpush1.bf16.msra.mxu0 %v2687
    %2929 = vmatprep.subr.bf16.mxu0 %v2692
    %2930 = vmatpush1.bf16.msra.mxu0 %v2691
    %2931 = vmatprep.subr.bf16.mxu0 %v2696
    %2932 = vmatpush1.bf16.msra.mxu0 %v2695
    %2933 = vmatprep.subr.bf16.mxu0 %v2700
    %2934 = vmatpush1.bf16.msra.mxu0 %v2699
    %2935 = vmatprep.subr.bf16.mxu0 %v2704
    %2936 = vmatpush1.bf16.msra.mxu0 %v2703
    %2937 = vmatprep.subr.bf16.mxu0 %v2708
    %2938 = vmatpush1.bf16.msra.mxu0 %v2707
    %2939 = vmatprep.subr.bf16.mxu0 %v2712
    %2940 = vmatpush1.bf16.msra.mxu0 %v2711
    %2941 = vmatprep.subr.bf16.mxu0 %v2716
    %2942 = vmatpush1.bf16.msra.mxu0 %v2715
    %2943 = vmatprep.mubr.bf16.mxu0 %v2140
    %2944 = vmatmul.mubr.bf16.gmra.mrb[0].mxu0 %v2139
    %v2945 = vpop.f32.mrb[0].mxu0
    %v2946 = vadd.f32 0.0, %v2945
    %v2947 = vpop.f32.mrb[0].mxu0
    %v2948 = vadd.f32 0.0, %v2947
    %v2949 = vpop.f32.mrb[0].mxu0
    %v2950 = vpop.f32.mrb[0].mxu0
    %2951 = vdwg.mxu0
    %2952 = vmatprep.subr.bf16.mxu0 %v2720
    %2953 = vmatpush1.bf16.msra.mxu0 %v2719
    %2954 = vmatprep.subr.bf16.mxu0 %v2724
    %2955 = vmatpush1.bf16.msra.mxu0 %v2723
    %2956 = vmatprep.subr.bf16.mxu0 %v2728
    %2957 = vmatpush1.bf16.msra.mxu0 %v2727
    %2958 = vmatprep.subr.bf16.mxu0 %v2732
    %2959 = vmatpush1.bf16.msra.mxu0 %v2731
    %2960 = vmatprep.subr.bf16.mxu0 %v2736
    %2961 = vmatpush1.bf16.msra.mxu0 %v2735
    %2962 = vmatprep.subr.bf16.mxu0 %v2740
    %2963 = vmatpush1.bf16.msra.mxu0 %v2739
    %2964 = vmatprep.subr.bf16.mxu0 %v2744
    %2965 = vmatpush1.bf16.msra.mxu0 %v2743
    %2966 = vmatprep.subr.bf16.mxu0 %v2748
    %2967 = vmatpush1.bf16.msra.mxu0 %v2747
    %2968 = vmatprep.subr.bf16.mxu0 %v2752
    %2969 = vmatpush1.bf16.msra.mxu0 %v2751
    %2970 = vmatprep.subr.bf16.mxu0 %v2756
    %2971 = vmatpush1.bf16.msra.mxu0 %v2755
    %2972 = vmatprep.subr.bf16.mxu0 %v2760
    %2973 = vmatpush1.bf16.msra.mxu0 %v2759
    %2974 = vmatprep.subr.bf16.mxu0 %v2764
    %2975 = vmatpush1.bf16.msra.mxu0 %v2763
    %2976 = vmatprep.subr.bf16.mxu0 %v2768
    %2977 = vmatpush1.bf16.msra.mxu0 %v2767
    %2978 = vmatprep.subr.bf16.mxu0 %v2772
    %2979 = vmatpush1.bf16.msra.mxu0 %v2771
    %2980 = vmatprep.subr.bf16.mxu0 %v2776
    %2981 = vmatpush1.bf16.msra.mxu0 %v2775
    %2982 = vmatprep.subr.bf16.mxu0 %v2780
    %2983 = vmatpush1.bf16.msra.mxu0 %v2779
    %2984 = vmatprep.mubr.bf16.mxu0 %v2142
    %2985 = vmatmul.mubr.bf16.gmra.mrb[0].mxu0 %v2141
    %v2986 = vpop.f32.mrb[0].mxu0
    %v2987 = vadd.f32 %v2946, %v2986
    %v2988 = vpop.f32.mrb[0].mxu0
    %v2989 = vadd.f32 %v2948, %v2988
    %v2990 = vpop.f32.mrb[0].mxu0
    %v2991 = vpop.f32.mrb[0].mxu0
    %2992 = vdwg.mxu0
    %2993 = vmatprep.subr.bf16.mxu0 %v2658
    %2994 = vmatpush1.bf16.msra.mxu0 %v2657
    %2995 = vmatprep.subr.bf16.mxu0 %v2662
    %2996 = vmatpush1.bf16.msra.mxu0 %v2661
    %2997 = vmatprep.subr.bf16.mxu0 %v2666
    %2998 = vmatpush1.bf16.msra.mxu0 %v2665
    %2999 = vmatprep.subr.bf16.mxu0 %v2670
    %3000 = vmatpush1.bf16.msra.mxu0 %v2669
    %3001 = vmatprep.subr.bf16.mxu0 %v2674
    %3002 = vmatpush1.bf16.msra.mxu0 %v2673
    %3003 = vmatprep.subr.bf16.mxu0 %v2678
    %3004 = vmatpush1.bf16.msra.mxu0 %v2677
    %3005 = vmatprep.subr.bf16.mxu0 %v2682
    %3006 = vmatpush1.bf16.msra.mxu0 %v2681
    %3007 = vmatprep.subr.bf16.mxu0 %v2686
    %3008 = vmatpush1.bf16.msra.mxu0 %v2685
    %3009 = vmatprep.subr.bf16.mxu0 %v2690
    %3010 = vmatpush1.bf16.msra.mxu0 %v2689
    %3011 = vmatprep.subr.bf16.mxu0 %v2694
    %3012 = vmatpush1.bf16.msra.mxu0 %v2693
    %3013 = vmatprep.subr.bf16.mxu0 %v2698
    %3014 = vmatpush1.bf16.msra.mxu0 %v2697
    %3015 = vmatprep.subr.bf16.mxu0 %v2702
    %3016 = vmatpush1.bf16.msra.mxu0 %v2701
    %3017 = vmatprep.subr.bf16.mxu0 %v2706
    %3018 = vmatpush1.bf16.msra.mxu0 %v2705
    %3019 = vmatprep.subr.bf16.mxu0 %v2710
    %3020 = vmatpush1.bf16.msra.mxu0 %v2709
    %3021 = vmatprep.subr.bf16.mxu0 %v2714
    %3022 = vmatpush1.bf16.msra.mxu0 %v2713
    %3023 = vmatprep.subr.bf16.mxu0 %v2718
    %3024 = vmatpush1.bf16.msra.mxu0 %v2717
    %3025 = vmatprep.mubr.bf16.mxu0 %v2140
    %3026 = vmatmul.mubr.bf16.gmra.mrb[0].mxu0 %v2139
    %v3027 = vpop.f32.mrb[0].mxu0
    %v3028 = vadd.f32 0.0, %v3027
    %v3029 = vpop.f32.mrb[0].mxu0
    %v3030 = vadd.f32 0.0, %v3029
    %v3031 = vpop.f32.mrb[0].mxu0
    %v3032 = vpop.f32.mrb[0].mxu0
    %3033 = vdwg.mxu0
    %3034 = vmatprep.subr.bf16.mxu0 %v2722
    %3035 = vmatpush1.bf16.msra.mxu0 %v2721
    %3036 = vmatprep.subr.bf16.mxu0 %v2726
    %3037 = vmatpush1.bf16.msra.mxu0 %v2725
    %3038 = vmatprep.subr.bf16.mxu0 %v2730
    %3039 = vmatpush1.bf16.msra.mxu0 %v2729
    %3040 = vmatprep.subr.bf16.mxu0 %v2734
    %3041 = vmatpush1.bf16.msra.mxu0 %v2733
    %3042 = vmatprep.subr.bf16.mxu0 %v2738
    %3043 = vmatpush1.bf16.msra.mxu0 %v2737
    %3044 = vmatprep.subr.bf16.mxu0 %v2742
    %3045 = vmatpush1.bf16.msra.mxu0 %v2741
    %3046 = vmatprep.subr.bf16.mxu0 %v2746
    %3047 = vmatpush1.bf16.msra.mxu0 %v2745
    %3048 = vmatprep.subr.bf16.mxu0 %v2750
    %3049 = vmatpush1.bf16.msra.mxu0 %v2749
    %3050 = vmatprep.subr.bf16.mxu0 %v2754
    %3051 = vmatpush1.bf16.msra.mxu0 %v2753
    %3052 = vmatprep.subr.bf16.mxu0 %v2758
    %3053 = vmatpush1.bf16.msra.mxu0 %v2757
    %3054 = vmatprep.subr.bf16.mxu0 %v2762
    %3055 = vmatpush1.bf16.msra.mxu0 %v2761
    %3056 = vmatprep.subr.bf16.mxu0 %v2766
    %3057 = vmatpush1.bf16.msra.mxu0 %v2765
    %3058 = vmatprep.subr.bf16.mxu0 %v2770
    %3059 = vmatpush1.bf16.msra.mxu0 %v2769
    %3060 = vmatprep.subr.bf16.mxu0 %v2774
    %3061 = vmatpush1.bf16.msra.mxu0 %v2773
    %3062 = vmatprep.subr.bf16.mxu0 %v2778
    %3063 = vmatpush1.bf16.msra.mxu0 %v2777
    %3064 = vmatprep.subr.bf16.mxu0 %v2782
    %3065 = vmatpush1.bf16.msra.mxu0 %v2781
    %3066 = vmatprep.mubr.bf16.mxu0 %v2142
    %3067 = vmatmul.mubr.bf16.gmra.mrb[0].mxu0 %v2141
    %v3068 = vpop.f32.mrb[0].mxu0
    %v3069 = vadd.f32 %v3028, %v3068
    %v3070 = vpop.f32.mrb[0].mxu0
    %v3071 = vadd.f32 %v3030, %v3070
    %v3072 = vpop.f32.mrb[0].mxu0
    %v3073 = vpop.f32.mrb[0].mxu0
    %3074 = vdwg.mxu0
    %v3203 = vunpack.c.l.b16 %v1053
    %v3204 = vunpack.c.h.b16 %v1053
    %v3205 = vunpack.c.l.b16 %v1054
    %v3206 = vunpack.c.h.b16 %v1054
    %v3207 = vunpack.c.l.b16 %v1055
    %v3208 = vunpack.c.h.b16 %v1055
    %v3209 = vunpack.c.l.b16 %v1056
    %v3210 = vunpack.c.h.b16 %v1056
    %v3211 = vunpack.c.l.b16 %v1057
    %v3212 = vunpack.c.h.b16 %v1057
    %v3213 = vunpack.c.l.b16 %v1058
    %v3214 = vunpack.c.h.b16 %v1058
    %v3215 = vunpack.c.l.b16 %v1059
    %v3216 = vunpack.c.h.b16 %v1059
    %v3217 = vunpack.c.l.b16 %v1060
    %v3218 = vunpack.c.h.b16 %v1060
    %v3219 = vunpack.c.l.b16 %v1061
    %v3220 = vunpack.c.h.b16 %v1061
    %v3221 = vunpack.c.l.b16 %v1062
    %v3222 = vunpack.c.h.b16 %v1062
    %v3223 = vunpack.c.l.b16 %v1063
    %v3224 = vunpack.c.h.b16 %v1063
    %v3225 = vunpack.c.l.b16 %v1064
    %v3226 = vunpack.c.h.b16 %v1064
    %v3227 = vunpack.c.l.b16 %v1065
    %v3228 = vunpack.c.h.b16 %v1065
    %v3229 = vunpack.c.l.b16 %v1066
    %v3230 = vunpack.c.h.b16 %v1066
    %v3231 = vunpack.c.l.b16 %v1067
    %v3232 = vunpack.c.h.b16 %v1067
    %v3233 = vunpack.c.l.b16 %v1068
    %v3234 = vunpack.c.h.b16 %v1068
    %v3235 = vunpack.c.l.b16 %v1069
    %v3236 = vunpack.c.h.b16 %v1069
    %v3237 = vunpack.c.l.b16 %v1070
    %v3238 = vunpack.c.h.b16 %v1070
    %v3239 = vunpack.c.l.b16 %v1071
    %v3240 = vunpack.c.h.b16 %v1071
    %v3241 = vunpack.c.l.b16 %v1072
    %v3242 = vunpack.c.h.b16 %v1072
    %v3243 = vunpack.c.l.b16 %v1073
    %v3244 = vunpack.c.h.b16 %v1073
    %v3245 = vunpack.c.l.b16 %v1074
    %v3246 = vunpack.c.h.b16 %v1074
    %v3247 = vunpack.c.l.b16 %v1075
    %v3248 = vunpack.c.h.b16 %v1075
    %v3249 = vunpack.c.l.b16 %v1076
    %v3250 = vunpack.c.h.b16 %v1076
    %v3251 = vunpack.c.l.b16 %v1077
    %v3252 = vunpack.c.h.b16 %v1077
    %v3253 = vunpack.c.l.b16 %v1078
    %v3254 = vunpack.c.h.b16 %v1078
    %v3255 = vunpack.c.l.b16 %v1079
    %v3256 = vunpack.c.h.b16 %v1079
    %v3257 = vunpack.c.l.b16 %v1080
    %v3258 = vunpack.c.h.b16 %v1080
    %v3259 = vunpack.c.l.b16 %v1081
    %v3260 = vunpack.c.h.b16 %v1081
    %v3261 = vunpack.c.l.b16 %v1082
    %v3262 = vunpack.c.h.b16 %v1082
    %v3263 = vunpack.c.l.b16 %v1083
    %v3264 = vunpack.c.h.b16 %v1083
    %v3265 = vunpack.c.l.b16 %v1084
    %v3266 = vunpack.c.h.b16 %v1084
    %v3267 = vunpack.c.l.b16 %v1085
    %v3268 = vunpack.c.h.b16 %v1085
    %v3269 = vunpack.c.l.b16 %v1086
    %v3270 = vunpack.c.h.b16 %v1086
    %v3271 = vunpack.c.l.b16 %v1087
    %v3272 = vunpack.c.h.b16 %v1087
    %v3273 = vunpack.c.l.b16 %v1088
    %v3274 = vunpack.c.h.b16 %v1088
    %v3275 = vunpack.c.l.b16 %v1089
    %v3276 = vunpack.c.h.b16 %v1089
    %v3277 = vunpack.c.l.b16 %v1090
    %v3278 = vunpack.c.h.b16 %v1090
    %v3279 = vunpack.c.l.b16 %v1091
    %v3280 = vunpack.c.h.b16 %v1091
    %v3281 = vunpack.c.l.b16 %v1092
    %v3282 = vunpack.c.h.b16 %v1092
    %v3283 = vunpack.c.l.b16 %v1093
    %v3284 = vunpack.c.h.b16 %v1093
    %v3285 = vunpack.c.l.b16 %v1094
    %v3286 = vunpack.c.h.b16 %v1094
    %v3287 = vunpack.c.l.b16 %v1095
    %v3288 = vunpack.c.h.b16 %v1095
    %v3289 = vunpack.c.l.b16 %v1096
    %v3290 = vunpack.c.h.b16 %v1096
    %v3291 = vunpack.c.l.b16 %v1097
    %v3292 = vunpack.c.h.b16 %v1097
    %v3293 = vunpack.c.l.b16 %v1098
    %v3294 = vunpack.c.h.b16 %v1098
    %v3295 = vunpack.c.l.b16 %v1099
    %v3296 = vunpack.c.h.b16 %v1099
    %v3297 = vunpack.c.l.b16 %v1100
    %v3298 = vunpack.c.h.b16 %v1100
    %v3299 = vunpack.c.l.b16 %v1101
    %v3300 = vunpack.c.h.b16 %v1101
    %v3301 = vunpack.c.l.b16 %v1102
    %v3302 = vunpack.c.h.b16 %v1102
    %v3303 = vunpack.c.l.b16 %v1103
    %v3304 = vunpack.c.h.b16 %v1103
    %v3305 = vunpack.c.l.b16 %v1104
    %v3306 = vunpack.c.h.b16 %v1104
    %v3307 = vunpack.c.l.b16 %v1105
    %v3308 = vunpack.c.h.b16 %v1105
    %v3309 = vunpack.c.l.b16 %v1106
    %v3310 = vunpack.c.h.b16 %v1106
    %v3311 = vunpack.c.l.b16 %v1107
    %v3312 = vunpack.c.h.b16 %v1107
    %v3313 = vunpack.c.l.b16 %v1108
    %v3314 = vunpack.c.h.b16 %v1108
    %v3315 = vunpack.c.l.b16 %v1109
    %v3316 = vunpack.c.h.b16 %v1109
    %v3317 = vunpack.c.l.b16 %v1110
    %v3318 = vunpack.c.h.b16 %v1110
    %v3319 = vunpack.c.l.b16 %v1111
    %v3320 = vunpack.c.h.b16 %v1111
    %v3321 = vunpack.c.l.b16 %v1112
    %v3322 = vunpack.c.h.b16 %v1112
    %v3323 = vunpack.c.l.b16 %v1113
    %v3324 = vunpack.c.h.b16 %v1113
    %v3325 = vunpack.c.l.b16 %v1114
    %v3326 = vunpack.c.h.b16 %v1114
    %v3327 = vunpack.c.l.b16 %v1115
    %v3328 = vunpack.c.h.b16 %v1115
    %v3329 = vunpack.c.l.b16 %v1116
    %v3330 = vunpack.c.h.b16 %v1116
    %v3331 = vunpack.c.l.b16 %v1117
    %v3332 = vunpack.c.h.b16 %v1117
    %v3333 = vunpack.c.l.b16 %v1118
    %v3334 = vunpack.c.h.b16 %v1118
    %v3335 = vunpack.c.l.b16 %v1119
    %v3336 = vunpack.c.h.b16 %v1119
    %v3337 = vunpack.c.l.b16 %v1120
    %v3338 = vunpack.c.h.b16 %v1120
    %v3339 = vunpack.c.l.b16 %v1121
    %v3340 = vunpack.c.h.b16 %v1121
    %v3341 = vunpack.c.l.b16 %v1122
    %v3342 = vunpack.c.h.b16 %v1122
    %v3343 = vunpack.c.l.b16 %v1123
    %v3344 = vunpack.c.h.b16 %v1123
    %v3345 = vunpack.c.l.b16 %v1124
    %v3346 = vunpack.c.h.b16 %v1124
    %v3347 = vunpack.c.l.b16 %v1125
    %v3348 = vunpack.c.h.b16 %v1125
    %v3349 = vunpack.c.l.b16 %v1126
    %v3350 = vunpack.c.h.b16 %v1126
    %v3351 = vunpack.c.l.b16 %v1127
    %v3352 = vunpack.c.h.b16 %v1127
    %v3353 = vunpack.c.l.b16 %v1128
    %v3354 = vunpack.c.h.b16 %v1128
    %v3355 = vunpack.c.l.b16 %v1129
    %v3356 = vunpack.c.h.b16 %v1129
    %v3357 = vunpack.c.l.b16 %v1130
    %v3358 = vunpack.c.h.b16 %v1130
    %v3359 = vunpack.c.l.b16 %v1131
    %v3360 = vunpack.c.h.b16 %v1131
    %v3361 = vunpack.c.l.b16 %v1132
    %v3362 = vunpack.c.h.b16 %v1132
    %v3363 = vunpack.c.l.b16 %v1133
    %v3364 = vunpack.c.h.b16 %v1133
    %v3365 = vunpack.c.l.b16 %v1134
    %v3366 = vunpack.c.h.b16 %v1134
    %v3367 = vunpack.c.l.b16 %v1135
    %v3368 = vunpack.c.h.b16 %v1135
    %v3369 = vunpack.c.l.b16 %v1136
    %v3370 = vunpack.c.h.b16 %v1136
    %v3371 = vunpack.c.l.b16 %v1137
    %v3372 = vunpack.c.h.b16 %v1137
    %v3373 = vunpack.c.l.b16 %v1138
    %v3374 = vunpack.c.h.b16 %v1138
    %v3375 = vunpack.c.l.b16 %v1139
    %v3376 = vunpack.c.h.b16 %v1139
    %v3377 = vunpack.c.l.b16 %v1140
    %v3378 = vunpack.c.h.b16 %v1140
    %v3379 = vunpack.c.l.b16 %v1141
    %v3380 = vunpack.c.h.b16 %v1141
    %v3381 = vunpack.c.l.b16 %v1142
    %v3382 = vunpack.c.h.b16 %v1142
    %v3383 = vunpack.c.l.b16 %v1143
    %v3384 = vunpack.c.h.b16 %v1143
    %v3385 = vunpack.c.l.b16 %v1144
    %v3386 = vunpack.c.h.b16 %v1144
    %v3387 = vunpack.c.l.b16 %v1145
    %v3388 = vunpack.c.h.b16 %v1145
    %v3389 = vunpack.c.l.b16 %v1146
    %v3390 = vunpack.c.h.b16 %v1146
    %v3391 = vunpack.c.l.b16 %v1147
    %v3392 = vunpack.c.h.b16 %v1147
    %v3393 = vunpack.c.l.b16 %v1148
    %v3394 = vunpack.c.h.b16 %v1148
    %v3395 = vunpack.c.l.b16 %v1149
    %v3396 = vunpack.c.h.b16 %v1149
    %v3397 = vunpack.c.l.b16 %v1150
    %v3398 = vunpack.c.h.b16 %v1150
    %v3399 = vunpack.c.l.b16 %v1151
    %v3400 = vunpack.c.h.b16 %v1151
    %v3401 = vunpack.c.l.b16 %v1152
    %v3402 = vunpack.c.h.b16 %v1152
    %v3403 = vunpack.c.l.b16 %v1153
    %v3404 = vunpack.c.h.b16 %v1153
    %v3405 = vunpack.c.l.b16 %v1154
    %v3406 = vunpack.c.h.b16 %v1154
    %v3407 = vunpack.c.l.b16 %v1155
    %v3408 = vunpack.c.h.b16 %v1155
    %v3409 = vunpack.c.l.b16 %v1156
    %v3410 = vunpack.c.h.b16 %v1156
    %v3411 = vunpack.c.l.b16 %v1157
    %v3412 = vunpack.c.h.b16 %v1157
    %v3413 = vunpack.c.l.b16 %v1158
    %v3414 = vunpack.c.h.b16 %v1158
    %v3415 = vunpack.c.l.b16 %v1159
    %v3416 = vunpack.c.h.b16 %v1159
    %v3417 = vunpack.c.l.b16 %v1160
    %v3418 = vunpack.c.h.b16 %v1160
    %v3419 = vunpack.c.l.b16 %v1161
    %v3420 = vunpack.c.h.b16 %v1161
    %v3421 = vunpack.c.l.b16 %v1162
    %v3422 = vunpack.c.h.b16 %v1162
    %v3423 = vunpack.c.l.b16 %v1163
    %v3424 = vunpack.c.h.b16 %v1163
    %v3425 = vunpack.c.l.b16 %v1164
    %v3426 = vunpack.c.h.b16 %v1164
    %v3427 = vunpack.c.l.b16 %v1165
    %v3428 = vunpack.c.h.b16 %v1165
    %v3429 = vunpack.c.l.b16 %v1166
    %v3430 = vunpack.c.h.b16 %v1166
    %v3431 = vunpack.c.l.b16 %v1167
    %v3432 = vunpack.c.h.b16 %v1167
    %v3433 = vunpack.c.l.b16 %v1168
    %v3434 = vunpack.c.h.b16 %v1168
    %v3435 = vunpack.c.l.b16 %v1169
    %v3436 = vunpack.c.h.b16 %v1169
    %v3437 = vunpack.c.l.b16 %v1170
    %v3438 = vunpack.c.h.b16 %v1170
    %v3439 = vunpack.c.l.b16 %v1171
    %v3440 = vunpack.c.h.b16 %v1171
    %v3441 = vunpack.c.l.b16 %v1172
    %v3442 = vunpack.c.h.b16 %v1172
    %v3443 = vunpack.c.l.b16 %v1173
    %v3444 = vunpack.c.h.b16 %v1173
    %v3445 = vunpack.c.l.b16 %v1174
    %v3446 = vunpack.c.h.b16 %v1174
    %v3447 = vunpack.c.l.b16 %v1175
    %v3448 = vunpack.c.h.b16 %v1175
    %v3449 = vunpack.c.l.b16 %v1176
    %v3450 = vunpack.c.h.b16 %v1176
    %v3451 = vunpack.c.l.b16 %v1177
    %v3452 = vunpack.c.h.b16 %v1177
    %v3453 = vunpack.c.l.b16 %v1178
    %v3454 = vunpack.c.h.b16 %v1178
    %v3455 = vunpack.c.l.b16 %v1179
    %v3456 = vunpack.c.h.b16 %v1179
    %v3457 = vunpack.c.l.b16 %v1180
    %v3458 = vunpack.c.h.b16 %v1180
    %v3459 = vpack.c.b16 %v3207, %v3203
    %v3460 = vpack.c.b16 %v3208, %v3204
    %v3461 = vpack.c.b16 %v3209, %v3205
    %v3462 = vpack.c.b16 %v3210, %v3206
    %v3463 = vpack.c.b16 %v3215, %v3211
    %v3464 = vpack.c.b16 %v3216, %v3212
    %v3465 = vpack.c.b16 %v3217, %v3213
    %v3466 = vpack.c.b16 %v3218, %v3214
    %v3467 = vpack.c.b16 %v3223, %v3219
    %v3468 = vpack.c.b16 %v3224, %v3220
    %v3469 = vpack.c.b16 %v3225, %v3221
    %v3470 = vpack.c.b16 %v3226, %v3222
    %v3471 = vpack.c.b16 %v3231, %v3227
    %v3472 = vpack.c.b16 %v3232, %v3228
    %v3473 = vpack.c.b16 %v3233, %v3229
    %v3474 = vpack.c.b16 %v3234, %v3230
    %v3475 = vpack.c.b16 %v3239, %v3235
    %v3476 = vpack.c.b16 %v3240, %v3236
    %v3477 = vpack.c.b16 %v3241, %v3237
    %v3478 = vpack.c.b16 %v3242, %v3238
    %v3479 = vpack.c.b16 %v3247, %v3243
    %v3480 = vpack.c.b16 %v3248, %v3244
    %v3481 = vpack.c.b16 %v3249, %v3245
    %v3482 = vpack.c.b16 %v3250, %v3246
    %v3483 = vpack.c.b16 %v3255, %v3251
    %v3484 = vpack.c.b16 %v3256, %v3252
    %v3485 = vpack.c.b16 %v3257, %v3253
    %v3486 = vpack.c.b16 %v3258, %v3254
    %v3487 = vpack.c.b16 %v3263, %v3259
    %v3488 = vpack.c.b16 %v3264, %v3260
    %v3489 = vpack.c.b16 %v3265, %v3261
    %v3490 = vpack.c.b16 %v3266, %v3262
    %v3491 = vpack.c.b16 %v3271, %v3267
    %v3492 = vpack.c.b16 %v3272, %v3268
    %v3493 = vpack.c.b16 %v3273, %v3269
    %v3494 = vpack.c.b16 %v3274, %v3270
    %v3495 = vpack.c.b16 %v3279, %v3275
    %v3496 = vpack.c.b16 %v3280, %v3276
    %v3497 = vpack.c.b16 %v3281, %v3277
    %v3498 = vpack.c.b16 %v3282, %v3278
    %v3499 = vpack.c.b16 %v3287, %v3283
    %v3500 = vpack.c.b16 %v3288, %v3284
    %v3501 = vpack.c.b16 %v3289, %v3285
    %v3502 = vpack.c.b16 %v3290, %v3286
    %v3503 = vpack.c.b16 %v3295, %v3291
    %v3504 = vpack.c.b16 %v3296, %v3292
    %v3505 = vpack.c.b16 %v3297, %v3293
    %v3506 = vpack.c.b16 %v3298, %v3294
    %v3507 = vpack.c.b16 %v3303, %v3299
    %v3508 = vpack.c.b16 %v3304, %v3300
    %v3509 = vpack.c.b16 %v3305, %v3301
    %v3510 = vpack.c.b16 %v3306, %v3302
    %v3511 = vpack.c.b16 %v3311, %v3307
    %v3512 = vpack.c.b16 %v3312, %v3308
    %v3513 = vpack.c.b16 %v3313, %v3309
    %v3514 = vpack.c.b16 %v3314, %v3310
    %v3515 = vpack.c.b16 %v3319, %v3315
    %v3516 = vpack.c.b16 %v3320, %v3316
    %v3517 = vpack.c.b16 %v3321, %v3317
    %v3518 = vpack.c.b16 %v3322, %v3318
    %v3519 = vpack.c.b16 %v3327, %v3323
    %v3520 = vpack.c.b16 %v3328, %v3324
    %v3521 = vpack.c.b16 %v3329, %v3325
    %v3522 = vpack.c.b16 %v3330, %v3326
    %v3523 = vpack.c.b16 %v3335, %v3331
    %v3524 = vpack.c.b16 %v3336, %v3332
    %v3525 = vpack.c.b16 %v3337, %v3333
    %v3526 = vpack.c.b16 %v3338, %v3334
    %v3527 = vpack.c.b16 %v3343, %v3339
    %v3528 = vpack.c.b16 %v3344, %v3340
    %v3529 = vpack.c.b16 %v3345, %v3341
    %v3530 = vpack.c.b16 %v3346, %v3342
    %v3531 = vpack.c.b16 %v3351, %v3347
    %v3532 = vpack.c.b16 %v3352, %v3348
    %v3533 = vpack.c.b16 %v3353, %v3349
    %v3534 = vpack.c.b16 %v3354, %v3350
    %v3535 = vpack.c.b16 %v3359, %v3355
    %v3536 = vpack.c.b16 %v3360, %v3356
    %v3537 = vpack.c.b16 %v3361, %v3357
    %v3538 = vpack.c.b16 %v3362, %v3358
    %v3539 = vpack.c.b16 %v3367, %v3363
    %v3540 = vpack.c.b16 %v3368, %v3364
    %v3541 = vpack.c.b16 %v3369, %v3365
    %v3542 = vpack.c.b16 %v3370, %v3366
    %v3543 = vpack.c.b16 %v3375, %v3371
    %v3544 = vpack.c.b16 %v3376, %v3372
    %v3545 = vpack.c.b16 %v3377, %v3373
    %v3546 = vpack.c.b16 %v3378, %v3374
    %v3547 = vpack.c.b16 %v3383, %v3379
    %v3548 = vpack.c.b16 %v3384, %v3380
    %v3549 = vpack.c.b16 %v3385, %v3381
    %v3550 = vpack.c.b16 %v3386, %v3382
    %v3551 = vpack.c.b16 %v3391, %v3387
    %v3552 = vpack.c.b16 %v3392, %v3388
    %v3553 = vpack.c.b16 %v3393, %v3389
    %v3554 = vpack.c.b16 %v3394, %v3390
    %v3555 = vpack.c.b16 %v3399, %v3395
    %v3556 = vpack.c.b16 %v3400, %v3396
    %v3557 = vpack.c.b16 %v3401, %v3397
    %v3558 = vpack.c.b16 %v3402, %v3398
    %v3559 = vpack.c.b16 %v3407, %v3403
    %v3560 = vpack.c.b16 %v3408, %v3404
    %v3561 = vpack.c.b16 %v3409, %v3405
    %v3562 = vpack.c.b16 %v3410, %v3406
    %v3563 = vpack.c.b16 %v3415, %v3411
    %v3564 = vpack.c.b16 %v3416, %v3412
    %v3565 = vpack.c.b16 %v3417, %v3413
    %v3566 = vpack.c.b16 %v3418, %v3414
    %v3567 = vpack.c.b16 %v3423, %v3419
    %v3568 = vpack.c.b16 %v3424, %v3420
    %v3569 = vpack.c.b16 %v3425, %v3421
    %v3570 = vpack.c.b16 %v3426, %v3422
    %v3571 = vpack.c.b16 %v3431, %v3427
    %v3572 = vpack.c.b16 %v3432, %v3428
    %v3573 = vpack.c.b16 %v3433, %v3429
    %v3574 = vpack.c.b16 %v3434, %v3430
    %v3575 = vpack.c.b16 %v3439, %v3435
    %v3576 = vpack.c.b16 %v3440, %v3436
    %v3577 = vpack.c.b16 %v3441, %v3437
    %v3578 = vpack.c.b16 %v3442, %v3438
    %v3579 = vpack.c.b16 %v3447, %v3443
    %v3580 = vpack.c.b16 %v3448, %v3444
    %v3581 = vpack.c.b16 %v3449, %v3445
    %v3582 = vpack.c.b16 %v3450, %v3446
    %v3583 = vpack.c.b16 %v3455, %v3451
    %v3584 = vpack.c.b16 %v3456, %v3452
    %v3585 = vpack.c.b16 %v3457, %v3453
    %v3586 = vpack.c.b16 %v3458, %v3454
    %3715 = vmatprep.subr.bf16.mxu0 %v3460
    %3716 = vmatpush1.bf16.msra.mxu0 %v3459
    %3717 = vmatprep.subr.bf16.mxu0 %v3464
    %3718 = vmatpush1.bf16.msra.mxu0 %v3463
    %3719 = vmatprep.subr.bf16.mxu0 %v3468
    %3720 = vmatpush1.bf16.msra.mxu0 %v3467
    %3721 = vmatprep.subr.bf16.mxu0 %v3472
    %3722 = vmatpush1.bf16.msra.mxu0 %v3471
    %3723 = vmatprep.subr.bf16.mxu0 %v3476
    %3724 = vmatpush1.bf16.msra.mxu0 %v3475
    %3725 = vmatprep.subr.bf16.mxu0 %v3480
    %3726 = vmatpush1.bf16.msra.mxu0 %v3479
    %3727 = vmatprep.subr.bf16.mxu0 %v3484
    %3728 = vmatpush1.bf16.msra.mxu0 %v3483
    %3729 = vmatprep.subr.bf16.mxu0 %v3488
    %3730 = vmatpush1.bf16.msra.mxu0 %v3487
    %3731 = vmatprep.subr.bf16.mxu0 %v3492
    %3732 = vmatpush1.bf16.msra.mxu0 %v3491
    %3733 = vmatprep.subr.bf16.mxu0 %v3496
    %3734 = vmatpush1.bf16.msra.mxu0 %v3495
    %3735 = vmatprep.subr.bf16.mxu0 %v3500
    %3736 = vmatpush1.bf16.msra.mxu0 %v3499
    %3737 = vmatprep.subr.bf16.mxu0 %v3504
    %3738 = vmatpush1.bf16.msra.mxu0 %v3503
    %3739 = vmatprep.subr.bf16.mxu0 %v3508
    %3740 = vmatpush1.bf16.msra.mxu0 %v3507
    %3741 = vmatprep.subr.bf16.mxu0 %v3512
    %3742 = vmatpush1.bf16.msra.mxu0 %v3511
    %3743 = vmatprep.subr.bf16.mxu0 %v3516
    %3744 = vmatpush1.bf16.msra.mxu0 %v3515
    %3745 = vmatprep.subr.bf16.mxu0 %v3520
    %3746 = vmatpush1.bf16.msra.mxu0 %v3519
    %3747 = vmatprep.mubr.bf16.mxu0 %v1050
    %3748 = vmatmul.mubr.bf16.gmra.mrb[0].mxu0 %v1049
    %v3749 = vpop.f32.mrb[0].mxu0
    %v3750 = vadd.f32 %v2987, %v3749
    %v3751 = vpop.f32.mrb[0].mxu0
    %v3752 = vadd.f32 %v2989, %v3751
    %v3753 = vpop.f32.mrb[0].mxu0
    %v3754 = vpop.f32.mrb[0].mxu0
    %3755 = vdwg.mxu0
    %3756 = vmatprep.subr.bf16.mxu0 %v3524
    %3757 = vmatpush1.bf16.msra.mxu0 %v3523
    %3758 = vmatprep.subr.bf16.mxu0 %v3528
    %3759 = vmatpush1.bf16.msra.mxu0 %v3527
    %3760 = vmatprep.subr.bf16.mxu0 %v3532
    %3761 = vmatpush1.bf16.msra.mxu0 %v3531
    %3762 = vmatprep.subr.bf16.mxu0 %v3536
    %3763 = vmatpush1.bf16.msra.mxu0 %v3535
    %3764 = vmatprep.subr.bf16.mxu0 %v3540
    %3765 = vmatpush1.bf16.msra.mxu0 %v3539
    %3766 = vmatprep.subr.bf16.mxu0 %v3544
    %3767 = vmatpush1.bf16.msra.mxu0 %v3543
    %3768 = vmatprep.subr.bf16.mxu0 %v3548
    %3769 = vmatpush1.bf16.msra.mxu0 %v3547
    %3770 = vmatprep.subr.bf16.mxu0 %v3552
    %3771 = vmatpush1.bf16.msra.mxu0 %v3551
    %3772 = vmatprep.subr.bf16.mxu0 %v3556
    %3773 = vmatpush1.bf16.msra.mxu0 %v3555
    %3774 = vmatprep.subr.bf16.mxu0 %v3560
    %3775 = vmatpush1.bf16.msra.mxu0 %v3559
    %3776 = vmatprep.subr.bf16.mxu0 %v3564
    %3777 = vmatpush1.bf16.msra.mxu0 %v3563
    %3778 = vmatprep.subr.bf16.mxu0 %v3568
    %3779 = vmatpush1.bf16.msra.mxu0 %v3567
    %3780 = vmatprep.subr.bf16.mxu0 %v3572
    %3781 = vmatpush1.bf16.msra.mxu0 %v3571
    %3782 = vmatprep.subr.bf16.mxu0 %v3576
    %3783 = vmatpush1.bf16.msra.mxu0 %v3575
    %3784 = vmatprep.subr.bf16.mxu0 %v3580
    %3785 = vmatpush1.bf16.msra.mxu0 %v3579
    %3786 = vmatprep.subr.bf16.mxu0 %v3584
    %3787 = vmatpush1.bf16.msra.mxu0 %v3583
    %3788 = vmatprep.mubr.bf16.mxu0 %v1052
    %3789 = vmatmul.mubr.bf16.gmra.mrb[0].mxu0 %v1051
    %v3790 = vpop.f32.mrb[0].mxu0
    %v3791 = vadd.f32 %v3750, %v3790
    %v3792 = vpop.f32.mrb[0].mxu0
    %v3793 = vadd.f32 %v3752, %v3792
    %v3794 = vpop.f32.mrb[0].mxu0
    %v3795 = vpop.f32.mrb[0].mxu0
    %3796 = vdwg.mxu0
    %3797 = vmatprep.subr.bf16.mxu0 %v3462
    %3798 = vmatpush1.bf16.msra.mxu0 %v3461
    %3799 = vmatprep.subr.bf16.mxu0 %v3466
    %3800 = vmatpush1.bf16.msra.mxu0 %v3465
    %3801 = vmatprep.subr.bf16.mxu0 %v3470
    %3802 = vmatpush1.bf16.msra.mxu0 %v3469
    %3803 = vmatprep.subr.bf16.mxu0 %v3474
    %3804 = vmatpush1.bf16.msra.mxu0 %v3473
    %3805 = vmatprep.subr.bf16.mxu0 %v3478
    %3806 = vmatpush1.bf16.msra.mxu0 %v3477
    %3807 = vmatprep.subr.bf16.mxu0 %v3482
    %3808 = vmatpush1.bf16.msra.mxu0 %v3481
    %3809 = vmatprep.subr.bf16.mxu0 %v3486
    %3810 = vmatpush1.bf16.msra.mxu0 %v3485
    %3811 = vmatprep.subr.bf16.mxu0 %v3490
    %3812 = vmatpush1.bf16.msra.mxu0 %v3489
    %3813 = vmatprep.subr.bf16.mxu0 %v3494
    %3814 = vmatpush1.bf16.msra.mxu0 %v3493
    %3815 = vmatprep.subr.bf16.mxu0 %v3498
    %3816 = vmatpush1.bf16.msra.mxu0 %v3497
    %3817 = vmatprep.subr.bf16.mxu0 %v3502
    %3818 = vmatpush1.bf16.msra.mxu0 %v3501
    %3819 = vmatprep.subr.bf16.mxu0 %v3506
    %3820 = vmatpush1.bf16.msra.mxu0 %v3505
    %3821 = vmatprep.subr.bf16.mxu0 %v3510
    %3822 = vmatpush1.bf16.msra.mxu0 %v3509
    %3823 = vmatprep.subr.bf16.mxu0 %v3514
    %3824 = vmatpush1.bf16.msra.mxu0 %v3513
    %3825 = vmatprep.subr.bf16.mxu0 %v3518
    %3826 = vmatpush1.bf16.msra.mxu0 %v3517
    %3827 = vmatprep.subr.bf16.mxu0 %v3522
    %3828 = vmatpush1.bf16.msra.mxu0 %v3521
    %3829 = vmatprep.mubr.bf16.mxu0 %v1050
    %3830 = vmatmul.mubr.bf16.gmra.mrb[0].mxu0 %v1049
    %v3831 = vpop.f32.mrb[0].mxu0
    %v3832 = vadd.f32 %v3069, %v3831
    %v3833 = vpop.f32.mrb[0].mxu0
    %v3834 = vadd.f32 %v3071, %v3833
    %v3835 = vpop.f32.mrb[0].mxu0
    %v3836 = vpop.f32.mrb[0].mxu0
    %3837 = vdwg.mxu0
    %3838 = vmatprep.subr.bf16.mxu0 %v3526
    %3839 = vmatpush1.bf16.msra.mxu0 %v3525
    %3840 = vmatprep.subr.bf16.mxu0 %v3530
    %3841 = vmatpush1.bf16.msra.mxu0 %v3529
    %3842 = vmatprep.subr.bf16.mxu0 %v3534
    %3843 = vmatpush1.bf16.msra.mxu0 %v3533
    %3844 = vmatprep.subr.bf16.mxu0 %v3538
    %3845 = vmatpush1.bf16.msra.mxu0 %v3537
    %3846 = vmatprep.subr.bf16.mxu0 %v3542
    %3847 = vmatpush1.bf16.msra.mxu0 %v3541
    %3848 = vmatprep.subr.bf16.mxu0 %v3546
    %3849 = vmatpush1.bf16.msra.mxu0 %v3545
    %3850 = vmatprep.subr.bf16.mxu0 %v3550
    %3851 = vmatpush1.bf16.msra.mxu0 %v3549
    %3852 = vmatprep.subr.bf16.mxu0 %v3554
    %3853 = vmatpush1.bf16.msra.mxu0 %v3553
    %3854 = vmatprep.subr.bf16.mxu0 %v3558
    %3855 = vmatpush1.bf16.msra.mxu0 %v3557
    %3856 = vmatprep.subr.bf16.mxu0 %v3562
    %3857 = vmatpush1.bf16.msra.mxu0 %v3561
    %3858 = vmatprep.subr.bf16.mxu0 %v3566
    %3859 = vmatpush1.bf16.msra.mxu0 %v3565
    %3860 = vmatprep.subr.bf16.mxu0 %v3570
    %3861 = vmatpush1.bf16.msra.mxu0 %v3569
    %3862 = vmatprep.subr.bf16.mxu0 %v3574
    %3863 = vmatpush1.bf16.msra.mxu0 %v3573
    %3864 = vmatprep.subr.bf16.mxu0 %v3578
    %3865 = vmatpush1.bf16.msra.mxu0 %v3577
    %3866 = vmatprep.subr.bf16.mxu0 %v3582
    %3867 = vmatpush1.bf16.msra.mxu0 %v3581
    %3868 = vmatprep.subr.bf16.mxu0 %v3586
    %3869 = vmatpush1.bf16.msra.mxu0 %v3585
    %3870 = vmatprep.mubr.bf16.mxu0 %v1052
    %3871 = vmatmul.mubr.bf16.gmra.mrb[0].mxu0 %v1051
    %v3872 = vpop.f32.mrb[0].mxu0
    %v3873 = vadd.f32 %v3832, %v3872
    %v3874 = vpop.f32.mrb[0].mxu0
    %v3875 = vadd.f32 %v3834, %v3874
    %v3876 = vpop.f32.mrb[0].mxu0
    %v3877 = vpop.f32.mrb[0].mxu0
    %3878 = vdwg.mxu0
    %v3879 = vld [vmem:[#allocation5 + $0x20] sm:$0xff]
    %v3880 = vld [vmem:[#allocation5 + $0x28] sm:$0xff]
    %v3881 = vld [vmem:[#allocation5 + $0x60] sm:$0xff]
    %v3882 = vld [vmem:[#allocation5 + $0x68] sm:$0xff]
    %v3883 = vld [vmem:[#allocation5 + $0xa0] sm:$0xff]
    %v3884 = vld [vmem:[#allocation5 + $0xa8] sm:$0xff]
    %v3885 = vld [vmem:[#allocation5 + $0xe0] sm:$0xff]
    %v3886 = vld [vmem:[#allocation5 + $0xe8] sm:$0xff]
    %v3887 = vld [vmem:[#allocation5 + $0x120] sm:$0xff]
    %v3888 = vld [vmem:[#allocation5 + $0x128] sm:$0xff]
    %v3889 = vld [vmem:[#allocation5 + $0x160] sm:$0xff]
    %v3890 = vld [vmem:[#allocation5 + $0x168] sm:$0xff]
    %v3891 = vld [vmem:[#allocation5 + $0x1a0] sm:$0xff]
    %v3892 = vld [vmem:[#allocation5 + $0x1a8] sm:$0xff]
    %v3893 = vld [vmem:[#allocation5 + $0x1e0] sm:$0xff]
    %v3894 = vld [vmem:[#allocation5 + $0x1e8] sm:$0xff]
    %v3895 = vld [vmem:[#allocation5 + $0x220] sm:$0xff]
    %v3896 = vld [vmem:[#allocation5 + $0x228] sm:$0xff]
    %v3897 = vld [vmem:[#allocation5 + $0x260] sm:$0xff]
    %v3898 = vld [vmem:[#allocation5 + $0x268] sm:$0xff]
    %v3899 = vld [vmem:[#allocation5 + $0x2a0] sm:$0xff]
    %v3900 = vld [vmem:[#allocation5 + $0x2a8] sm:$0xff]
    %v3901 = vld [vmem:[#allocation5 + $0x2e0] sm:$0xff]
    %v3902 = vld [vmem:[#allocation5 + $0x2e8] sm:$0xff]
    %v3903 = vld [vmem:[#allocation5 + $0x320] sm:$0xff]
    %v3904 = vld [vmem:[#allocation5 + $0x328] sm:$0xff]
    %v3905 = vld [vmem:[#allocation5 + $0x360] sm:$0xff]
    %v3906 = vld [vmem:[#allocation5 + $0x368] sm:$0xff]
    %v3907 = vld [vmem:[#allocation5 + $0x3a0] sm:$0xff]
    %v3908 = vld [vmem:[#allocation5 + $0x3a8] sm:$0xff]
    %v3909 = vld [vmem:[#allocation5 + $0x3e0] sm:$0xff]
    %v3910 = vld [vmem:[#allocation5 + $0x3e8] sm:$0xff]
    %v3911 = vld [vmem:[#allocation5 + $0x420] sm:$0xff]
    %v3912 = vld [vmem:[#allocation5 + $0x428] sm:$0xff]
    %v3913 = vld [vmem:[#allocation5 + $0x460] sm:$0xff]
    %v3914 = vld [vmem:[#allocation5 + $0x468] sm:$0xff]
    %v3915 = vld [vmem:[#allocation5 + $0x4a0] sm:$0xff]
    %v3916 = vld [vmem:[#allocation5 + $0x4a8] sm:$0xff]
    %v3917 = vld [vmem:[#allocation5 + $0x4e0] sm:$0xff]
    %v3918 = vld [vmem:[#allocation5 + $0x4e8] sm:$0xff]
    %v3919 = vld [vmem:[#allocation5 + $0x520] sm:$0xff]
    %v3920 = vld [vmem:[#allocation5 + $0x528] sm:$0xff]
    %v3921 = vld [vmem:[#allocation5 + $0x560] sm:$0xff]
    %v3922 = vld [vmem:[#allocation5 + $0x568] sm:$0xff]
    %v3923 = vld [vmem:[#allocation5 + $0x5a0] sm:$0xff]
    %v3924 = vld [vmem:[#allocation5 + $0x5a8] sm:$0xff]
    %v3925 = vld [vmem:[#allocation5 + $0x5e0] sm:$0xff]
    %v3926 = vld [vmem:[#allocation5 + $0x5e8] sm:$0xff]
    %v3927 = vld [vmem:[#allocation5 + $0x620] sm:$0xff]
    %v3928 = vld [vmem:[#allocation5 + $0x628] sm:$0xff]
    %v3929 = vld [vmem:[#allocation5 + $0x660] sm:$0xff]
    %v3930 = vld [vmem:[#allocation5 + $0x668] sm:$0xff]
    %v3931 = vld [vmem:[#allocation5 + $0x6a0] sm:$0xff]
    %v3932 = vld [vmem:[#allocation5 + $0x6a8] sm:$0xff]
    %v3933 = vld [vmem:[#allocation5 + $0x6e0] sm:$0xff]
    %v3934 = vld [vmem:[#allocation5 + $0x6e8] sm:$0xff]
    %v3935 = vld [vmem:[#allocation5 + $0x720] sm:$0xff]
    %v3936 = vld [vmem:[#allocation5 + $0x728] sm:$0xff]
    %v3937 = vld [vmem:[#allocation5 + $0x760] sm:$0xff]
    %v3938 = vld [vmem:[#allocation5 + $0x768] sm:$0xff]
    %v3939 = vld [vmem:[#allocation5 + $0x7a0] sm:$0xff]
    %v3940 = vld [vmem:[#allocation5 + $0x7a8] sm:$0xff]
    %v3941 = vld [vmem:[#allocation5 + $0x7e0] sm:$0xff]
    %v3942 = vld [vmem:[#allocation5 + $0x7e8] sm:$0xff]
    %v3943 = vld [vmem:[#allocation5 + $0x820] sm:$0xff]
    %v3944 = vld [vmem:[#allocation5 + $0x828] sm:$0xff]
    %v3945 = vld [vmem:[#allocation5 + $0x860] sm:$0xff]
    %v3946 = vld [vmem:[#allocation5 + $0x868] sm:$0xff]
    %v3947 = vld [vmem:[#allocation5 + $0x8a0] sm:$0xff]
    %v3948 = vld [vmem:[#allocation5 + $0x8a8] sm:$0xff]
    %v3949 = vld [vmem:[#allocation5 + $0x8e0] sm:$0xff]
    %v3950 = vld [vmem:[#allocation5 + $0x8e8] sm:$0xff]
    %v3951 = vld [vmem:[#allocation5 + $0x920] sm:$0xff]
    %v3952 = vld [vmem:[#allocation5 + $0x928] sm:$0xff]
    %v3953 = vld [vmem:[#allocation5 + $0x960] sm:$0xff]
    %v3954 = vld [vmem:[#allocation5 + $0x968] sm:$0xff]
    %v3955 = vld [vmem:[#allocation5 + $0x9a0] sm:$0xff]
    %v3956 = vld [vmem:[#allocation5 + $0x9a8] sm:$0xff]
    %v3957 = vld [vmem:[#allocation5 + $0x9e0] sm:$0xff]
    %v3958 = vld [vmem:[#allocation5 + $0x9e8] sm:$0xff]
    %v3959 = vld [vmem:[#allocation5 + $0xa20] sm:$0xff]
    %v3960 = vld [vmem:[#allocation5 + $0xa28] sm:$0xff]
    %v3961 = vld [vmem:[#allocation5 + $0xa60] sm:$0xff]
    %v3962 = vld [vmem:[#allocation5 + $0xa68] sm:$0xff]
    %v3963 = vld [vmem:[#allocation5 + $0xaa0] sm:$0xff]
    %v3964 = vld [vmem:[#allocation5 + $0xaa8] sm:$0xff]
    %v3965 = vld [vmem:[#allocation5 + $0xae0] sm:$0xff]
    %v3966 = vld [vmem:[#allocation5 + $0xae8] sm:$0xff]
    %v3967 = vld [vmem:[#allocation5 + $0xb20] sm:$0xff]
    %v3968 = vld [vmem:[#allocation5 + $0xb28] sm:$0xff]
    %v3969 = vld [vmem:[#allocation5 + $0xb60] sm:$0xff]
    %v3970 = vld [vmem:[#allocation5 + $0xb68] sm:$0xff]
    %v3971 = vld [vmem:[#allocation5 + $0xba0] sm:$0xff]
    %v3972 = vld [vmem:[#allocation5 + $0xba8] sm:$0xff]
    %v3973 = vld [vmem:[#allocation5 + $0xbe0] sm:$0xff]
    %v3974 = vld [vmem:[#allocation5 + $0xbe8] sm:$0xff]
    %v3975 = vld [vmem:[#allocation5 + $0xc20] sm:$0xff]
    %v3976 = vld [vmem:[#allocation5 + $0xc28] sm:$0xff]
    %v3977 = vld [vmem:[#allocation5 + $0xc60] sm:$0xff]
    %v3978 = vld [vmem:[#allocation5 + $0xc68] sm:$0xff]
    %v3979 = vld [vmem:[#allocation5 + $0xca0] sm:$0xff]
    %v3980 = vld [vmem:[#allocation5 + $0xca8] sm:$0xff]
    %v3981 = vld [vmem:[#allocation5 + $0xce0] sm:$0xff]
    %v3982 = vld [vmem:[#allocation5 + $0xce8] sm:$0xff]
    %v3983 = vld [vmem:[#allocation5 + $0xd20] sm:$0xff]
    %v3984 = vld [vmem:[#allocation5 + $0xd28] sm:$0xff]
    %v3985 = vld [vmem:[#allocation5 + $0xd60] sm:$0xff]
    %v3986 = vld [vmem:[#allocation5 + $0xd68] sm:$0xff]
    %v3987 = vld [vmem:[#allocation5 + $0xda0] sm:$0xff]
    %v3988 = vld [vmem:[#allocation5 + $0xda8] sm:$0xff]
    %v3989 = vld [vmem:[#allocation5 + $0xde0] sm:$0xff]
    %v3990 = vld [vmem:[#allocation5 + $0xde8] sm:$0xff]
    %v3991 = vld [vmem:[#allocation5 + $0xe20] sm:$0xff]
    %v3992 = vld [vmem:[#allocation5 + $0xe28] sm:$0xff]
    %v3993 = vld [vmem:[#allocation5 + $0xe60] sm:$0xff]
    %v3994 = vld [vmem:[#allocation5 + $0xe68] sm:$0xff]
    %v3995 = vld [vmem:[#allocation5 + $0xea0] sm:$0xff]
    %v3996 = vld [vmem:[#allocation5 + $0xea8] sm:$0xff]
    %v3997 = vld [vmem:[#allocation5 + $0xee0] sm:$0xff]
    %v3998 = vld [vmem:[#allocation5 + $0xee8] sm:$0xff]
    %v3999 = vld [vmem:[#allocation5 + $0xf20] sm:$0xff]
    %v4000 = vld [vmem:[#allocation5 + $0xf28] sm:$0xff]
    %v4001 = vld [vmem:[#allocation5 + $0xf60] sm:$0xff]
    %v4002 = vld [vmem:[#allocation5 + $0xf68] sm:$0xff]
    %v4003 = vld [vmem:[#allocation5 + $0xfa0] sm:$0xff]
    %v4004 = vld [vmem:[#allocation5 + $0xfa8] sm:$0xff]
    %v4005 = vld [vmem:[#allocation5 + $0xfe0] sm:$0xff]
    %v4006 = vld [vmem:[#allocation5 + $0xfe8] sm:$0xff]
    %v4007 = vld [vmem:[#allocation7 + $0x8] sm:$0xf]
    %v4009 = vlaneseq
    %v4010 = vshrl.u32 %v4009, 7
    %v4011 = vsub.s32 0, %v4010
    %v4012 = vrot.slane %v4007, %v4011
    %v4013 = vlaneseq
    %v4014 = vshrl.u32 %v4013, 7
    %v4015 = vsub.s32 1, %v4014
    %v4016 = vrot.slane %v4007, %v4015
    %v4017 = vlaneseq
    %v4018 = vshrl.u32 %v4017, 7
    %v4019 = vsub.s32 2, %v4018
    %v4020 = vrot.slane %v4007, %v4019
    %v4021 = vlaneseq
    %v4022 = vshrl.u32 %v4021, 7
    %v4023 = vsub.s32 3, %v4022
    %v4024 = vrot.slane %v4007, %v4023
    %v4157 = vunpack.c.l.b16 %v3879
    %v4158 = vunpack.c.h.b16 %v3879
    %v4159 = vunpack.c.l.b16 %v3880
    %v4160 = vunpack.c.h.b16 %v3880
    %v4161 = vunpack.c.l.b16 %v3881
    %v4162 = vunpack.c.h.b16 %v3881
    %v4163 = vunpack.c.l.b16 %v3882
    %v4164 = vunpack.c.h.b16 %v3882
    %v4165 = vunpack.c.l.b16 %v3883
    %v4166 = vunpack.c.h.b16 %v3883
    %v4167 = vunpack.c.l.b16 %v3884
    %v4168 = vunpack.c.h.b16 %v3884
    %v4169 = vunpack.c.l.b16 %v3885
    %v4170 = vunpack.c.h.b16 %v3885
    %v4171 = vunpack.c.l.b16 %v3886
    %v4172 = vunpack.c.h.b16 %v3886
    %v4173 = vunpack.c.l.b16 %v3887
    %v4174 = vunpack.c.h.b16 %v3887
    %v4175 = vunpack.c.l.b16 %v3888
    %v4176 = vunpack.c.h.b16 %v3888
    %v4177 = vunpack.c.l.b16 %v3889
    %v4178 = vunpack.c.h.b16 %v3889
    %v4179 = vunpack.c.l.b16 %v3890
    %v4180 = vunpack.c.h.b16 %v3890
    %v4181 = vunpack.c.l.b16 %v3891
    %v4182 = vunpack.c.h.b16 %v3891
    %v4183 = vunpack.c.l.b16 %v3892
    %v4184 = vunpack.c.h.b16 %v3892
    %v4185 = vunpack.c.l.b16 %v3893
    %v4186 = vunpack.c.h.b16 %v3893
    %v4187 = vunpack.c.l.b16 %v3894
    %v4188 = vunpack.c.h.b16 %v3894
    %v4189 = vunpack.c.l.b16 %v3895
    %v4190 = vunpack.c.h.b16 %v3895
    %v4191 = vunpack.c.l.b16 %v3896
    %v4192 = vunpack.c.h.b16 %v3896
    %v4193 = vunpack.c.l.b16 %v3897
    %v4194 = vunpack.c.h.b16 %v3897
    %v4195 = vunpack.c.l.b16 %v3898
    %v4196 = vunpack.c.h.b16 %v3898
    %v4197 = vunpack.c.l.b16 %v3899
    %v4198 = vunpack.c.h.b16 %v3899
    %v4199 = vunpack.c.l.b16 %v3900
    %v4200 = vunpack.c.h.b16 %v3900
    %v4201 = vunpack.c.l.b16 %v3901
    %v4202 = vunpack.c.h.b16 %v3901
    %v4203 = vunpack.c.l.b16 %v3902
    %v4204 = vunpack.c.h.b16 %v3902
    %v4205 = vunpack.c.l.b16 %v3903
    %v4206 = vunpack.c.h.b16 %v3903
    %v4207 = vunpack.c.l.b16 %v3904
    %v4208 = vunpack.c.h.b16 %v3904
    %v4209 = vunpack.c.l.b16 %v3905
    %v4210 = vunpack.c.h.b16 %v3905
    %v4211 = vunpack.c.l.b16 %v3906
    %v4212 = vunpack.c.h.b16 %v3906
    %v4213 = vunpack.c.l.b16 %v3907
    %v4214 = vunpack.c.h.b16 %v3907
    %v4215 = vunpack.c.l.b16 %v3908
    %v4216 = vunpack.c.h.b16 %v3908
    %v4217 = vunpack.c.l.b16 %v3909
    %v4218 = vunpack.c.h.b16 %v3909
    %v4219 = vunpack.c.l.b16 %v3910
    %v4220 = vunpack.c.h.b16 %v3910
    %v4221 = vunpack.c.l.b16 %v3911
    %v4222 = vunpack.c.h.b16 %v3911
    %v4223 = vunpack.c.l.b16 %v3912
    %v4224 = vunpack.c.h.b16 %v3912
    %v4225 = vunpack.c.l.b16 %v3913
    %v4226 = vunpack.c.h.b16 %v3913
    %v4227 = vunpack.c.l.b16 %v3914
    %v4228 = vunpack.c.h.b16 %v3914
    %v4229 = vunpack.c.l.b16 %v3915
    %v4230 = vunpack.c.h.b16 %v3915
    %v4231 = vunpack.c.l.b16 %v3916
    %v4232 = vunpack.c.h.b16 %v3916
    %v4233 = vunpack.c.l.b16 %v3917
    %v4234 = vunpack.c.h.b16 %v3917
    %v4235 = vunpack.c.l.b16 %v3918
    %v4236 = vunpack.c.h.b16 %v3918
    %v4237 = vunpack.c.l.b16 %v3919
    %v4238 = vunpack.c.h.b16 %v3919
    %v4239 = vunpack.c.l.b16 %v3920
    %v4240 = vunpack.c.h.b16 %v3920
    %v4241 = vunpack.c.l.b16 %v3921
    %v4242 = vunpack.c.h.b16 %v3921
    %v4243 = vunpack.c.l.b16 %v3922
    %v4244 = vunpack.c.h.b16 %v3922
    %v4245 = vunpack.c.l.b16 %v3923
    %v4246 = vunpack.c.h.b16 %v3923
    %v4247 = vunpack.c.l.b16 %v3924
    %v4248 = vunpack.c.h.b16 %v3924
    %v4249 = vunpack.c.l.b16 %v3925
    %v4250 = vunpack.c.h.b16 %v3925
    %v4251 = vunpack.c.l.b16 %v3926
    %v4252 = vunpack.c.h.b16 %v3926
    %v4253 = vunpack.c.l.b16 %v3927
    %v4254 = vunpack.c.h.b16 %v3927
    %v4255 = vunpack.c.l.b16 %v3928
    %v4256 = vunpack.c.h.b16 %v3928
    %v4257 = vunpack.c.l.b16 %v3929
    %v4258 = vunpack.c.h.b16 %v3929
    %v4259 = vunpack.c.l.b16 %v3930
    %v4260 = vunpack.c.h.b16 %v3930
    %v4261 = vunpack.c.l.b16 %v3931
    %v4262 = vunpack.c.h.b16 %v3931
    %v4263 = vunpack.c.l.b16 %v3932
    %v4264 = vunpack.c.h.b16 %v3932
    %v4265 = vunpack.c.l.b16 %v3933
    %v4266 = vunpack.c.h.b16 %v3933
    %v4267 = vunpack.c.l.b16 %v3934
    %v4268 = vunpack.c.h.b16 %v3934
    %v4269 = vunpack.c.l.b16 %v3935
    %v4270 = vunpack.c.h.b16 %v3935
    %v4271 = vunpack.c.l.b16 %v3936
    %v4272 = vunpack.c.h.b16 %v3936
    %v4273 = vunpack.c.l.b16 %v3937
    %v4274 = vunpack.c.h.b16 %v3937
    %v4275 = vunpack.c.l.b16 %v3938
    %v4276 = vunpack.c.h.b16 %v3938
    %v4277 = vunpack.c.l.b16 %v3939
    %v4278 = vunpack.c.h.b16 %v3939
    %v4279 = vunpack.c.l.b16 %v3940
    %v4280 = vunpack.c.h.b16 %v3940
    %v4281 = vunpack.c.l.b16 %v3941
    %v4282 = vunpack.c.h.b16 %v3941
    %v4283 = vunpack.c.l.b16 %v3942
    %v4284 = vunpack.c.h.b16 %v3942
    %v4285 = vunpack.c.l.b16 %v3943
    %v4286 = vunpack.c.h.b16 %v3943
    %v4287 = vunpack.c.l.b16 %v3944
    %v4288 = vunpack.c.h.b16 %v3944
    %v4289 = vunpack.c.l.b16 %v3945
    %v4290 = vunpack.c.h.b16 %v3945
    %v4291 = vunpack.c.l.b16 %v3946
    %v4292 = vunpack.c.h.b16 %v3946
    %v4293 = vunpack.c.l.b16 %v3947
    %v4294 = vunpack.c.h.b16 %v3947
    %v4295 = vunpack.c.l.b16 %v3948
    %v4296 = vunpack.c.h.b16 %v3948
    %v4297 = vunpack.c.l.b16 %v3949
    %v4298 = vunpack.c.h.b16 %v3949
    %v4299 = vunpack.c.l.b16 %v3950
    %v4300 = vunpack.c.h.b16 %v3950
    %v4301 = vunpack.c.l.b16 %v3951
    %v4302 = vunpack.c.h.b16 %v3951
    %v4303 = vunpack.c.l.b16 %v3952
    %v4304 = vunpack.c.h.b16 %v3952
    %v4305 = vunpack.c.l.b16 %v3953
    %v4306 = vunpack.c.h.b16 %v3953
    %v4307 = vunpack.c.l.b16 %v3954
    %v4308 = vunpack.c.h.b16 %v3954
    %v4309 = vunpack.c.l.b16 %v3955
    %v4310 = vunpack.c.h.b16 %v3955
    %v4311 = vunpack.c.l.b16 %v3956
    %v4312 = vunpack.c.h.b16 %v3956
    %v4313 = vunpack.c.l.b16 %v3957
    %v4314 = vunpack.c.h.b16 %v3957
    %v4315 = vunpack.c.l.b16 %v3958
    %v4316 = vunpack.c.h.b16 %v3958
    %v4317 = vunpack.c.l.b16 %v3959
    %v4318 = vunpack.c.h.b16 %v3959
    %v4319 = vunpack.c.l.b16 %v3960
    %v4320 = vunpack.c.h.b16 %v3960
    %v4321 = vunpack.c.l.b16 %v3961
    %v4322 = vunpack.c.h.b16 %v3961
    %v4323 = vunpack.c.l.b16 %v3962
    %v4324 = vunpack.c.h.b16 %v3962
    %v4325 = vunpack.c.l.b16 %v3963
    %v4326 = vunpack.c.h.b16 %v3963
    %v4327 = vunpack.c.l.b16 %v3964
    %v4328 = vunpack.c.h.b16 %v3964
    %v4329 = vunpack.c.l.b16 %v3965
    %v4330 = vunpack.c.h.b16 %v3965
    %v4331 = vunpack.c.l.b16 %v3966
    %v4332 = vunpack.c.h.b16 %v3966
    %v4333 = vunpack.c.l.b16 %v3967
    %v4334 = vunpack.c.h.b16 %v3967
    %v4335 = vunpack.c.l.b16 %v3968
    %v4336 = vunpack.c.h.b16 %v3968
    %v4337 = vunpack.c.l.b16 %v3969
    %v4338 = vunpack.c.h.b16 %v3969
    %v4339 = vunpack.c.l.b16 %v3970
    %v4340 = vunpack.c.h.b16 %v3970
    %v4341 = vunpack.c.l.b16 %v3971
    %v4342 = vunpack.c.h.b16 %v3971
    %v4343 = vunpack.c.l.b16 %v3972
    %v4344 = vunpack.c.h.b16 %v3972
    %v4345 = vunpack.c.l.b16 %v3973
    %v4346 = vunpack.c.h.b16 %v3973
    %v4347 = vunpack.c.l.b16 %v3974
    %v4348 = vunpack.c.h.b16 %v3974
    %v4349 = vunpack.c.l.b16 %v3975
    %v4350 = vunpack.c.h.b16 %v3975
    %v4351 = vunpack.c.l.b16 %v3976
    %v4352 = vunpack.c.h.b16 %v3976
    %v4353 = vunpack.c.l.b16 %v3977
    %v4354 = vunpack.c.h.b16 %v3977
    %v4355 = vunpack.c.l.b16 %v3978
    %v4356 = vunpack.c.h.b16 %v3978
    %v4357 = vunpack.c.l.b16 %v3979
    %v4358 = vunpack.c.h.b16 %v3979
    %v4359 = vunpack.c.l.b16 %v3980
    %v4360 = vunpack.c.h.b16 %v3980
    %v4361 = vunpack.c.l.b16 %v3981
    %v4362 = vunpack.c.h.b16 %v3981
    %v4363 = vunpack.c.l.b16 %v3982
    %v4364 = vunpack.c.h.b16 %v3982
    %v4365 = vunpack.c.l.b16 %v3983
    %v4366 = vunpack.c.h.b16 %v3983
    %v4367 = vunpack.c.l.b16 %v3984
    %v4368 = vunpack.c.h.b16 %v3984
    %v4369 = vunpack.c.l.b16 %v3985
    %v4370 = vunpack.c.h.b16 %v3985
    %v4371 = vunpack.c.l.b16 %v3986
    %v4372 = vunpack.c.h.b16 %v3986
    %v4373 = vunpack.c.l.b16 %v3987
    %v4374 = vunpack.c.h.b16 %v3987
    %v4375 = vunpack.c.l.b16 %v3988
    %v4376 = vunpack.c.h.b16 %v3988
    %v4377 = vunpack.c.l.b16 %v3989
    %v4378 = vunpack.c.h.b16 %v3989
    %v4379 = vunpack.c.l.b16 %v3990
    %v4380 = vunpack.c.h.b16 %v3990
    %v4381 = vunpack.c.l.b16 %v3991
    %v4382 = vunpack.c.h.b16 %v3991
    %v4383 = vunpack.c.l.b16 %v3992
    %v4384 = vunpack.c.h.b16 %v3992
    %v4385 = vunpack.c.l.b16 %v3993
    %v4386 = vunpack.c.h.b16 %v3993
    %v4387 = vunpack.c.l.b16 %v3994
    %v4388 = vunpack.c.h.b16 %v3994
    %v4389 = vunpack.c.l.b16 %v3995
    %v4390 = vunpack.c.h.b16 %v3995
    %v4391 = vunpack.c.l.b16 %v3996
    %v4392 = vunpack.c.h.b16 %v3996
    %v4393 = vunpack.c.l.b16 %v3997
    %v4394 = vunpack.c.h.b16 %v3997
    %v4395 = vunpack.c.l.b16 %v3998
    %v4396 = vunpack.c.h.b16 %v3998
    %v4397 = vunpack.c.l.b16 %v3999
    %v4398 = vunpack.c.h.b16 %v3999
    %v4399 = vunpack.c.l.b16 %v4000
    %v4400 = vunpack.c.h.b16 %v4000
    %v4401 = vunpack.c.l.b16 %v4001
    %v4402 = vunpack.c.h.b16 %v4001
    %v4403 = vunpack.c.l.b16 %v4002
    %v4404 = vunpack.c.h.b16 %v4002
    %v4405 = vunpack.c.l.b16 %v4003
    %v4406 = vunpack.c.h.b16 %v4003
    %v4407 = vunpack.c.l.b16 %v4004
    %v4408 = vunpack.c.h.b16 %v4004
    %v4409 = vunpack.c.l.b16 %v4005
    %v4410 = vunpack.c.h.b16 %v4005
    %v4411 = vunpack.c.l.b16 %v4006
    %v4412 = vunpack.c.h.b16 %v4006
    %v4413 = vpack.c.b16 %v4161, %v4157
    %v4414 = vpack.c.b16 %v4162, %v4158
    %v4415 = vpack.c.b16 %v4163, %v4159
    %v4416 = vpack.c.b16 %v4164, %v4160
    %v4417 = vpack.c.b16 %v4169, %v4165
    %v4418 = vpack.c.b16 %v4170, %v4166
    %v4419 = vpack.c.b16 %v4171, %v4167
    %v4420 = vpack.c.b16 %v4172, %v4168
    %v4421 = vpack.c.b16 %v4177, %v4173
    %v4422 = vpack.c.b16 %v4178, %v4174
    %v4423 = vpack.c.b16 %v4179, %v4175
    %v4424 = vpack.c.b16 %v4180, %v4176
    %v4425 = vpack.c.b16 %v4185, %v4181
    %v4426 = vpack.c.b16 %v4186, %v4182
    %v4427 = vpack.c.b16 %v4187, %v4183
    %v4428 = vpack.c.b16 %v4188, %v4184
    %v4429 = vpack.c.b16 %v4193, %v4189
    %v4430 = vpack.c.b16 %v4194, %v4190
    %v4431 = vpack.c.b16 %v4195, %v4191
    %v4432 = vpack.c.b16 %v4196, %v4192
    %v4433 = vpack.c.b16 %v4201, %v4197
    %v4434 = vpack.c.b16 %v4202, %v4198
    %v4435 = vpack.c.b16 %v4203, %v4199
    %v4436 = vpack.c.b16 %v4204, %v4200
    %v4437 = vpack.c.b16 %v4209, %v4205
    %v4438 = vpack.c.b16 %v4210, %v4206
    %v4439 = vpack.c.b16 %v4211, %v4207
    %v4440 = vpack.c.b16 %v4212, %v4208
    %v4441 = vpack.c.b16 %v4217, %v4213
    %v4442 = vpack.c.b16 %v4218, %v4214
    %v4443 = vpack.c.b16 %v4219, %v4215
    %v4444 = vpack.c.b16 %v4220, %v4216
    %v4445 = vpack.c.b16 %v4225, %v4221
    %v4446 = vpack.c.b16 %v4226, %v4222
    %v4447 = vpack.c.b16 %v4227, %v4223
    %v4448 = vpack.c.b16 %v4228, %v4224
    %v4449 = vpack.c.b16 %v4233, %v4229
    %v4450 = vpack.c.b16 %v4234, %v4230
    %v4451 = vpack.c.b16 %v4235, %v4231
    %v4452 = vpack.c.b16 %v4236, %v4232
    %v4453 = vpack.c.b16 %v4241, %v4237
    %v4454 = vpack.c.b16 %v4242, %v4238
    %v4455 = vpack.c.b16 %v4243, %v4239
    %v4456 = vpack.c.b16 %v4244, %v4240
    %v4457 = vpack.c.b16 %v4249, %v4245
    %v4458 = vpack.c.b16 %v4250, %v4246
    %v4459 = vpack.c.b16 %v4251, %v4247
    %v4460 = vpack.c.b16 %v4252, %v4248
    %v4461 = vpack.c.b16 %v4257, %v4253
    %v4462 = vpack.c.b16 %v4258, %v4254
    %v4463 = vpack.c.b16 %v4259, %v4255
    %v4464 = vpack.c.b16 %v4260, %v4256
    %v4465 = vpack.c.b16 %v4265, %v4261
    %v4466 = vpack.c.b16 %v4266, %v4262
    %v4467 = vpack.c.b16 %v4267, %v4263
    %v4468 = vpack.c.b16 %v4268, %v4264
    %v4469 = vpack.c.b16 %v4273, %v4269
    %v4470 = vpack.c.b16 %v4274, %v4270
    %v4471 = vpack.c.b16 %v4275, %v4271
    %v4472 = vpack.c.b16 %v4276, %v4272
    %v4473 = vpack.c.b16 %v4281, %v4277
    %v4474 = vpack.c.b16 %v4282, %v4278
    %v4475 = vpack.c.b16 %v4283, %v4279
    %v4476 = vpack.c.b16 %v4284, %v4280
    %v4477 = vpack.c.b16 %v4289, %v4285
    %v4478 = vpack.c.b16 %v4290, %v4286
    %v4479 = vpack.c.b16 %v4291, %v4287
    %v4480 = vpack.c.b16 %v4292, %v4288
    %v4481 = vpack.c.b16 %v4297, %v4293
    %v4482 = vpack.c.b16 %v4298, %v4294
    %v4483 = vpack.c.b16 %v4299, %v4295
    %v4484 = vpack.c.b16 %v4300, %v4296
    %v4485 = vpack.c.b16 %v4305, %v4301
    %v4486 = vpack.c.b16 %v4306, %v4302
    %v4487 = vpack.c.b16 %v4307, %v4303
    %v4488 = vpack.c.b16 %v4308, %v4304
    %v4489 = vpack.c.b16 %v4313, %v4309
    %v4490 = vpack.c.b16 %v4314, %v4310
    %v4491 = vpack.c.b16 %v4315, %v4311
    %v4492 = vpack.c.b16 %v4316, %v4312
    %v4493 = vpack.c.b16 %v4321, %v4317
    %v4494 = vpack.c.b16 %v4322, %v4318
    %v4495 = vpack.c.b16 %v4323, %v4319
    %v4496 = vpack.c.b16 %v4324, %v4320
    %v4497 = vpack.c.b16 %v4329, %v4325
    %v4498 = vpack.c.b16 %v4330, %v4326
    %v4499 = vpack.c.b16 %v4331, %v4327
    %v4500 = vpack.c.b16 %v4332, %v4328
    %v4501 = vpack.c.b16 %v4337, %v4333
    %v4502 = vpack.c.b16 %v4338, %v4334
    %v4503 = vpack.c.b16 %v4339, %v4335
    %v4504 = vpack.c.b16 %v4340, %v4336
    %v4505 = vpack.c.b16 %v4345, %v4341
    %v4506 = vpack.c.b16 %v4346, %v4342
    %v4507 = vpack.c.b16 %v4347, %v4343
    %v4508 = vpack.c.b16 %v4348, %v4344
    %v4509 = vpack.c.b16 %v4353, %v4349
    %v4510 = vpack.c.b16 %v4354, %v4350
    %v4511 = vpack.c.b16 %v4355, %v4351
    %v4512 = vpack.c.b16 %v4356, %v4352
    %v4513 = vpack.c.b16 %v4361, %v4357
    %v4514 = vpack.c.b16 %v4362, %v4358
    %v4515 = vpack.c.b16 %v4363, %v4359
    %v4516 = vpack.c.b16 %v4364, %v4360
    %v4517 = vpack.c.b16 %v4369, %v4365
    %v4518 = vpack.c.b16 %v4370, %v4366
    %v4519 = vpack.c.b16 %v4371, %v4367
    %v4520 = vpack.c.b16 %v4372, %v4368
    %v4521 = vpack.c.b16 %v4377, %v4373
    %v4522 = vpack.c.b16 %v4378, %v4374
    %v4523 = vpack.c.b16 %v4379, %v4375
    %v4524 = vpack.c.b16 %v4380, %v4376
    %v4525 = vpack.c.b16 %v4385, %v4381
    %v4526 = vpack.c.b16 %v4386, %v4382
    %v4527 = vpack.c.b16 %v4387, %v4383
    %v4528 = vpack.c.b16 %v4388, %v4384
    %v4529 = vpack.c.b16 %v4393, %v4389
    %v4530 = vpack.c.b16 %v4394, %v4390
    %v4531 = vpack.c.b16 %v4395, %v4391
    %v4532 = vpack.c.b16 %v4396, %v4392
    %v4533 = vpack.c.b16 %v4401, %v4397
    %v4534 = vpack.c.b16 %v4402, %v4398
    %v4535 = vpack.c.b16 %v4403, %v4399
    %v4536 = vpack.c.b16 %v4404, %v4400
    %v4537 = vpack.c.b16 %v4409, %v4405
    %v4538 = vpack.c.b16 %v4410, %v4406
    %v4539 = vpack.c.b16 %v4411, %v4407
    %v4540 = vpack.c.b16 %v4412, %v4408
    %4669 = vmatprep.subr.bf16.mxu0 %v4414
    %4670 = vmatpush1.bf16.msra.mxu0 %v4413
    %4671 = vmatprep.subr.bf16.mxu0 %v4418
    %4672 = vmatpush1.bf16.msra.mxu0 %v4417
    %4673 = vmatprep.subr.bf16.mxu0 %v4422
    %4674 = vmatpush1.bf16.msra.mxu0 %v4421
    %4675 = vmatprep.subr.bf16.mxu0 %v4426
    %4676 = vmatpush1.bf16.msra.mxu0 %v4425
    %4677 = vmatprep.subr.bf16.mxu0 %v4430
    %4678 = vmatpush1.bf16.msra.mxu0 %v4429
    %4679 = vmatprep.subr.bf16.mxu0 %v4434
    %4680 = vmatpush1.bf16.msra.mxu0 %v4433
    %4681 = vmatprep.subr.bf16.mxu0 %v4438
    %4682 = vmatpush1.bf16.msra.mxu0 %v4437
    %4683 = vmatprep.subr.bf16.mxu0 %v4442
    %4684 = vmatpush1.bf16.msra.mxu0 %v4441
    %4685 = vmatprep.subr.bf16.mxu0 %v4446
    %4686 = vmatpush1.bf16.msra.mxu0 %v4445
    %4687 = vmatprep.subr.bf16.mxu0 %v4450
    %4688 = vmatpush1.bf16.msra.mxu0 %v4449
    %4689 = vmatprep.subr.bf16.mxu0 %v4454
    %4690 = vmatpush1.bf16.msra.mxu0 %v4453
    %4691 = vmatprep.subr.bf16.mxu0 %v4458
    %4692 = vmatpush1.bf16.msra.mxu0 %v4457
    %4693 = vmatprep.subr.bf16.mxu0 %v4462
    %4694 = vmatpush1.bf16.msra.mxu0 %v4461
    %4695 = vmatprep.subr.bf16.mxu0 %v4466
    %4696 = vmatpush1.bf16.msra.mxu0 %v4465
    %4697 = vmatprep.subr.bf16.mxu0 %v4470
    %4698 = vmatpush1.bf16.msra.mxu0 %v4469
    %4699 = vmatprep.subr.bf16.mxu0 %v4474
    %4700 = vmatpush1.bf16.msra.mxu0 %v4473
    %4701 = vmatprep.mubr.bf16.mxu0 %v88
    %4702 = vmatmul.mubr.bf16.gmra.mrb[0].mxu0 %v87
    %v4703 = vpop.f32.mrb[0].mxu0
    %v4704 = vadd.f32 %v4012, %v4703
    %v4705 = vpop.f32.mrb[0].mxu0
    %v4706 = vadd.f32 %v4016, %v4705
    %v4707 = vpop.f32.mrb[0].mxu0
    %v4708 = vpop.f32.mrb[0].mxu0
    %4709 = vdwg.mxu0
    %4710 = vmatprep.subr.bf16.mxu0 %v4478
    %4711 = vmatpush1.bf16.msra.mxu0 %v4477
    %4712 = vmatprep.subr.bf16.mxu0 %v4482
    %4713 = vmatpush1.bf16.msra.mxu0 %v4481
    %4714 = vmatprep.subr.bf16.mxu0 %v4486
    %4715 = vmatpush1.bf16.msra.mxu0 %v4485
    %4716 = vmatprep.subr.bf16.mxu0 %v4490
    %4717 = vmatpush1.bf16.msra.mxu0 %v4489
    %4718 = vmatprep.subr.bf16.mxu0 %v4494
    %4719 = vmatpush1.bf16.msra.mxu0 %v4493
    %4720 = vmatprep.subr.bf16.mxu0 %v4498
    %4721 = vmatpush1.bf16.msra.mxu0 %v4497
    %4722 = vmatprep.subr.bf16.mxu0 %v4502
    %4723 = vmatpush1.bf16.msra.mxu0 %v4501
    %4724 = vmatprep.subr.bf16.mxu0 %v4506
    %4725 = vmatpush1.bf16.msra.mxu0 %v4505
    %4726 = vmatprep.subr.bf16.mxu0 %v4510
    %4727 = vmatpush1.bf16.msra.mxu0 %v4509
    %4728 = vmatprep.subr.bf16.mxu0 %v4514
    %4729 = vmatpush1.bf16.msra.mxu0 %v4513
    %4730 = vmatprep.subr.bf16.mxu0 %v4518
    %4731 = vmatpush1.bf16.msra.mxu0 %v4517
    %4732 = vmatprep.subr.bf16.mxu0 %v4522
    %4733 = vmatpush1.bf16.msra.mxu0 %v4521
    %4734 = vmatprep.subr.bf16.mxu0 %v4526
    %4735 = vmatpush1.bf16.msra.mxu0 %v4525
    %4736 = vmatprep.subr.bf16.mxu0 %v4530
    %4737 = vmatpush1.bf16.msra.mxu0 %v4529
    %4738 = vmatprep.subr.bf16.mxu0 %v4534
    %4739 = vmatpush1.bf16.msra.mxu0 %v4533
    %4740 = vmatprep.subr.bf16.mxu0 %v4538
    %4741 = vmatpush1.bf16.msra.mxu0 %v4537
    %4742 = vmatprep.mubr.bf16.mxu0 %v90
    %4743 = vmatmul.mubr.bf16.gmra.mrb[0].mxu0 %v89
    %v4744 = vpop.f32.mrb[0].mxu0
    %v4745 = vadd.f32 %v4704, %v4744
    %v4746 = vpop.f32.mrb[0].mxu0
    %v4747 = vadd.f32 %v4706, %v4746
    %v4748 = vpop.f32.mrb[0].mxu0
    %v4749 = vpop.f32.mrb[0].mxu0
    %4750 = vdwg.mxu0
    %4751 = vmatprep.subr.bf16.mxu0 %v4416
    %4752 = vmatpush1.bf16.msra.mxu0 %v4415
    %4753 = vmatprep.subr.bf16.mxu0 %v4420
    %4754 = vmatpush1.bf16.msra.mxu0 %v4419
    %4755 = vmatprep.subr.bf16.mxu0 %v4424
    %4756 = vmatpush1.bf16.msra.mxu0 %v4423
    %4757 = vmatprep.subr.bf16.mxu0 %v4428
    %4758 = vmatpush1.bf16.msra.mxu0 %v4427
    %4759 = vmatprep.subr.bf16.mxu0 %v4432
    %4760 = vmatpush1.bf16.msra.mxu0 %v4431
    %4761 = vmatprep.subr.bf16.mxu0 %v4436
    %4762 = vmatpush1.bf16.msra.mxu0 %v4435
    %4763 = vmatprep.subr.bf16.mxu0 %v4440
    %4764 = vmatpush1.bf16.msra.mxu0 %v4439
    %4765 = vmatprep.subr.bf16.mxu0 %v4444
    %4766 = vmatpush1.bf16.msra.mxu0 %v4443
    %4767 = vmatprep.subr.bf16.mxu0 %v4448
    %4768 = vmatpush1.bf16.msra.mxu0 %v4447
    %4769 = vmatprep.subr.bf16.mxu0 %v4452
    %4770 = vmatpush1.bf16.msra.mxu0 %v4451
    %4771 = vmatprep.subr.bf16.mxu0 %v4456
    %4772 = vmatpush1.bf16.msra.mxu0 %v4455
    %4773 = vmatprep.subr.bf16.mxu0 %v4460
    %4774 = vmatpush1.bf16.msra.mxu0 %v4459
    %4775 = vmatprep.subr.bf16.mxu0 %v4464
    %4776 = vmatpush1.bf16.msra.mxu0 %v4463
    %4777 = vmatprep.subr.bf16.mxu0 %v4468
    %4778 = vmatpush1.bf16.msra.mxu0 %v4467
    %4779 = vmatprep.subr.bf16.mxu0 %v4472
    %4780 = vmatpush1.bf16.msra.mxu0 %v4471
    %4781 = vmatprep.subr.bf16.mxu0 %v4476
    %4782 = vmatpush1.bf16.msra.mxu0 %v4475
    %4783 = vmatprep.mubr.bf16.mxu0 %v88
    %4784 = vmatmul.mubr.bf16.gmra.mrb[0].mxu0 %v87
    %v4785 = vpop.f32.mrb[0].mxu0
    %v4786 = vadd.f32 %v4020, %v4785
    %v4787 = vpop.f32.mrb[0].mxu0
    %v4788 = vadd.f32 %v4024, %v4787
    %v4789 = vpop.f32.mrb[0].mxu0
    %v4790 = vpop.f32.mrb[0].mxu0
    %4791 = vdwg.mxu0
    %4792 = vmatprep.subr.bf16.mxu0 %v4480
    %4793 = vmatpush1.bf16.msra.mxu0 %v4479
    %4794 = vmatprep.subr.bf16.mxu0 %v4484
    %4795 = vmatpush1.bf16.msra.mxu0 %v4483
    %4796 = vmatprep.subr.bf16.mxu0 %v4488
    %4797 = vmatpush1.bf16.msra.mxu0 %v4487
    %4798 = vmatprep.subr.bf16.mxu0 %v4492
    %4799 = vmatpush1.bf16.msra.mxu0 %v4491
    %4800 = vmatprep.subr.bf16.mxu0 %v4496
    %4801 = vmatpush1.bf16.msra.mxu0 %v4495
    %4802 = vmatprep.subr.bf16.mxu0 %v4500
    %4803 = vmatpush1.bf16.msra.mxu0 %v4499
    %4804 = vmatprep.subr.bf16.mxu0 %v4504
    %4805 = vmatpush1.bf16.msra.mxu0 %v4503
    %4806 = vmatprep.subr.bf16.mxu0 %v4508
    %4807 = vmatpush1.bf16.msra.mxu0 %v4507
    %4808 = vmatprep.subr.bf16.mxu0 %v4512
    %4809 = vmatpush1.bf16.msra.mxu0 %v4511
    %4810 = vmatprep.subr.bf16.mxu0 %v4516
    %4811 = vmatpush1.bf16.msra.mxu0 %v4515
    %4812 = vmatprep.subr.bf16.mxu0 %v4520
    %4813 = vmatpush1.bf16.msra.mxu0 %v4519
    %4814 = vmatprep.subr.bf16.mxu0 %v4524
    %4815 = vmatpush1.bf16.msra.mxu0 %v4523
    %4816 = vmatprep.subr.bf16.mxu0 %v4528
    %4817 = vmatpush1.bf16.msra.mxu0 %v4527
    %4818 = vmatprep.subr.bf16.mxu0 %v4532
    %4819 = vmatpush1.bf16.msra.mxu0 %v4531
    %4820 = vmatprep.subr.bf16.mxu0 %v4536
    %4821 = vmatpush1.bf16.msra.mxu0 %v4535
    %4822 = vmatprep.subr.bf16.mxu0 %v4540
    %4823 = vmatpush1.bf16.msra.mxu0 %v4539
    %4824 = vmatprep.mubr.bf16.mxu0 %v90
    %4825 = vmatmul.mubr.bf16.gmra.mrb[0].mxu0 %v89
    %v4826 = vpop.f32.mrb[0].mxu0
    %v4827 = vadd.f32 %v4786, %v4826
    %v4828 = vpop.f32.mrb[0].mxu0
    %v4829 = vadd.f32 %v4788, %v4828
    %v4830 = vpop.f32.mrb[0].mxu0
    %v4831 = vpop.f32.mrb[0].mxu0
    %4832 = vdwg.mxu0
    %v4833 = vmax.f32 %v4745, 0.0
    %v4834 = vmax.f32 %v4747, 0.0
    %v4835 = vmax.f32 %v4827, 0.0
    %v4836 = vmax.f32 %v4829, 0.0
    %v4837 = vpack.c.bf16 %v4833, %v4833
    %v4838 = vpack.c.bf16 %v4834, %v4834
    %v4839 = vpack.c.bf16 %v4835, %v4835
    %v4840 = vpack.c.bf16 %v4836, %v4836
    %v4841 = vld [vmem:[#allocation8 + $0x800] sm:$0xff]
    %v4842 = vld [vmem:[#allocation8 + $0x808] sm:$0xff]
    %v4843 = vld [vmem:[#allocation8 + $0x810] sm:$0xff]
    %v4844 = vld [vmem:[#allocation8 + $0x818] sm:$0xff]
    %v4845 = vld [vmem:[#allocation8 + $0x820] sm:$0xff]
    %v4846 = vld [vmem:[#allocation8 + $0x828] sm:$0xff]
    %v4847 = vld [vmem:[#allocation8 + $0x830] sm:$0xff]
    %v4848 = vld [vmem:[#allocation8 + $0x838] sm:$0xff]
    %v4849 = vld [vmem:[#allocation8 + $0x840] sm:$0xff]
    %v4850 = vld [vmem:[#allocation8 + $0x848] sm:$0xff]
    %v4851 = vld [vmem:[#allocation8 + $0x850] sm:$0xff]
    %v4852 = vld [vmem:[#allocation8 + $0x858] sm:$0xff]
    %v4853 = vld [vmem:[#allocation8 + $0x860] sm:$0xff]
    %v4854 = vld [vmem:[#allocation8 + $0x868] sm:$0xff]
    %v4855 = vld [vmem:[#allocation8 + $0x870] sm:$0xff]
    %v4856 = vld [vmem:[#allocation8 + $0x878] sm:$0xff]
    %v4857 = vld [vmem:[#allocation8 + $0x880] sm:$0xff]
    %v4858 = vld [vmem:[#allocation8 + $0x888] sm:$0xff]
    %v4859 = vld [vmem:[#allocation8 + $0x890] sm:$0xff]
    %v4860 = vld [vmem:[#allocation8 + $0x898] sm:$0xff]
    %v4861 = vld [vmem:[#allocation8 + $0x8a0] sm:$0xff]
    %v4862 = vld [vmem:[#allocation8 + $0x8a8] sm:$0xff]
    %v4863 = vld [vmem:[#allocation8 + $0x8b0] sm:$0xff]
    %v4864 = vld [vmem:[#allocation8 + $0x8b8] sm:$0xff]
    %v4865 = vld [vmem:[#allocation8 + $0x8c0] sm:$0xff]
    %v4866 = vld [vmem:[#allocation8 + $0x8c8] sm:$0xff]
    %v4867 = vld [vmem:[#allocation8 + $0x8d0] sm:$0xff]
    %v4868 = vld [vmem:[#allocation8 + $0x8d8] sm:$0xff]
    %v4869 = vld [vmem:[#allocation8 + $0x8e0] sm:$0xff]
    %v4870 = vld [vmem:[#allocation8 + $0x8e8] sm:$0xff]
    %v4871 = vld [vmem:[#allocation8 + $0x8f0] sm:$0xff]
    %v4872 = vld [vmem:[#allocation8 + $0x8f8] sm:$0xff]
    %v4873 = vld [vmem:[#allocation8 + $0x900] sm:$0xff]
    %v4874 = vld [vmem:[#allocation8 + $0x908] sm:$0xff]
    %v4875 = vld [vmem:[#allocation8 + $0x910] sm:$0xff]
    %v4876 = vld [vmem:[#allocation8 + $0x918] sm:$0xff]
    %v4877 = vld [vmem:[#allocation8 + $0x920] sm:$0xff]
    %v4878 = vld [vmem:[#allocation8 + $0x928] sm:$0xff]
    %v4879 = vld [vmem:[#allocation8 + $0x930] sm:$0xff]
    %v4880 = vld [vmem:[#allocation8 + $0x938] sm:$0xff]
    %v4881 = vld [vmem:[#allocation8 + $0x940] sm:$0xff]
    %v4882 = vld [vmem:[#allocation8 + $0x948] sm:$0xff]
    %v4883 = vld [vmem:[#allocation8 + $0x950] sm:$0xff]
    %v4884 = vld [vmem:[#allocation8 + $0x958] sm:$0xff]
    %v4885 = vld [vmem:[#allocation8 + $0x960] sm:$0xff]
    %v4886 = vld [vmem:[#allocation8 + $0x968] sm:$0xff]
    %v4887 = vld [vmem:[#allocation8 + $0x970] sm:$0xff]
    %v4888 = vld [vmem:[#allocation8 + $0x978] sm:$0xff]
    %v4889 = vld [vmem:[#allocation8 + $0x980] sm:$0xff]
    %v4890 = vld [vmem:[#allocation8 + $0x988] sm:$0xff]
    %v4891 = vld [vmem:[#allocation8 + $0x990] sm:$0xff]
    %v4892 = vld [vmem:[#allocation8 + $0x998] sm:$0xff]
    %v4893 = vld [vmem:[#allocation8 + $0x9a0] sm:$0xff]
    %v4894 = vld [vmem:[#allocation8 + $0x9a8] sm:$0xff]
    %v4895 = vld [vmem:[#allocation8 + $0x9b0] sm:$0xff]
    %v4896 = vld [vmem:[#allocation8 + $0x9b8] sm:$0xff]
    %v4897 = vld [vmem:[#allocation8 + $0x9c0] sm:$0xff]
    %v4898 = vld [vmem:[#allocation8 + $0x9c8] sm:$0xff]
    %v4899 = vld [vmem:[#allocation8 + $0x9d0] sm:$0xff]
    %v4900 = vld [vmem:[#allocation8 + $0x9d8] sm:$0xff]
    %v4901 = vld [vmem:[#allocation8 + $0x9e0] sm:$0xff]
    %v4902 = vld [vmem:[#allocation8 + $0x9e8] sm:$0xff]
    %v4903 = vld [vmem:[#allocation8 + $0x9f0] sm:$0xff]
    %v4904 = vld [vmem:[#allocation8 + $0x9f8] sm:$0xff]
    %v4905 = vld [vmem:[#allocation8 + $0xa00] sm:$0xff]
    %v4906 = vld [vmem:[#allocation8 + $0xa08] sm:$0xff]
    %v4907 = vld [vmem:[#allocation8 + $0xa10] sm:$0xff]
    %v4908 = vld [vmem:[#allocation8 + $0xa18] sm:$0xff]
    %v4909 = vld [vmem:[#allocation8 + $0xa20] sm:$0xff]
    %v4910 = vld [vmem:[#allocation8 + $0xa28] sm:$0xff]
    %v4911 = vld [vmem:[#allocation8 + $0xa30] sm:$0xff]
    %v4912 = vld [vmem:[#allocation8 + $0xa38] sm:$0xff]
    %v4913 = vld [vmem:[#allocation8 + $0xa40] sm:$0xff]
    %v4914 = vld [vmem:[#allocation8 + $0xa48] sm:$0xff]
    %v4915 = vld [vmem:[#allocation8 + $0xa50] sm:$0xff]
    %v4916 = vld [vmem:[#allocation8 + $0xa58] sm:$0xff]
    %v4917 = vld [vmem:[#allocation8 + $0xa60] sm:$0xff]
    %v4918 = vld [vmem:[#allocation8 + $0xa68] sm:$0xff]
    %v4919 = vld [vmem:[#allocation8 + $0xa70] sm:$0xff]
    %v4920 = vld [vmem:[#allocation8 + $0xa78] sm:$0xff]
    %v4921 = vld [vmem:[#allocation8 + $0xa80] sm:$0xff]
    %v4922 = vld [vmem:[#allocation8 + $0xa88] sm:$0xff]
    %v4923 = vld [vmem:[#allocation8 + $0xa90] sm:$0xff]
    %v4924 = vld [vmem:[#allocation8 + $0xa98] sm:$0xff]
    %v4925 = vld [vmem:[#allocation8 + $0xaa0] sm:$0xff]
    %v4926 = vld [vmem:[#allocation8 + $0xaa8] sm:$0xff]
    %v4927 = vld [vmem:[#allocation8 + $0xab0] sm:$0xff]
    %v4928 = vld [vmem:[#allocation8 + $0xab8] sm:$0xff]
    %v4929 = vld [vmem:[#allocation8 + $0xac0] sm:$0xff]
    %v4930 = vld [vmem:[#allocation8 + $0xac8] sm:$0xff]
    %v4931 = vld [vmem:[#allocation8 + $0xad0] sm:$0xff]
    %v4932 = vld [vmem:[#allocation8 + $0xad8] sm:$0xff]
    %v4933 = vld [vmem:[#allocation8 + $0xae0] sm:$0xff]
    %v4934 = vld [vmem:[#allocation8 + $0xae8] sm:$0xff]
    %v4935 = vld [vmem:[#allocation8 + $0xaf0] sm:$0xff]
    %v4936 = vld [vmem:[#allocation8 + $0xaf8] sm:$0xff]
    %v4937 = vld [vmem:[#allocation8 + $0xb00] sm:$0xff]
    %v4938 = vld [vmem:[#allocation8 + $0xb08] sm:$0xff]
    %v4939 = vld [vmem:[#allocation8 + $0xb10] sm:$0xff]
    %v4940 = vld [vmem:[#allocation8 + $0xb18] sm:$0xff]
    %v4941 = vld [vmem:[#allocation8 + $0xb20] sm:$0xff]
    %v4942 = vld [vmem:[#allocation8 + $0xb28] sm:$0xff]
    %v4943 = vld [vmem:[#allocation8 + $0xb30] sm:$0xff]
    %v4944 = vld [vmem:[#allocation8 + $0xb38] sm:$0xff]
    %v4945 = vld [vmem:[#allocation8 + $0xb40] sm:$0xff]
    %v4946 = vld [vmem:[#allocation8 + $0xb48] sm:$0xff]
    %v4947 = vld [vmem:[#allocation8 + $0xb50] sm:$0xff]
    %v4948 = vld [vmem:[#allocation8 + $0xb58] sm:$0xff]
    %v4949 = vld [vmem:[#allocation8 + $0xb60] sm:$0xff]
    %v4950 = vld [vmem:[#allocation8 + $0xb68] sm:$0xff]
    %v4951 = vld [vmem:[#allocation8 + $0xb70] sm:$0xff]
    %v4952 = vld [vmem:[#allocation8 + $0xb78] sm:$0xff]
    %v4953 = vld [vmem:[#allocation8 + $0xb80] sm:$0xff]
    %v4954 = vld [vmem:[#allocation8 + $0xb88] sm:$0xff]
    %v4955 = vld [vmem:[#allocation8 + $0xb90] sm:$0xff]
    %v4956 = vld [vmem:[#allocation8 + $0xb98] sm:$0xff]
    %v4957 = vld [vmem:[#allocation8 + $0xba0] sm:$0xff]
    %v4958 = vld [vmem:[#allocation8 + $0xba8] sm:$0xff]
    %v4959 = vld [vmem:[#allocation8 + $0xbb0] sm:$0xff]
    %v4960 = vld [vmem:[#allocation8 + $0xbb8] sm:$0xff]
    %v4961 = vld [vmem:[#allocation8 + $0xbc0] sm:$0xff]
    %v4962 = vld [vmem:[#allocation8 + $0xbc8] sm:$0xff]
    %v4963 = vld [vmem:[#allocation8 + $0xbd0] sm:$0xff]
    %v4964 = vld [vmem:[#allocation8 + $0xbd8] sm:$0xff]
    %v4965 = vld [vmem:[#allocation8 + $0xbe0] sm:$0xff]
    %v4966 = vld [vmem:[#allocation8 + $0xbe8] sm:$0xff]
    %v4967 = vld [vmem:[#allocation8 + $0xbf0] sm:$0xff]
    %v4968 = vld [vmem:[#allocation8 + $0xbf8] sm:$0xff]
    %v5097 = vunpack.c.l.b16 %v4841
    %v5098 = vunpack.c.h.b16 %v4841
    %v5099 = vunpack.c.l.b16 %v4842
    %v5100 = vunpack.c.h.b16 %v4842
    %v5101 = vunpack.c.l.b16 %v4843
    %v5102 = vunpack.c.h.b16 %v4843
    %v5103 = vunpack.c.l.b16 %v4844
    %v5104 = vunpack.c.h.b16 %v4844
    %v5105 = vunpack.c.l.b16 %v4845
    %v5106 = vunpack.c.h.b16 %v4845
    %v5107 = vunpack.c.l.b16 %v4846
    %v5108 = vunpack.c.h.b16 %v4846
    %v5109 = vunpack.c.l.b16 %v4847
    %v5110 = vunpack.c.h.b16 %v4847
    %v5111 = vunpack.c.l.b16 %v4848
    %v5112 = vunpack.c.h.b16 %v4848
    %v5113 = vunpack.c.l.b16 %v4849
    %v5114 = vunpack.c.h.b16 %v4849
    %v5115 = vunpack.c.l.b16 %v4850
    %v5116 = vunpack.c.h.b16 %v4850
    %v5117 = vunpack.c.l.b16 %v4851
    %v5118 = vunpack.c.h.b16 %v4851
    %v5119 = vunpack.c.l.b16 %v4852
    %v5120 = vunpack.c.h.b16 %v4852
    %v5121 = vunpack.c.l.b16 %v4853
    %v5122 = vunpack.c.h.b16 %v4853
    %v5123 = vunpack.c.l.b16 %v4854
    %v5124 = vunpack.c.h.b16 %v4854
    %v5125 = vunpack.c.l.b16 %v4855
    %v5126 = vunpack.c.h.b16 %v4855
    %v5127 = vunpack.c.l.b16 %v4856
    %v5128 = vunpack.c.h.b16 %v4856
    %v5129 = vunpack.c.l.b16 %v4857
    %v5130 = vunpack.c.h.b16 %v4857
    %v5131 = vunpack.c.l.b16 %v4858
    %v5132 = vunpack.c.h.b16 %v4858
    %v5133 = vunpack.c.l.b16 %v4859
    %v5134 = vunpack.c.h.b16 %v4859
    %v5135 = vunpack.c.l.b16 %v4860
    %v5136 = vunpack.c.h.b16 %v4860
    %v5137 = vunpack.c.l.b16 %v4861
    %v5138 = vunpack.c.h.b16 %v4861
    %v5139 = vunpack.c.l.b16 %v4862
    %v5140 = vunpack.c.h.b16 %v4862
    %v5141 = vunpack.c.l.b16 %v4863
    %v5142 = vunpack.c.h.b16 %v4863
    %v5143 = vunpack.c.l.b16 %v4864
    %v5144 = vunpack.c.h.b16 %v4864
    %v5145 = vunpack.c.l.b16 %v4865
    %v5146 = vunpack.c.h.b16 %v4865
    %v5147 = vunpack.c.l.b16 %v4866
    %v5148 = vunpack.c.h.b16 %v4866
    %v5149 = vunpack.c.l.b16 %v4867
    %v5150 = vunpack.c.h.b16 %v4867
    %v5151 = vunpack.c.l.b16 %v4868
    %v5152 = vunpack.c.h.b16 %v4868
    %v5153 = vunpack.c.l.b16 %v4869
    %v5154 = vunpack.c.h.b16 %v4869
    %v5155 = vunpack.c.l.b16 %v4870
    %v5156 = vunpack.c.h.b16 %v4870
    %v5157 = vunpack.c.l.b16 %v4871
    %v5158 = vunpack.c.h.b16 %v4871
    %v5159 = vunpack.c.l.b16 %v4872
    %v5160 = vunpack.c.h.b16 %v4872
    %v5161 = vunpack.c.l.b16 %v4873
    %v5162 = vunpack.c.h.b16 %v4873
    %v5163 = vunpack.c.l.b16 %v4874
    %v5164 = vunpack.c.h.b16 %v4874
    %v5165 = vunpack.c.l.b16 %v4875
    %v5166 = vunpack.c.h.b16 %v4875
    %v5167 = vunpack.c.l.b16 %v4876
    %v5168 = vunpack.c.h.b16 %v4876
    %v5169 = vunpack.c.l.b16 %v4877
    %v5170 = vunpack.c.h.b16 %v4877
    %v5171 = vunpack.c.l.b16 %v4878
    %v5172 = vunpack.c.h.b16 %v4878
    %v5173 = vunpack.c.l.b16 %v4879
    %v5174 = vunpack.c.h.b16 %v4879
    %v5175 = vunpack.c.l.b16 %v4880
    %v5176 = vunpack.c.h.b16 %v4880
    %v5177 = vunpack.c.l.b16 %v4881
    %v5178 = vunpack.c.h.b16 %v4881
    %v5179 = vunpack.c.l.b16 %v4882
    %v5180 = vunpack.c.h.b16 %v4882
    %v5181 = vunpack.c.l.b16 %v4883
    %v5182 = vunpack.c.h.b16 %v4883
    %v5183 = vunpack.c.l.b16 %v4884
    %v5184 = vunpack.c.h.b16 %v4884
    %v5185 = vunpack.c.l.b16 %v4885
    %v5186 = vunpack.c.h.b16 %v4885
    %v5187 = vunpack.c.l.b16 %v4886
    %v5188 = vunpack.c.h.b16 %v4886
    %v5189 = vunpack.c.l.b16 %v4887
    %v5190 = vunpack.c.h.b16 %v4887
    %v5191 = vunpack.c.l.b16 %v4888
    %v5192 = vunpack.c.h.b16 %v4888
    %v5193 = vunpack.c.l.b16 %v4889
    %v5194 = vunpack.c.h.b16 %v4889
    %v5195 = vunpack.c.l.b16 %v4890
    %v5196 = vunpack.c.h.b16 %v4890
    %v5197 = vunpack.c.l.b16 %v4891
    %v5198 = vunpack.c.h.b16 %v4891
    %v5199 = vunpack.c.l.b16 %v4892
    %v5200 = vunpack.c.h.b16 %v4892
    %v5201 = vunpack.c.l.b16 %v4893
    %v5202 = vunpack.c.h.b16 %v4893
    %v5203 = vunpack.c.l.b16 %v4894
    %v5204 = vunpack.c.h.b16 %v4894
    %v5205 = vunpack.c.l.b16 %v4895
    %v5206 = vunpack.c.h.b16 %v4895
    %v5207 = vunpack.c.l.b16 %v4896
    %v5208 = vunpack.c.h.b16 %v4896
    %v5209 = vunpack.c.l.b16 %v4897
    %v5210 = vunpack.c.h.b16 %v4897
    %v5211 = vunpack.c.l.b16 %v4898
    %v5212 = vunpack.c.h.b16 %v4898
    %v5213 = vunpack.c.l.b16 %v4899
    %v5214 = vunpack.c.h.b16 %v4899
    %v5215 = vunpack.c.l.b16 %v4900
    %v5216 = vunpack.c.h.b16 %v4900
    %v5217 = vunpack.c.l.b16 %v4901
    %v5218 = vunpack.c.h.b16 %v4901
    %v5219 = vunpack.c.l.b16 %v4902
    %v5220 = vunpack.c.h.b16 %v4902
    %v5221 = vunpack.c.l.b16 %v4903
    %v5222 = vunpack.c.h.b16 %v4903
    %v5223 = vunpack.c.l.b16 %v4904
    %v5224 = vunpack.c.h.b16 %v4904
    %v5225 = vunpack.c.l.b16 %v4905
    %v5226 = vunpack.c.h.b16 %v4905
    %v5227 = vunpack.c.l.b16 %v4906
    %v5228 = vunpack.c.h.b16 %v4906
    %v5229 = vunpack.c.l.b16 %v4907
    %v5230 = vunpack.c.h.b16 %v4907
    %v5231 = vunpack.c.l.b16 %v4908
    %v5232 = vunpack.c.h.b16 %v4908
    %v5233 = vunpack.c.l.b16 %v4909
    %v5234 = vunpack.c.h.b16 %v4909
    %v5235 = vunpack.c.l.b16 %v4910
    %v5236 = vunpack.c.h.b16 %v4910
    %v5237 = vunpack.c.l.b16 %v4911
    %v5238 = vunpack.c.h.b16 %v4911
    %v5239 = vunpack.c.l.b16 %v4912
    %v5240 = vunpack.c.h.b16 %v4912
    %v5241 = vunpack.c.l.b16 %v4913
    %v5242 = vunpack.c.h.b16 %v4913
    %v5243 = vunpack.c.l.b16 %v4914
    %v5244 = vunpack.c.h.b16 %v4914
    %v5245 = vunpack.c.l.b16 %v4915
    %v5246 = vunpack.c.h.b16 %v4915
    %v5247 = vunpack.c.l.b16 %v4916
    %v5248 = vunpack.c.h.b16 %v4916
    %v5249 = vunpack.c.l.b16 %v4917
    %v5250 = vunpack.c.h.b16 %v4917
    %v5251 = vunpack.c.l.b16 %v4918
    %v5252 = vunpack.c.h.b16 %v4918
    %v5253 = vunpack.c.l.b16 %v4919
    %v5254 = vunpack.c.h.b16 %v4919
    %v5255 = vunpack.c.l.b16 %v4920
    %v5256 = vunpack.c.h.b16 %v4920
    %v5257 = vunpack.c.l.b16 %v4921
    %v5258 = vunpack.c.h.b16 %v4921
    %v5259 = vunpack.c.l.b16 %v4922
    %v5260 = vunpack.c.h.b16 %v4922
    %v5261 = vunpack.c.l.b16 %v4923
    %v5262 = vunpack.c.h.b16 %v4923
    %v5263 = vunpack.c.l.b16 %v4924
    %v5264 = vunpack.c.h.b16 %v4924
    %v5265 = vunpack.c.l.b16 %v4925
    %v5266 = vunpack.c.h.b16 %v4925
    %v5267 = vunpack.c.l.b16 %v4926
    %v5268 = vunpack.c.h.b16 %v4926
    %v5269 = vunpack.c.l.b16 %v4927
    %v5270 = vunpack.c.h.b16 %v4927
    %v5271 = vunpack.c.l.b16 %v4928
    %v5272 = vunpack.c.h.b16 %v4928
    %v5273 = vunpack.c.l.b16 %v4929
    %v5274 = vunpack.c.h.b16 %v4929
    %v5275 = vunpack.c.l.b16 %v4930
    %v5276 = vunpack.c.h.b16 %v4930
    %v5277 = vunpack.c.l.b16 %v4931
    %v5278 = vunpack.c.h.b16 %v4931
    %v5279 = vunpack.c.l.b16 %v4932
    %v5280 = vunpack.c.h.b16 %v4932
    %v5281 = vunpack.c.l.b16 %v4933
    %v5282 = vunpack.c.h.b16 %v4933
    %v5283 = vunpack.c.l.b16 %v4934
    %v5284 = vunpack.c.h.b16 %v4934
    %v5285 = vunpack.c.l.b16 %v4935
    %v5286 = vunpack.c.h.b16 %v4935
    %v5287 = vunpack.c.l.b16 %v4936
    %v5288 = vunpack.c.h.b16 %v4936
    %v5289 = vunpack.c.l.b16 %v4937
    %v5290 = vunpack.c.h.b16 %v4937
    %v5291 = vunpack.c.l.b16 %v4938
    %v5292 = vunpack.c.h.b16 %v4938
    %v5293 = vunpack.c.l.b16 %v4939
    %v5294 = vunpack.c.h.b16 %v4939
    %v5295 = vunpack.c.l.b16 %v4940
    %v5296 = vunpack.c.h.b16 %v4940
    %v5297 = vunpack.c.l.b16 %v4941
    %v5298 = vunpack.c.h.b16 %v4941
    %v5299 = vunpack.c.l.b16 %v4942
    %v5300 = vunpack.c.h.b16 %v4942
    %v5301 = vunpack.c.l.b16 %v4943
    %v5302 = vunpack.c.h.b16 %v4943
    %v5303 = vunpack.c.l.b16 %v4944
    %v5304 = vunpack.c.h.b16 %v4944
    %v5305 = vunpack.c.l.b16 %v4945
    %v5306 = vunpack.c.h.b16 %v4945
    %v5307 = vunpack.c.l.b16 %v4946
    %v5308 = vunpack.c.h.b16 %v4946
    %v5309 = vunpack.c.l.b16 %v4947
    %v5310 = vunpack.c.h.b16 %v4947
    %v5311 = vunpack.c.l.b16 %v4948
    %v5312 = vunpack.c.h.b16 %v4948
    %v5313 = vunpack.c.l.b16 %v4949
    %v5314 = vunpack.c.h.b16 %v4949
    %v5315 = vunpack.c.l.b16 %v4950
    %v5316 = vunpack.c.h.b16 %v4950
    %v5317 = vunpack.c.l.b16 %v4951
    %v5318 = vunpack.c.h.b16 %v4951
    %v5319 = vunpack.c.l.b16 %v4952
    %v5320 = vunpack.c.h.b16 %v4952
    %v5321 = vunpack.c.l.b16 %v4953
    %v5322 = vunpack.c.h.b16 %v4953
    %v5323 = vunpack.c.l.b16 %v4954
    %v5324 = vunpack.c.h.b16 %v4954
    %v5325 = vunpack.c.l.b16 %v4955
    %v5326 = vunpack.c.h.b16 %v4955
    %v5327 = vunpack.c.l.b16 %v4956
    %v5328 = vunpack.c.h.b16 %v4956
    %v5329 = vunpack.c.l.b16 %v4957
    %v5330 = vunpack.c.h.b16 %v4957
    %v5331 = vunpack.c.l.b16 %v4958
    %v5332 = vunpack.c.h.b16 %v4958
    %v5333 = vunpack.c.l.b16 %v4959
    %v5334 = vunpack.c.h.b16 %v4959
    %v5335 = vunpack.c.l.b16 %v4960
    %v5336 = vunpack.c.h.b16 %v4960
    %v5337 = vunpack.c.l.b16 %v4961
    %v5338 = vunpack.c.h.b16 %v4961
    %v5339 = vunpack.c.l.b16 %v4962
    %v5340 = vunpack.c.h.b16 %v4962
    %v5341 = vunpack.c.l.b16 %v4963
    %v5342 = vunpack.c.h.b16 %v4963
    %v5343 = vunpack.c.l.b16 %v4964
    %v5344 = vunpack.c.h.b16 %v4964
    %v5345 = vunpack.c.l.b16 %v4965
    %v5346 = vunpack.c.h.b16 %v4965
    %v5347 = vunpack.c.l.b16 %v4966
    %v5348 = vunpack.c.h.b16 %v4966
    %v5349 = vunpack.c.l.b16 %v4967
    %v5350 = vunpack.c.h.b16 %v4967
    %v5351 = vunpack.c.l.b16 %v4968
    %v5352 = vunpack.c.h.b16 %v4968
    %v5353 = vpack.c.b16 %v5101, %v5097
    %v5354 = vpack.c.b16 %v5102, %v5098
    %v5355 = vpack.c.b16 %v5103, %v5099
    %v5356 = vpack.c.b16 %v5104, %v5100
    %v5357 = vpack.c.b16 %v5109, %v5105
    %v5358 = vpack.c.b16 %v5110, %v5106
    %v5359 = vpack.c.b16 %v5111, %v5107
    %v5360 = vpack.c.b16 %v5112, %v5108
    %v5361 = vpack.c.b16 %v5117, %v5113
    %v5362 = vpack.c.b16 %v5118, %v5114
    %v5363 = vpack.c.b16 %v5119, %v5115
    %v5364 = vpack.c.b16 %v5120, %v5116
    %v5365 = vpack.c.b16 %v5125, %v5121
    %v5366 = vpack.c.b16 %v5126, %v5122
    %v5367 = vpack.c.b16 %v5127, %v5123
    %v5368 = vpack.c.b16 %v5128, %v5124
    %v5369 = vpack.c.b16 %v5133, %v5129
    %v5370 = vpack.c.b16 %v5134, %v5130
    %v5371 = vpack.c.b16 %v5135, %v5131
    %v5372 = vpack.c.b16 %v5136, %v5132
    %v5373 = vpack.c.b16 %v5141, %v5137
    %v5374 = vpack.c.b16 %v5142, %v5138
    %v5375 = vpack.c.b16 %v5143, %v5139
    %v5376 = vpack.c.b16 %v5144, %v5140
    %v5377 = vpack.c.b16 %v5149, %v5145
    %v5378 = vpack.c.b16 %v5150, %v5146
    %v5379 = vpack.c.b16 %v5151, %v5147
    %v5380 = vpack.c.b16 %v5152, %v5148
    %v5381 = vpack.c.b16 %v5157, %v5153
    %v5382 = vpack.c.b16 %v5158, %v5154
    %v5383 = vpack.c.b16 %v5159, %v5155
    %v5384 = vpack.c.b16 %v5160, %v5156
    %v5385 = vpack.c.b16 %v5165, %v5161
    %v5386 = vpack.c.b16 %v5166, %v5162
    %v5387 = vpack.c.b16 %v5167, %v5163
    %v5388 = vpack.c.b16 %v5168, %v5164
    %v5389 = vpack.c.b16 %v5173, %v5169
    %v5390 = vpack.c.b16 %v5174, %v5170
    %v5391 = vpack.c.b16 %v5175, %v5171
    %v5392 = vpack.c.b16 %v5176, %v5172
    %v5393 = vpack.c.b16 %v5181, %v5177
    %v5394 = vpack.c.b16 %v5182, %v5178
    %v5395 = vpack.c.b16 %v5183, %v5179
    %v5396 = vpack.c.b16 %v5184, %v5180
    %v5397 = vpack.c.b16 %v5189, %v5185
    %v5398 = vpack.c.b16 %v5190, %v5186
    %v5399 = vpack.c.b16 %v5191, %v5187
    %v5400 = vpack.c.b16 %v5192, %v5188
    %v5401 = vpack.c.b16 %v5197, %v5193
    %v5402 = vpack.c.b16 %v5198, %v5194
    %v5403 = vpack.c.b16 %v5199, %v5195
    %v5404 = vpack.c.b16 %v5200, %v5196
    %v5405 = vpack.c.b16 %v5205, %v5201
    %v5406 = vpack.c.b16 %v5206, %v5202
    %v5407 = vpack.c.b16 %v5207, %v5203
    %v5408 = vpack.c.b16 %v5208, %v5204
    %v5409 = vpack.c.b16 %v5213, %v5209
    %v5410 = vpack.c.b16 %v5214, %v5210
    %v5411 = vpack.c.b16 %v5215, %v5211
    %v5412 = vpack.c.b16 %v5216, %v5212
    %v5413 = vpack.c.b16 %v5221, %v5217
    %v5414 = vpack.c.b16 %v5222, %v5218
    %v5415 = vpack.c.b16 %v5223, %v5219
    %v5416 = vpack.c.b16 %v5224, %v5220
    %v5417 = vpack.c.b16 %v5229, %v5225
    %v5418 = vpack.c.b16 %v5230, %v5226
    %v5419 = vpack.c.b16 %v5231, %v5227
    %v5420 = vpack.c.b16 %v5232, %v5228
    %v5421 = vpack.c.b16 %v5237, %v5233
    %v5422 = vpack.c.b16 %v5238, %v5234
    %v5423 = vpack.c.b16 %v5239, %v5235
    %v5424 = vpack.c.b16 %v5240, %v5236
    %v5425 = vpack.c.b16 %v5245, %v5241
    %v5426 = vpack.c.b16 %v5246, %v5242
    %v5427 = vpack.c.b16 %v5247, %v5243
    %v5428 = vpack.c.b16 %v5248, %v5244
    %v5429 = vpack.c.b16 %v5253, %v5249
    %v5430 = vpack.c.b16 %v5254, %v5250
    %v5431 = vpack.c.b16 %v5255, %v5251
    %v5432 = vpack.c.b16 %v5256, %v5252
    %v5433 = vpack.c.b16 %v5261, %v5257
    %v5434 = vpack.c.b16 %v5262, %v5258
    %v5435 = vpack.c.b16 %v5263, %v5259
    %v5436 = vpack.c.b16 %v5264, %v5260
    %v5437 = vpack.c.b16 %v5269, %v5265
    %v5438 = vpack.c.b16 %v5270, %v5266
    %v5439 = vpack.c.b16 %v5271, %v5267
    %v5440 = vpack.c.b16 %v5272, %v5268
    %v5441 = vpack.c.b16 %v5277, %v5273
    %v5442 = vpack.c.b16 %v5278, %v5274
    %v5443 = vpack.c.b16 %v5279, %v5275
    %v5444 = vpack.c.b16 %v5280, %v5276
    %v5445 = vpack.c.b16 %v5285, %v5281
    %v5446 = vpack.c.b16 %v5286, %v5282
    %v5447 = vpack.c.b16 %v5287, %v5283
    %v5448 = vpack.c.b16 %v5288, %v5284
    %v5449 = vpack.c.b16 %v5293, %v5289
    %v5450 = vpack.c.b16 %v5294, %v5290
    %v5451 = vpack.c.b16 %v5295, %v5291
    %v5452 = vpack.c.b16 %v5296, %v5292
    %v5453 = vpack.c.b16 %v5301, %v5297
    %v5454 = vpack.c.b16 %v5302, %v5298
    %v5455 = vpack.c.b16 %v5303, %v5299
    %v5456 = vpack.c.b16 %v5304, %v5300
    %v5457 = vpack.c.b16 %v5309, %v5305
    %v5458 = vpack.c.b16 %v5310, %v5306
    %v5459 = vpack.c.b16 %v5311, %v5307
    %v5460 = vpack.c.b16 %v5312, %v5308
    %v5461 = vpack.c.b16 %v5317, %v5313
    %v5462 = vpack.c.b16 %v5318, %v5314
    %v5463 = vpack.c.b16 %v5319, %v5315
    %v5464 = vpack.c.b16 %v5320, %v5316
    %v5465 = vpack.c.b16 %v5325, %v5321
    %v5466 = vpack.c.b16 %v5326, %v5322
    %v5467 = vpack.c.b16 %v5327, %v5323
    %v5468 = vpack.c.b16 %v5328, %v5324
    %v5469 = vpack.c.b16 %v5333, %v5329
    %v5470 = vpack.c.b16 %v5334, %v5330
    %v5471 = vpack.c.b16 %v5335, %v5331
    %v5472 = vpack.c.b16 %v5336, %v5332
    %v5473 = vpack.c.b16 %v5341, %v5337
    %v5474 = vpack.c.b16 %v5342, %v5338
    %v5475 = vpack.c.b16 %v5343, %v5339
    %v5476 = vpack.c.b16 %v5344, %v5340
    %v5477 = vpack.c.b16 %v5349, %v5345
    %v5478 = vpack.c.b16 %v5350, %v5346
    %v5479 = vpack.c.b16 %v5351, %v5347
    %v5480 = vpack.c.b16 %v5352, %v5348
    %5609 = vmatprep.subr.bf16.mxu0 %v5354
    %5610 = vmatpush1.bf16.msra.mxu0 %v5353
    %5611 = vmatprep.subr.bf16.mxu0 %v5358
    %5612 = vmatpush1.bf16.msra.mxu0 %v5357
    %5613 = vmatprep.subr.bf16.mxu0 %v5362
    %5614 = vmatpush1.bf16.msra.mxu0 %v5361
    %5615 = vmatprep.subr.bf16.mxu0 %v5366
    %5616 = vmatpush1.bf16.msra.mxu0 %v5365
    %5617 = vmatprep.subr.bf16.mxu0 %v5370
    %5618 = vmatpush1.bf16.msra.mxu0 %v5369
    %5619 = vmatprep.subr.bf16.mxu0 %v5374
    %5620 = vmatpush1.bf16.msra.mxu0 %v5373
    %5621 = vmatprep.subr.bf16.mxu0 %v5378
    %5622 = vmatpush1.bf16.msra.mxu0 %v5377
    %5623 = vmatprep.subr.bf16.mxu0 %v5382
    %5624 = vmatpush1.bf16.msra.mxu0 %v5381
    %5625 = vmatprep.subr.bf16.mxu0 %v5386
    %5626 = vmatpush1.bf16.msra.mxu0 %v5385
    %5627 = vmatprep.subr.bf16.mxu0 %v5390
    %5628 = vmatpush1.bf16.msra.mxu0 %v5389
    %5629 = vmatprep.subr.bf16.mxu0 %v5394
    %5630 = vmatpush1.bf16.msra.mxu0 %v5393
    %5631 = vmatprep.subr.bf16.mxu0 %v5398
    %5632 = vmatpush1.bf16.msra.mxu0 %v5397
    %5633 = vmatprep.subr.bf16.mxu0 %v5402
    %5634 = vmatpush1.bf16.msra.mxu0 %v5401
    %5635 = vmatprep.subr.bf16.mxu0 %v5406
    %5636 = vmatpush1.bf16.msra.mxu0 %v5405
    %5637 = vmatprep.subr.bf16.mxu0 %v5410
    %5638 = vmatpush1.bf16.msra.mxu0 %v5409
    %5639 = vmatprep.subr.bf16.mxu0 %v5414
    %5640 = vmatpush1.bf16.msra.mxu0 %v5413
    %5641 = vmatprep.mubr.bf16.mxu0 %v4838
    %5642 = vmatmul.mubr.bf16.gmra.mrb[0].mxu0 %v4837
    %v5643 = vpop.f32.mrb[0].mxu0
    %v5644 = vadd.f32 0.0, %v5643
    %v5645 = vpop.f32.mrb[0].mxu0
    %v5646 = vadd.f32 0.0, %v5645
    %v5647 = vpop.f32.mrb[0].mxu0
    %v5648 = vpop.f32.mrb[0].mxu0
    %5649 = vdwg.mxu0
    %5650 = vmatprep.subr.bf16.mxu0 %v5418
    %5651 = vmatpush1.bf16.msra.mxu0 %v5417
    %5652 = vmatprep.subr.bf16.mxu0 %v5422
    %5653 = vmatpush1.bf16.msra.mxu0 %v5421
    %5654 = vmatprep.subr.bf16.mxu0 %v5426
    %5655 = vmatpush1.bf16.msra.mxu0 %v5425
    %5656 = vmatprep.subr.bf16.mxu0 %v5430
    %5657 = vmatpush1.bf16.msra.mxu0 %v5429
    %5658 = vmatprep.subr.bf16.mxu0 %v5434
    %5659 = vmatpush1.bf16.msra.mxu0 %v5433
    %5660 = vmatprep.subr.bf16.mxu0 %v5438
    %5661 = vmatpush1.bf16.msra.mxu0 %v5437
    %5662 = vmatprep.subr.bf16.mxu0 %v5442
    %5663 = vmatpush1.bf16.msra.mxu0 %v5441
    %5664 = vmatprep.subr.bf16.mxu0 %v5446
    %5665 = vmatpush1.bf16.msra.mxu0 %v5445
    %5666 = vmatprep.subr.bf16.mxu0 %v5450
    %5667 = vmatpush1.bf16.msra.mxu0 %v5449
    %5668 = vmatprep.subr.bf16.mxu0 %v5454
    %5669 = vmatpush1.bf16.msra.mxu0 %v5453
    %5670 = vmatprep.subr.bf16.mxu0 %v5458
    %5671 = vmatpush1.bf16.msra.mxu0 %v5457
    %5672 = vmatprep.subr.bf16.mxu0 %v5462
    %5673 = vmatpush1.bf16.msra.mxu0 %v5461
    %5674 = vmatprep.subr.bf16.mxu0 %v5466
    %5675 = vmatpush1.bf16.msra.mxu0 %v5465
    %5676 = vmatprep.subr.bf16.mxu0 %v5470
    %5677 = vmatpush1.bf16.msra.mxu0 %v5469
    %5678 = vmatprep.subr.bf16.mxu0 %v5474
    %5679 = vmatpush1.bf16.msra.mxu0 %v5473
    %5680 = vmatprep.subr.bf16.mxu0 %v5478
    %5681 = vmatpush1.bf16.msra.mxu0 %v5477
    %5682 = vmatprep.mubr.bf16.mxu0 %v4840
    %5683 = vmatmul.mubr.bf16.gmra.mrb[0].mxu0 %v4839
    %v5684 = vpop.f32.mrb[0].mxu0
    %v5685 = vadd.f32 %v5644, %v5684
    %v5686 = vpop.f32.mrb[0].mxu0
    %v5687 = vadd.f32 %v5646, %v5686
    %v5688 = vpop.f32.mrb[0].mxu0
    %v5689 = vpop.f32.mrb[0].mxu0
    %5690 = vdwg.mxu0
    %5691 = vmatprep.subr.bf16.mxu0 %v5356
    %5692 = vmatpush1.bf16.msra.mxu0 %v5355
    %5693 = vmatprep.subr.bf16.mxu0 %v5360
    %5694 = vmatpush1.bf16.msra.mxu0 %v5359
    %5695 = vmatprep.subr.bf16.mxu0 %v5364
    %5696 = vmatpush1.bf16.msra.mxu0 %v5363
    %5697 = vmatprep.subr.bf16.mxu0 %v5368
    %5698 = vmatpush1.bf16.msra.mxu0 %v5367
    %5699 = vmatprep.subr.bf16.mxu0 %v5372
    %5700 = vmatpush1.bf16.msra.mxu0 %v5371
    %5701 = vmatprep.subr.bf16.mxu0 %v5376
    %5702 = vmatpush1.bf16.msra.mxu0 %v5375
    %5703 = vmatprep.subr.bf16.mxu0 %v5380
    %5704 = vmatpush1.bf16.msra.mxu0 %v5379
    %5705 = vmatprep.subr.bf16.mxu0 %v5384
    %5706 = vmatpush1.bf16.msra.mxu0 %v5383
    %5707 = vmatprep.subr.bf16.mxu0 %v5388
    %5708 = vmatpush1.bf16.msra.mxu0 %v5387
    %5709 = vmatprep.subr.bf16.mxu0 %v5392
    %5710 = vmatpush1.bf16.msra.mxu0 %v5391
    %5711 = vmatprep.subr.bf16.mxu0 %v5396
    %5712 = vmatpush1.bf16.msra.mxu0 %v5395
    %5713 = vmatprep.subr.bf16.mxu0 %v5400
    %5714 = vmatpush1.bf16.msra.mxu0 %v5399
    %5715 = vmatprep.subr.bf16.mxu0 %v5404
    %5716 = vmatpush1.bf16.msra.mxu0 %v5403
    %5717 = vmatprep.subr.bf16.mxu0 %v5408
    %5718 = vmatpush1.bf16.msra.mxu0 %v5407
    %5719 = vmatprep.subr.bf16.mxu0 %v5412
    %5720 = vmatpush1.bf16.msra.mxu0 %v5411
    %5721 = vmatprep.subr.bf16.mxu0 %v5416
    %5722 = vmatpush1.bf16.msra.mxu0 %v5415
    %5723 = vmatprep.mubr.bf16.mxu0 %v4838
    %5724 = vmatmul.mubr.bf16.gmra.mrb[0].mxu0 %v4837
    %v5725 = vpop.f32.mrb[0].mxu0
    %v5726 = vadd.f32 0.0, %v5725
    %v5727 = vpop.f32.mrb[0].mxu0
    %v5728 = vadd.f32 0.0, %v5727
    %v5729 = vpop.f32.mrb[0].mxu0
    %v5730 = vpop.f32.mrb[0].mxu0
    %5731 = vdwg.mxu0
    %5732 = vmatprep.subr.bf16.mxu0 %v5420
    %5733 = vmatpush1.bf16.msra.mxu0 %v5419
    %5734 = vmatprep.subr.bf16.mxu0 %v5424
    %5735 = vmatpush1.bf16.msra.mxu0 %v5423
    %5736 = vmatprep.subr.bf16.mxu0 %v5428
    %5737 = vmatpush1.bf16.msra.mxu0 %v5427
    %5738 = vmatprep.subr.bf16.mxu0 %v5432
    %5739 = vmatpush1.bf16.msra.mxu0 %v5431
    %5740 = vmatprep.subr.bf16.mxu0 %v5436
    %5741 = vmatpush1.bf16.msra.mxu0 %v5435
    %5742 = vmatprep.subr.bf16.mxu0 %v5440
    %5743 = vmatpush1.bf16.msra.mxu0 %v5439
    %5744 = vmatprep.subr.bf16.mxu0 %v5444
    %5745 = vmatpush1.bf16.msra.mxu0 %v5443
    %5746 = vmatprep.subr.bf16.mxu0 %v5448
    %5747 = vmatpush1.bf16.msra.mxu0 %v5447
    %5748 = vmatprep.subr.bf16.mxu0 %v5452
    %5749 = vmatpush1.bf16.msra.mxu0 %v5451
    %5750 = vmatprep.subr.bf16.mxu0 %v5456
    %5751 = vmatpush1.bf16.msra.mxu0 %v5455
    %5752 = vmatprep.subr.bf16.mxu0 %v5460
    %5753 = vmatpush1.bf16.msra.mxu0 %v5459
    %5754 = vmatprep.subr.bf16.mxu0 %v5464
    %5755 = vmatpush1.bf16.msra.mxu0 %v5463
    %5756 = vmatprep.subr.bf16.mxu0 %v5468
    %5757 = vmatpush1.bf16.msra.mxu0 %v5467
    %5758 = vmatprep.subr.bf16.mxu0 %v5472
    %5759 = vmatpush1.bf16.msra.mxu0 %v5471
    %5760 = vmatprep.subr.bf16.mxu0 %v5476
    %5761 = vmatpush1.bf16.msra.mxu0 %v5475
    %5762 = vmatprep.subr.bf16.mxu0 %v5480
    %5763 = vmatpush1.bf16.msra.mxu0 %v5479
    %5764 = vmatprep.mubr.bf16.mxu0 %v4840
    %5765 = vmatmul.mubr.bf16.gmra.mrb[0].mxu0 %v4839
    %v5766 = vpop.f32.mrb[0].mxu0
    %v5767 = vadd.f32 %v5726, %v5766
    %v5768 = vpop.f32.mrb[0].mxu0
    %v5769 = vadd.f32 %v5728, %v5768
    %v5770 = vpop.f32.mrb[0].mxu0
    %v5771 = vpop.f32.mrb[0].mxu0
    %5772 = vdwg.mxu0
    %v5773 = vadd.f32 %v3791, %v5685
    %v5774 = vadd.f32 %v3793, %v5687
    %v5775 = vadd.f32 %v3873, %v5767
    %v5776 = vadd.f32 %v3875, %v5769
    %v5777 = vld [vmem:[#allocation5 + $0x30] sm:$0xff]
    %v5778 = vld [vmem:[#allocation5 + $0x38] sm:$0xff]
    %v5779 = vld [vmem:[#allocation5 + $0x70] sm:$0xff]
    %v5780 = vld [vmem:[#allocation5 + $0x78] sm:$0xff]
    %v5781 = vld [vmem:[#allocation5 + $0xb0] sm:$0xff]
    %v5782 = vld [vmem:[#allocation5 + $0xb8] sm:$0xff]
    %v5783 = vld [vmem:[#allocation5 + $0xf0] sm:$0xff]
    %v5784 = vld [vmem:[#allocation5 + $0xf8] sm:$0xff]
    %v5785 = vld [vmem:[#allocation5 + $0x130] sm:$0xff]
    %v5786 = vld [vmem:[#allocation5 + $0x138] sm:$0xff]
    %v5787 = vld [vmem:[#allocation5 + $0x170] sm:$0xff]
    %v5788 = vld [vmem:[#allocation5 + $0x178] sm:$0xff]
    %v5789 = vld [vmem:[#allocation5 + $0x1b0] sm:$0xff]
    %v5790 = vld [vmem:[#allocation5 + $0x1b8] sm:$0xff]
    %v5791 = vld [vmem:[#allocation5 + $0x1f0] sm:$0xff]
    %v5792 = vld [vmem:[#allocation5 + $0x1f8] sm:$0xff]
    %v5793 = vld [vmem:[#allocation5 + $0x230] sm:$0xff]
    %v5794 = vld [vmem:[#allocation5 + $0x238] sm:$0xff]
    %v5795 = vld [vmem:[#allocation5 + $0x270] sm:$0xff]
    %v5796 = vld [vmem:[#allocation5 + $0x278] sm:$0xff]
    %v5797 = vld [vmem:[#allocation5 + $0x2b0] sm:$0xff]
    %v5798 = vld [vmem:[#allocation5 + $0x2b8] sm:$0xff]
    %v5799 = vld [vmem:[#allocation5 + $0x2f0] sm:$0xff]
    %v5800 = vld [vmem:[#allocation5 + $0x2f8] sm:$0xff]
    %v5801 = vld [vmem:[#allocation5 + $0x330] sm:$0xff]
    %v5802 = vld [vmem:[#allocation5 + $0x338] sm:$0xff]
    %v5803 = vld [vmem:[#allocation5 + $0x370] sm:$0xff]
    %v5804 = vld [vmem:[#allocation5 + $0x378] sm:$0xff]
    %v5805 = vld [vmem:[#allocation5 + $0x3b0] sm:$0xff]
    %v5806 = vld [vmem:[#allocation5 + $0x3b8] sm:$0xff]
    %v5807 = vld [vmem:[#allocation5 + $0x3f0] sm:$0xff]
    %v5808 = vld [vmem:[#allocation5 + $0x3f8] sm:$0xff]
    %v5809 = vld [vmem:[#allocation5 + $0x430] sm:$0xff]
    %v5810 = vld [vmem:[#allocation5 + $0x438] sm:$0xff]
    %v5811 = vld [vmem:[#allocation5 + $0x470] sm:$0xff]
    %v5812 = vld [vmem:[#allocation5 + $0x478] sm:$0xff]
    %v5813 = vld [vmem:[#allocation5 + $0x4b0] sm:$0xff]
    %v5814 = vld [vmem:[#allocation5 + $0x4b8] sm:$0xff]
    %v5815 = vld [vmem:[#allocation5 + $0x4f0] sm:$0xff]
    %v5816 = vld [vmem:[#allocation5 + $0x4f8] sm:$0xff]
    %v5817 = vld [vmem:[#allocation5 + $0x530] sm:$0xff]
    %v5818 = vld [vmem:[#allocation5 + $0x538] sm:$0xff]
    %v5819 = vld [vmem:[#allocation5 + $0x570] sm:$0xff]
    %v5820 = vld [vmem:[#allocation5 + $0x578] sm:$0xff]
    %v5821 = vld [vmem:[#allocation5 + $0x5b0] sm:$0xff]
    %v5822 = vld [vmem:[#allocation5 + $0x5b8] sm:$0xff]
    %v5823 = vld [vmem:[#allocation5 + $0x5f0] sm:$0xff]
    %v5824 = vld [vmem:[#allocation5 + $0x5f8] sm:$0xff]
    %v5825 = vld [vmem:[#allocation5 + $0x630] sm:$0xff]
    %v5826 = vld [vmem:[#allocation5 + $0x638] sm:$0xff]
    %v5827 = vld [vmem:[#allocation5 + $0x670] sm:$0xff]
    %v5828 = vld [vmem:[#allocation5 + $0x678] sm:$0xff]
    %v5829 = vld [vmem:[#allocation5 + $0x6b0] sm:$0xff]
    %v5830 = vld [vmem:[#allocation5 + $0x6b8] sm:$0xff]
    %v5831 = vld [vmem:[#allocation5 + $0x6f0] sm:$0xff]
    %v5832 = vld [vmem:[#allocation5 + $0x6f8] sm:$0xff]
    %v5833 = vld [vmem:[#allocation5 + $0x730] sm:$0xff]
    %v5834 = vld [vmem:[#allocation5 + $0x738] sm:$0xff]
    %v5835 = vld [vmem:[#allocation5 + $0x770] sm:$0xff]
    %v5836 = vld [vmem:[#allocation5 + $0x778] sm:$0xff]
    %v5837 = vld [vmem:[#allocation5 + $0x7b0] sm:$0xff]
    %v5838 = vld [vmem:[#allocation5 + $0x7b8] sm:$0xff]
    %v5839 = vld [vmem:[#allocation5 + $0x7f0] sm:$0xff]
    %v5840 = vld [vmem:[#allocation5 + $0x7f8] sm:$0xff]
    %v5841 = vld [vmem:[#allocation5 + $0x830] sm:$0xff]
    %v5842 = vld [vmem:[#allocation5 + $0x838] sm:$0xff]
    %v5843 = vld [vmem:[#allocation5 + $0x870] sm:$0xff]
    %v5844 = vld [vmem:[#allocation5 + $0x878] sm:$0xff]
    %v5845 = vld [vmem:[#allocation5 + $0x8b0] sm:$0xff]
    %v5846 = vld [vmem:[#allocation5 + $0x8b8] sm:$0xff]
    %v5847 = vld [vmem:[#allocation5 + $0x8f0] sm:$0xff]
    %v5848 = vld [vmem:[#allocation5 + $0x8f8] sm:$0xff]
    %v5849 = vld [vmem:[#allocation5 + $0x930] sm:$0xff]
    %v5850 = vld [vmem:[#allocation5 + $0x938] sm:$0xff]
    %v5851 = vld [vmem:[#allocation5 + $0x970] sm:$0xff]
    %v5852 = vld [vmem:[#allocation5 + $0x978] sm:$0xff]
    %v5853 = vld [vmem:[#allocation5 + $0x9b0] sm:$0xff]
    %v5854 = vld [vmem:[#allocation5 + $0x9b8] sm:$0xff]
    %v5855 = vld [vmem:[#allocation5 + $0x9f0] sm:$0xff]
    %v5856 = vld [vmem:[#allocation5 + $0x9f8] sm:$0xff]
    %v5857 = vld [vmem:[#allocation5 + $0xa30] sm:$0xff]
    %v5858 = vld [vmem:[#allocation5 + $0xa38] sm:$0xff]
    %v5859 = vld [vmem:[#allocation5 + $0xa70] sm:$0xff]
    %v5860 = vld [vmem:[#allocation5 + $0xa78] sm:$0xff]
    %v5861 = vld [vmem:[#allocation5 + $0xab0] sm:$0xff]
    %v5862 = vld [vmem:[#allocation5 + $0xab8] sm:$0xff]
    %v5863 = vld [vmem:[#allocation5 + $0xaf0] sm:$0xff]
    %v5864 = vld [vmem:[#allocation5 + $0xaf8] sm:$0xff]
    %v5865 = vld [vmem:[#allocation5 + $0xb30] sm:$0xff]
    %v5866 = vld [vmem:[#allocation5 + $0xb38] sm:$0xff]
    %v5867 = vld [vmem:[#allocation5 + $0xb70] sm:$0xff]
    %v5868 = vld [vmem:[#allocation5 + $0xb78] sm:$0xff]
    %v5869 = vld [vmem:[#allocation5 + $0xbb0] sm:$0xff]
    %v5870 = vld [vmem:[#allocation5 + $0xbb8] sm:$0xff]
    %v5871 = vld [vmem:[#allocation5 + $0xbf0] sm:$0xff]
    %v5872 = vld [vmem:[#allocation5 + $0xbf8] sm:$0xff]
    %v5873 = vld [vmem:[#allocation5 + $0xc30] sm:$0xff]
    %v5874 = vld [vmem:[#allocation5 + $0xc38] sm:$0xff]
    %v5875 = vld [vmem:[#allocation5 + $0xc70] sm:$0xff]
    %v5876 = vld [vmem:[#allocation5 + $0xc78] sm:$0xff]
    %v5877 = vld [vmem:[#allocation5 + $0xcb0] sm:$0xff]
    %v5878 = vld [vmem:[#allocation5 + $0xcb8] sm:$0xff]
    %v5879 = vld [vmem:[#allocation5 + $0xcf0] sm:$0xff]
    %v5880 = vld [vmem:[#allocation5 + $0xcf8] sm:$0xff]
    %v5881 = vld [vmem:[#allocation5 + $0xd30] sm:$0xff]
    %v5882 = vld [vmem:[#allocation5 + $0xd38] sm:$0xff]
    %v5883 = vld [vmem:[#allocation5 + $0xd70] sm:$0xff]
    %v5884 = vld [vmem:[#allocation5 + $0xd78] sm:$0xff]
    %v5885 = vld [vmem:[#allocation5 + $0xdb0] sm:$0xff]
    %v5886 = vld [vmem:[#allocation5 + $0xdb8] sm:$0xff]
    %v5887 = vld [vmem:[#allocation5 + $0xdf0] sm:$0xff]
    %v5888 = vld [vmem:[#allocation5 + $0xdf8] sm:$0xff]
    %v5889 = vld [vmem:[#allocation5 + $0xe30] sm:$0xff]
    %v5890 = vld [vmem:[#allocation5 + $0xe38] sm:$0xff]
    %v5891 = vld [vmem:[#allocation5 + $0xe70] sm:$0xff]
    %v5892 = vld [vmem:[#allocation5 + $0xe78] sm:$0xff]
    %v5893 = vld [vmem:[#allocation5 + $0xeb0] sm:$0xff]
    %v5894 = vld [vmem:[#allocation5 + $0xeb8] sm:$0xff]
    %v5895 = vld [vmem:[#allocation5 + $0xef0] sm:$0xff]
    %v5896 = vld [vmem:[#allocation5 + $0xef8] sm:$0xff]
    %v5897 = vld [vmem:[#allocation5 + $0xf30] sm:$0xff]
    %v5898 = vld [vmem:[#allocation5 + $0xf38] sm:$0xff]
    %v5899 = vld [vmem:[#allocation5 + $0xf70] sm:$0xff]
    %v5900 = vld [vmem:[#allocation5 + $0xf78] sm:$0xff]
    %v5901 = vld [vmem:[#allocation5 + $0xfb0] sm:$0xff]
    %v5902 = vld [vmem:[#allocation5 + $0xfb8] sm:$0xff]
    %v5903 = vld [vmem:[#allocation5 + $0xff0] sm:$0xff]
    %v5904 = vld [vmem:[#allocation5 + $0xff8] sm:$0xff]
    %v5905 = vld [vmem:[#allocation7 + $0xc] sm:$0xf]
    %v5907 = vlaneseq
    %v5908 = vshrl.u32 %v5907, 7
    %v5909 = vsub.s32 0, %v5908
    %v5910 = vrot.slane %v5905, %v5909
    %v5911 = vlaneseq
    %v5912 = vshrl.u32 %v5911, 7
    %v5913 = vsub.s32 1, %v5912
    %v5914 = vrot.slane %v5905, %v5913
    %v5915 = vlaneseq
    %v5916 = vshrl.u32 %v5915, 7
    %v5917 = vsub.s32 2, %v5916
    %v5918 = vrot.slane %v5905, %v5917
    %v5919 = vlaneseq
    %v5920 = vshrl.u32 %v5919, 7
    %v5921 = vsub.s32 3, %v5920
    %v5922 = vrot.slane %v5905, %v5921
    %v6055 = vunpack.c.l.b16 %v5777
    %v6056 = vunpack.c.h.b16 %v5777
    %v6057 = vunpack.c.l.b16 %v5778
    %v6058 = vunpack.c.h.b16 %v5778
    %v6059 = vunpack.c.l.b16 %v5779
    %v6060 = vunpack.c.h.b16 %v5779
    %v6061 = vunpack.c.l.b16 %v5780
    %v6062 = vunpack.c.h.b16 %v5780
    %v6063 = vunpack.c.l.b16 %v5781
    %v6064 = vunpack.c.h.b16 %v5781
    %v6065 = vunpack.c.l.b16 %v5782
    %v6066 = vunpack.c.h.b16 %v5782
    %v6067 = vunpack.c.l.b16 %v5783
    %v6068 = vunpack.c.h.b16 %v5783
    %v6069 = vunpack.c.l.b16 %v5784
    %v6070 = vunpack.c.h.b16 %v5784
    %v6071 = vunpack.c.l.b16 %v5785
    %v6072 = vunpack.c.h.b16 %v5785
    %v6073 = vunpack.c.l.b16 %v5786
    %v6074 = vunpack.c.h.b16 %v5786
    %v6075 = vunpack.c.l.b16 %v5787
    %v6076 = vunpack.c.h.b16 %v5787
    %v6077 = vunpack.c.l.b16 %v5788
    %v6078 = vunpack.c.h.b16 %v5788
    %v6079 = vunpack.c.l.b16 %v5789
    %v6080 = vunpack.c.h.b16 %v5789
    %v6081 = vunpack.c.l.b16 %v5790
    %v6082 = vunpack.c.h.b16 %v5790
    %v6083 = vunpack.c.l.b16 %v5791
    %v6084 = vunpack.c.h.b16 %v5791
    %v6085 = vunpack.c.l.b16 %v5792
    %v6086 = vunpack.c.h.b16 %v5792
    %v6087 = vunpack.c.l.b16 %v5793
    %v6088 = vunpack.c.h.b16 %v5793
    %v6089 = vunpack.c.l.b16 %v5794
    %v6090 = vunpack.c.h.b16 %v5794
    %v6091 = vunpack.c.l.b16 %v5795
    %v6092 = vunpack.c.h.b16 %v5795
    %v6093 = vunpack.c.l.b16 %v5796
    %v6094 = vunpack.c.h.b16 %v5796
    %v6095 = vunpack.c.l.b16 %v5797
    %v6096 = vunpack.c.h.b16 %v5797
    %v6097 = vunpack.c.l.b16 %v5798
    %v6098 = vunpack.c.h.b16 %v5798
    %v6099 = vunpack.c.l.b16 %v5799
    %v6100 = vunpack.c.h.b16 %v5799
    %v6101 = vunpack.c.l.b16 %v5800
    %v6102 = vunpack.c.h.b16 %v5800
    %v6103 = vunpack.c.l.b16 %v5801
    %v6104 = vunpack.c.h.b16 %v5801
    %v6105 = vunpack.c.l.b16 %v5802
    %v6106 = vunpack.c.h.b16 %v5802
    %v6107 = vunpack.c.l.b16 %v5803
    %v6108 = vunpack.c.h.b16 %v5803
    %v6109 = vunpack.c.l.b16 %v5804
    %v6110 = vunpack.c.h.b16 %v5804
    %v6111 = vunpack.c.l.b16 %v5805
    %v6112 = vunpack.c.h.b16 %v5805
    %v6113 = vunpack.c.l.b16 %v5806
    %v6114 = vunpack.c.h.b16 %v5806
    %v6115 = vunpack.c.l.b16 %v5807
    %v6116 = vunpack.c.h.b16 %v5807
    %v6117 = vunpack.c.l.b16 %v5808
    %v6118 = vunpack.c.h.b16 %v5808
    %v6119 = vunpack.c.l.b16 %v5809
    %v6120 = vunpack.c.h.b16 %v5809
    %v6121 = vunpack.c.l.b16 %v5810
    %v6122 = vunpack.c.h.b16 %v5810
    %v6123 = vunpack.c.l.b16 %v5811
    %v6124 = vunpack.c.h.b16 %v5811
    %v6125 = vunpack.c.l.b16 %v5812
    %v6126 = vunpack.c.h.b16 %v5812
    %v6127 = vunpack.c.l.b16 %v5813
    %v6128 = vunpack.c.h.b16 %v5813
    %v6129 = vunpack.c.l.b16 %v5814
    %v6130 = vunpack.c.h.b16 %v5814
    %v6131 = vunpack.c.l.b16 %v5815
    %v6132 = vunpack.c.h.b16 %v5815
    %v6133 = vunpack.c.l.b16 %v5816
    %v6134 = vunpack.c.h.b16 %v5816
    %v6135 = vunpack.c.l.b16 %v5817
    %v6136 = vunpack.c.h.b16 %v5817
    %v6137 = vunpack.c.l.b16 %v5818
    %v6138 = vunpack.c.h.b16 %v5818
    %v6139 = vunpack.c.l.b16 %v5819
    %v6140 = vunpack.c.h.b16 %v5819
    %v6141 = vunpack.c.l.b16 %v5820
    %v6142 = vunpack.c.h.b16 %v5820
    %v6143 = vunpack.c.l.b16 %v5821
    %v6144 = vunpack.c.h.b16 %v5821
    %v6145 = vunpack.c.l.b16 %v5822
    %v6146 = vunpack.c.h.b16 %v5822
    %v6147 = vunpack.c.l.b16 %v5823
    %v6148 = vunpack.c.h.b16 %v5823
    %v6149 = vunpack.c.l.b16 %v5824
    %v6150 = vunpack.c.h.b16 %v5824
    %v6151 = vunpack.c.l.b16 %v5825
    %v6152 = vunpack.c.h.b16 %v5825
    %v6153 = vunpack.c.l.b16 %v5826
    %v6154 = vunpack.c.h.b16 %v5826
    %v6155 = vunpack.c.l.b16 %v5827
    %v6156 = vunpack.c.h.b16 %v5827
    %v6157 = vunpack.c.l.b16 %v5828
    %v6158 = vunpack.c.h.b16 %v5828
    %v6159 = vunpack.c.l.b16 %v5829
    %v6160 = vunpack.c.h.b16 %v5829
    %v6161 = vunpack.c.l.b16 %v5830
    %v6162 = vunpack.c.h.b16 %v5830
    %v6163 = vunpack.c.l.b16 %v5831
    %v6164 = vunpack.c.h.b16 %v5831
    %v6165 = vunpack.c.l.b16 %v5832
    %v6166 = vunpack.c.h.b16 %v5832
    %v6167 = vunpack.c.l.b16 %v5833
    %v6168 = vunpack.c.h.b16 %v5833
    %v6169 = vunpack.c.l.b16 %v5834
    %v6170 = vunpack.c.h.b16 %v5834
    %v6171 = vunpack.c.l.b16 %v5835
    %v6172 = vunpack.c.h.b16 %v5835
    %v6173 = vunpack.c.l.b16 %v5836
    %v6174 = vunpack.c.h.b16 %v5836
    %v6175 = vunpack.c.l.b16 %v5837
    %v6176 = vunpack.c.h.b16 %v5837
    %v6177 = vunpack.c.l.b16 %v5838
    %v6178 = vunpack.c.h.b16 %v5838
    %v6179 = vunpack.c.l.b16 %v5839
    %v6180 = vunpack.c.h.b16 %v5839
    %v6181 = vunpack.c.l.b16 %v5840
    %v6182 = vunpack.c.h.b16 %v5840
    %v6183 = vunpack.c.l.b16 %v5841
    %v6184 = vunpack.c.h.b16 %v5841
    %v6185 = vunpack.c.l.b16 %v5842
    %v6186 = vunpack.c.h.b16 %v5842
    %v6187 = vunpack.c.l.b16 %v5843
    %v6188 = vunpack.c.h.b16 %v5843
    %v6189 = vunpack.c.l.b16 %v5844
    %v6190 = vunpack.c.h.b16 %v5844
    %v6191 = vunpack.c.l.b16 %v5845
    %v6192 = vunpack.c.h.b16 %v5845
    %v6193 = vunpack.c.l.b16 %v5846
    %v6194 = vunpack.c.h.b16 %v5846
    %v6195 = vunpack.c.l.b16 %v5847
    %v6196 = vunpack.c.h.b16 %v5847
    %v6197 = vunpack.c.l.b16 %v5848
    %v6198 = vunpack.c.h.b16 %v5848
    %v6199 = vunpack.c.l.b16 %v5849
    %v6200 = vunpack.c.h.b16 %v5849
    %v6201 = vunpack.c.l.b16 %v5850
    %v6202 = vunpack.c.h.b16 %v5850
    %v6203 = vunpack.c.l.b16 %v5851
    %v6204 = vunpack.c.h.b16 %v5851
    %v6205 = vunpack.c.l.b16 %v5852
    %v6206 = vunpack.c.h.b16 %v5852
    %v6207 = vunpack.c.l.b16 %v5853
    %v6208 = vunpack.c.h.b16 %v5853
    %v6209 = vunpack.c.l.b16 %v5854
    %v6210 = vunpack.c.h.b16 %v5854
    %v6211 = vunpack.c.l.b16 %v5855
    %v6212 = vunpack.c.h.b16 %v5855
    %v6213 = vunpack.c.l.b16 %v5856
    %v6214 = vunpack.c.h.b16 %v5856
    %v6215 = vunpack.c.l.b16 %v5857
    %v6216 = vunpack.c.h.b16 %v5857
    %v6217 = vunpack.c.l.b16 %v5858
    %v6218 = vunpack.c.h.b16 %v5858
    %v6219 = vunpack.c.l.b16 %v5859
    %v6220 = vunpack.c.h.b16 %v5859
    %v6221 = vunpack.c.l.b16 %v5860
    %v6222 = vunpack.c.h.b16 %v5860
    %v6223 = vunpack.c.l.b16 %v5861
    %v6224 = vunpack.c.h.b16 %v5861
    %v6225 = vunpack.c.l.b16 %v5862
    %v6226 = vunpack.c.h.b16 %v5862
    %v6227 = vunpack.c.l.b16 %v5863
    %v6228 = vunpack.c.h.b16 %v5863
    %v6229 = vunpack.c.l.b16 %v5864
    %v6230 = vunpack.c.h.b16 %v5864
    %v6231 = vunpack.c.l.b16 %v5865
    %v6232 = vunpack.c.h.b16 %v5865
    %v6233 = vunpack.c.l.b16 %v5866
    %v6234 = vunpack.c.h.b16 %v5866
    %v6235 = vunpack.c.l.b16 %v5867
    %v6236 = vunpack.c.h.b16 %v5867
    %v6237 = vunpack.c.l.b16 %v5868
    %v6238 = vunpack.c.h.b16 %v5868
    %v6239 = vunpack.c.l.b16 %v5869
    %v6240 = vunpack.c.h.b16 %v5869
    %v6241 = vunpack.c.l.b16 %v5870
    %v6242 = vunpack.c.h.b16 %v5870
    %v6243 = vunpack.c.l.b16 %v5871
    %v6244 = vunpack.c.h.b16 %v5871
    %v6245 = vunpack.c.l.b16 %v5872
    %v6246 = vunpack.c.h.b16 %v5872
    %v6247 = vunpack.c.l.b16 %v5873
    %v6248 = vunpack.c.h.b16 %v5873
    %v6249 = vunpack.c.l.b16 %v5874
    %v6250 = vunpack.c.h.b16 %v5874
    %v6251 = vunpack.c.l.b16 %v5875
    %v6252 = vunpack.c.h.b16 %v5875
    %v6253 = vunpack.c.l.b16 %v5876
    %v6254 = vunpack.c.h.b16 %v5876
    %v6255 = vunpack.c.l.b16 %v5877
    %v6256 = vunpack.c.h.b16 %v5877
    %v6257 = vunpack.c.l.b16 %v5878
    %v6258 = vunpack.c.h.b16 %v5878
    %v6259 = vunpack.c.l.b16 %v5879
    %v6260 = vunpack.c.h.b16 %v5879
    %v6261 = vunpack.c.l.b16 %v5880
    %v6262 = vunpack.c.h.b16 %v5880
    %v6263 = vunpack.c.l.b16 %v5881
    %v6264 = vunpack.c.h.b16 %v5881
    %v6265 = vunpack.c.l.b16 %v5882
    %v6266 = vunpack.c.h.b16 %v5882
    %v6267 = vunpack.c.l.b16 %v5883
    %v6268 = vunpack.c.h.b16 %v5883
    %v6269 = vunpack.c.l.b16 %v5884
    %v6270 = vunpack.c.h.b16 %v5884
    %v6271 = vunpack.c.l.b16 %v5885
    %v6272 = vunpack.c.h.b16 %v5885
    %v6273 = vunpack.c.l.b16 %v5886
    %v6274 = vunpack.c.h.b16 %v5886
    %v6275 = vunpack.c.l.b16 %v5887
    %v6276 = vunpack.c.h.b16 %v5887
    %v6277 = vunpack.c.l.b16 %v5888
    %v6278 = vunpack.c.h.b16 %v5888
    %v6279 = vunpack.c.l.b16 %v5889
    %v6280 = vunpack.c.h.b16 %v5889
    %v6281 = vunpack.c.l.b16 %v5890
    %v6282 = vunpack.c.h.b16 %v5890
    %v6283 = vunpack.c.l.b16 %v5891
    %v6284 = vunpack.c.h.b16 %v5891
    %v6285 = vunpack.c.l.b16 %v5892
    %v6286 = vunpack.c.h.b16 %v5892
    %v6287 = vunpack.c.l.b16 %v5893
    %v6288 = vunpack.c.h.b16 %v5893
    %v6289 = vunpack.c.l.b16 %v5894
    %v6290 = vunpack.c.h.b16 %v5894
    %v6291 = vunpack.c.l.b16 %v5895
    %v6292 = vunpack.c.h.b16 %v5895
    %v6293 = vunpack.c.l.b16 %v5896
    %v6294 = vunpack.c.h.b16 %v5896
    %v6295 = vunpack.c.l.b16 %v5897
    %v6296 = vunpack.c.h.b16 %v5897
    %v6297 = vunpack.c.l.b16 %v5898
    %v6298 = vunpack.c.h.b16 %v5898
    %v6299 = vunpack.c.l.b16 %v5899
    %v6300 = vunpack.c.h.b16 %v5899
    %v6301 = vunpack.c.l.b16 %v5900
    %v6302 = vunpack.c.h.b16 %v5900
    %v6303 = vunpack.c.l.b16 %v5901
    %v6304 = vunpack.c.h.b16 %v5901
    %v6305 = vunpack.c.l.b16 %v5902
    %v6306 = vunpack.c.h.b16 %v5902
    %v6307 = vunpack.c.l.b16 %v5903
    %v6308 = vunpack.c.h.b16 %v5903
    %v6309 = vunpack.c.l.b16 %v5904
    %v6310 = vunpack.c.h.b16 %v5904
    %v6311 = vpack.c.b16 %v6059, %v6055
    %v6312 = vpack.c.b16 %v6060, %v6056
    %v6313 = vpack.c.b16 %v6061, %v6057
    %v6314 = vpack.c.b16 %v6062, %v6058
    %v6315 = vpack.c.b16 %v6067, %v6063
    %v6316 = vpack.c.b16 %v6068, %v6064
    %v6317 = vpack.c.b16 %v6069, %v6065
    %v6318 = vpack.c.b16 %v6070, %v6066
    %v6319 = vpack.c.b16 %v6075, %v6071
    %v6320 = vpack.c.b16 %v6076, %v6072
    %v6321 = vpack.c.b16 %v6077, %v6073
    %v6322 = vpack.c.b16 %v6078, %v6074
    %v6323 = vpack.c.b16 %v6083, %v6079
    %v6324 = vpack.c.b16 %v6084, %v6080
    %v6325 = vpack.c.b16 %v6085, %v6081
    %v6326 = vpack.c.b16 %v6086, %v6082
    %v6327 = vpack.c.b16 %v6091, %v6087
    %v6328 = vpack.c.b16 %v6092, %v6088
    %v6329 = vpack.c.b16 %v6093, %v6089
    %v6330 = vpack.c.b16 %v6094, %v6090
    %v6331 = vpack.c.b16 %v6099, %v6095
    %v6332 = vpack.c.b16 %v6100, %v6096
    %v6333 = vpack.c.b16 %v6101, %v6097
    %v6334 = vpack.c.b16 %v6102, %v6098
    %v6335 = vpack.c.b16 %v6107, %v6103
    %v6336 = vpack.c.b16 %v6108, %v6104
    %v6337 = vpack.c.b16 %v6109, %v6105
    %v6338 = vpack.c.b16 %v6110, %v6106
    %v6339 = vpack.c.b16 %v6115, %v6111
    %v6340 = vpack.c.b16 %v6116, %v6112
    %v6341 = vpack.c.b16 %v6117, %v6113
    %v6342 = vpack.c.b16 %v6118, %v6114
    %v6343 = vpack.c.b16 %v6123, %v6119
    %v6344 = vpack.c.b16 %v6124, %v6120
    %v6345 = vpack.c.b16 %v6125, %v6121
    %v6346 = vpack.c.b16 %v6126, %v6122
    %v6347 = vpack.c.b16 %v6131, %v6127
    %v6348 = vpack.c.b16 %v6132, %v6128
    %v6349 = vpack.c.b16 %v6133, %v6129
    %v6350 = vpack.c.b16 %v6134, %v6130
    %v6351 = vpack.c.b16 %v6139, %v6135
    %v6352 = vpack.c.b16 %v6140, %v6136
    %v6353 = vpack.c.b16 %v6141, %v6137
    %v6354 = vpack.c.b16 %v6142, %v6138
    %v6355 = vpack.c.b16 %v6147, %v6143
    %v6356 = vpack.c.b16 %v6148, %v6144
    %v6357 = vpack.c.b16 %v6149, %v6145
    %v6358 = vpack.c.b16 %v6150, %v6146
    %v6359 = vpack.c.b16 %v6155, %v6151
    %v6360 = vpack.c.b16 %v6156, %v6152
    %v6361 = vpack.c.b16 %v6157, %v6153
    %v6362 = vpack.c.b16 %v6158, %v6154
    %v6363 = vpack.c.b16 %v6163, %v6159
    %v6364 = vpack.c.b16 %v6164, %v6160
    %v6365 = vpack.c.b16 %v6165, %v6161
    %v6366 = vpack.c.b16 %v6166, %v6162
    %v6367 = vpack.c.b16 %v6171, %v6167
    %v6368 = vpack.c.b16 %v6172, %v6168
    %v6369 = vpack.c.b16 %v6173, %v6169
    %v6370 = vpack.c.b16 %v6174, %v6170
    %v6371 = vpack.c.b16 %v6179, %v6175
    %v6372 = vpack.c.b16 %v6180, %v6176
    %v6373 = vpack.c.b16 %v6181, %v6177
    %v6374 = vpack.c.b16 %v6182, %v6178
    %v6375 = vpack.c.b16 %v6187, %v6183
    %v6376 = vpack.c.b16 %v6188, %v6184
    %v6377 = vpack.c.b16 %v6189, %v6185
    %v6378 = vpack.c.b16 %v6190, %v6186
    %v6379 = vpack.c.b16 %v6195, %v6191
    %v6380 = vpack.c.b16 %v6196, %v6192
    %v6381 = vpack.c.b16 %v6197, %v6193
    %v6382 = vpack.c.b16 %v6198, %v6194
    %v6383 = vpack.c.b16 %v6203, %v6199
    %v6384 = vpack.c.b16 %v6204, %v6200
    %v6385 = vpack.c.b16 %v6205, %v6201
    %v6386 = vpack.c.b16 %v6206, %v6202
    %v6387 = vpack.c.b16 %v6211, %v6207
    %v6388 = vpack.c.b16 %v6212, %v6208
    %v6389 = vpack.c.b16 %v6213, %v6209
    %v6390 = vpack.c.b16 %v6214, %v6210
    %v6391 = vpack.c.b16 %v6219, %v6215
    %v6392 = vpack.c.b16 %v6220, %v6216
    %v6393 = vpack.c.b16 %v6221, %v6217
    %v6394 = vpack.c.b16 %v6222, %v6218
    %v6395 = vpack.c.b16 %v6227, %v6223
    %v6396 = vpack.c.b16 %v6228, %v6224
    %v6397 = vpack.c.b16 %v6229, %v6225
    %v6398 = vpack.c.b16 %v6230, %v6226
    %v6399 = vpack.c.b16 %v6235, %v6231
    %v6400 = vpack.c.b16 %v6236, %v6232
    %v6401 = vpack.c.b16 %v6237, %v6233
    %v6402 = vpack.c.b16 %v6238, %v6234
    %v6403 = vpack.c.b16 %v6243, %v6239
    %v6404 = vpack.c.b16 %v6244, %v6240
    %v6405 = vpack.c.b16 %v6245, %v6241
    %v6406 = vpack.c.b16 %v6246, %v6242
    %v6407 = vpack.c.b16 %v6251, %v6247
    %v6408 = vpack.c.b16 %v6252, %v6248
    %v6409 = vpack.c.b16 %v6253, %v6249
    %v6410 = vpack.c.b16 %v6254, %v6250
    %v6411 = vpack.c.b16 %v6259, %v6255
    %v6412 = vpack.c.b16 %v6260, %v6256
    %v6413 = vpack.c.b16 %v6261, %v6257
    %v6414 = vpack.c.b16 %v6262, %v6258
    %v6415 = vpack.c.b16 %v6267, %v6263
    %v6416 = vpack.c.b16 %v6268, %v6264
    %v6417 = vpack.c.b16 %v6269, %v6265
    %v6418 = vpack.c.b16 %v6270, %v6266
    %v6419 = vpack.c.b16 %v6275, %v6271
    %v6420 = vpack.c.b16 %v6276, %v6272
    %v6421 = vpack.c.b16 %v6277, %v6273
    %v6422 = vpack.c.b16 %v6278, %v6274
    %v6423 = vpack.c.b16 %v6283, %v6279
    %v6424 = vpack.c.b16 %v6284, %v6280
    %v6425 = vpack.c.b16 %v6285, %v6281
    %v6426 = vpack.c.b16 %v6286, %v6282
    %v6427 = vpack.c.b16 %v6291, %v6287
    %v6428 = vpack.c.b16 %v6292, %v6288
    %v6429 = vpack.c.b16 %v6293, %v6289
    %v6430 = vpack.c.b16 %v6294, %v6290
    %v6431 = vpack.c.b16 %v6299, %v6295
    %v6432 = vpack.c.b16 %v6300, %v6296
    %v6433 = vpack.c.b16 %v6301, %v6297
    %v6434 = vpack.c.b16 %v6302, %v6298
    %v6435 = vpack.c.b16 %v6307, %v6303
    %v6436 = vpack.c.b16 %v6308, %v6304
    %v6437 = vpack.c.b16 %v6309, %v6305
    %v6438 = vpack.c.b16 %v6310, %v6306
    %6567 = vmatprep.subr.bf16.mxu0 %v6312
    %6568 = vmatpush1.bf16.msra.mxu0 %v6311
    %6569 = vmatprep.subr.bf16.mxu0 %v6316
    %6570 = vmatpush1.bf16.msra.mxu0 %v6315
    %6571 = vmatprep.subr.bf16.mxu0 %v6320
    %6572 = vmatpush1.bf16.msra.mxu0 %v6319
    %6573 = vmatprep.subr.bf16.mxu0 %v6324
    %6574 = vmatpush1.bf16.msra.mxu0 %v6323
    %6575 = vmatprep.subr.bf16.mxu0 %v6328
    %6576 = vmatpush1.bf16.msra.mxu0 %v6327
    %6577 = vmatprep.subr.bf16.mxu0 %v6332
    %6578 = vmatpush1.bf16.msra.mxu0 %v6331
    %6579 = vmatprep.subr.bf16.mxu0 %v6336
    %6580 = vmatpush1.bf16.msra.mxu0 %v6335
    %6581 = vmatprep.subr.bf16.mxu0 %v6340
    %6582 = vmatpush1.bf16.msra.mxu0 %v6339
    %6583 = vmatprep.subr.bf16.mxu0 %v6344
    %6584 = vmatpush1.bf16.msra.mxu0 %v6343
    %6585 = vmatprep.subr.bf16.mxu0 %v6348
    %6586 = vmatpush1.bf16.msra.mxu0 %v6347
    %6587 = vmatprep.subr.bf16.mxu0 %v6352
    %6588 = vmatpush1.bf16.msra.mxu0 %v6351
    %6589 = vmatprep.subr.bf16.mxu0 %v6356
    %6590 = vmatpush1.bf16.msra.mxu0 %v6355
    %6591 = vmatprep.subr.bf16.mxu0 %v6360
    %6592 = vmatpush1.bf16.msra.mxu0 %v6359
    %6593 = vmatprep.subr.bf16.mxu0 %v6364
    %6594 = vmatpush1.bf16.msra.mxu0 %v6363
    %6595 = vmatprep.subr.bf16.mxu0 %v6368
    %6596 = vmatpush1.bf16.msra.mxu0 %v6367
    %6597 = vmatprep.subr.bf16.mxu0 %v6372
    %6598 = vmatpush1.bf16.msra.mxu0 %v6371
    %6599 = vmatprep.mubr.bf16.mxu0 %v88
    %6600 = vmatmul.mubr.bf16.gmra.mrb[0].mxu0 %v87
    %v6601 = vpop.f32.mrb[0].mxu0
    %v6602 = vadd.f32 %v5910, %v6601
    %v6603 = vpop.f32.mrb[0].mxu0
    %v6604 = vadd.f32 %v5914, %v6603
    %v6605 = vpop.f32.mrb[0].mxu0
    %v6606 = vpop.f32.mrb[0].mxu0
    %6607 = vdwg.mxu0
    %6608 = vmatprep.subr.bf16.mxu0 %v6376
    %6609 = vmatpush1.bf16.msra.mxu0 %v6375
    %6610 = vmatprep.subr.bf16.mxu0 %v6380
    %6611 = vmatpush1.bf16.msra.mxu0 %v6379
    %6612 = vmatprep.subr.bf16.mxu0 %v6384
    %6613 = vmatpush1.bf16.msra.mxu0 %v6383
    %6614 = vmatprep.subr.bf16.mxu0 %v6388
    %6615 = vmatpush1.bf16.msra.mxu0 %v6387
    %6616 = vmatprep.subr.bf16.mxu0 %v6392
    %6617 = vmatpush1.bf16.msra.mxu0 %v6391
    %6618 = vmatprep.subr.bf16.mxu0 %v6396
    %6619 = vmatpush1.bf16.msra.mxu0 %v6395
    %6620 = vmatprep.subr.bf16.mxu0 %v6400
    %6621 = vmatpush1.bf16.msra.mxu0 %v6399
    %6622 = vmatprep.subr.bf16.mxu0 %v6404
    %6623 = vmatpush1.bf16.msra.mxu0 %v6403
    %6624 = vmatprep.subr.bf16.mxu0 %v6408
    %6625 = vmatpush1.bf16.msra.mxu0 %v6407
    %6626 = vmatprep.subr.bf16.mxu0 %v6412
    %6627 = vmatpush1.bf16.msra.mxu0 %v6411
    %6628 = vmatprep.subr.bf16.mxu0 %v6416
    %6629 = vmatpush1.bf16.msra.mxu0 %v6415
    %6630 = vmatprep.subr.bf16.mxu0 %v6420
    %6631 = vmatpush1.bf16.msra.mxu0 %v6419
    %6632 = vmatprep.subr.bf16.mxu0 %v6424
    %6633 = vmatpush1.bf16.msra.mxu0 %v6423
    %6634 = vmatprep.subr.bf16.mxu0 %v6428
    %6635 = vmatpush1.bf16.msra.mxu0 %v6427
    %6636 = vmatprep.subr.bf16.mxu0 %v6432
    %6637 = vmatpush1.bf16.msra.mxu0 %v6431
    %6638 = vmatprep.subr.bf16.mxu0 %v6436
    %6639 = vmatpush1.bf16.msra.mxu0 %v6435
    %6640 = vmatprep.mubr.bf16.mxu0 %v90
    %6641 = vmatmul.mubr.bf16.gmra.mrb[0].mxu0 %v89
    %v6642 = vpop.f32.mrb[0].mxu0
    %v6643 = vadd.f32 %v6602, %v6642
    %v6644 = vpop.f32.mrb[0].mxu0
    %v6645 = vadd.f32 %v6604, %v6644
    %v6646 = vpop.f32.mrb[0].mxu0
    %v6647 = vpop.f32.mrb[0].mxu0
    %6648 = vdwg.mxu0
    %6649 = vmatprep.subr.bf16.mxu0 %v6314
    %6650 = vmatpush1.bf16.msra.mxu0 %v6313
    %6651 = vmatprep.subr.bf16.mxu0 %v6318
    %6652 = vmatpush1.bf16.msra.mxu0 %v6317
    %6653 = vmatprep.subr.bf16.mxu0 %v6322
    %6654 = vmatpush1.bf16.msra.mxu0 %v6321
    %6655 = vmatprep.subr.bf16.mxu0 %v6326
    %6656 = vmatpush1.bf16.msra.mxu0 %v6325
    %6657 = vmatprep.subr.bf16.mxu0 %v6330
    %6658 = vmatpush1.bf16.msra.mxu0 %v6329
    %6659 = vmatprep.subr.bf16.mxu0 %v6334
    %6660 = vmatpush1.bf16.msra.mxu0 %v6333
    %6661 = vmatprep.subr.bf16.mxu0 %v6338
    %6662 = vmatpush1.bf16.msra.mxu0 %v6337
    %6663 = vmatprep.subr.bf16.mxu0 %v6342
    %6664 = vmatpush1.bf16.msra.mxu0 %v6341
    %6665 = vmatprep.subr.bf16.mxu0 %v6346
    %6666 = vmatpush1.bf16.msra.mxu0 %v6345
    %6667 = vmatprep.subr.bf16.mxu0 %v6350
    %6668 = vmatpush1.bf16.msra.mxu0 %v6349
    %6669 = vmatprep.subr.bf16.mxu0 %v6354
    %6670 = vmatpush1.bf16.msra.mxu0 %v6353
    %6671 = vmatprep.subr.bf16.mxu0 %v6358
    %6672 = vmatpush1.bf16.msra.mxu0 %v6357
    %6673 = vmatprep.subr.bf16.mxu0 %v6362
    %6674 = vmatpush1.bf16.msra.mxu0 %v6361
    %6675 = vmatprep.subr.bf16.mxu0 %v6366
    %6676 = vmatpush1.bf16.msra.mxu0 %v6365
    %6677 = vmatprep.subr.bf16.mxu0 %v6370
    %6678 = vmatpush1.bf16.msra.mxu0 %v6369
    %6679 = vmatprep.subr.bf16.mxu0 %v6374
    %6680 = vmatpush1.bf16.msra.mxu0 %v6373
    %6681 = vmatprep.mubr.bf16.mxu0 %v88
    %6682 = vmatmul.mubr.bf16.gmra.mrb[0].mxu0 %v87
    %v6683 = vpop.f32.mrb[0].mxu0
    %v6684 = vadd.f32 %v5918, %v6683
    %v6685 = vpop.f32.mrb[0].mxu0
    %v6686 = vadd.f32 %v5922, %v6685
    %v6687 = vpop.f32.mrb[0].mxu0
    %v6688 = vpop.f32.mrb[0].mxu0
    %6689 = vdwg.mxu0
    %6690 = vmatprep.subr.bf16.mxu0 %v6378
    %6691 = vmatpush1.bf16.msra.mxu0 %v6377
    %6692 = vmatprep.subr.bf16.mxu0 %v6382
    %6693 = vmatpush1.bf16.msra.mxu0 %v6381
    %6694 = vmatprep.subr.bf16.mxu0 %v6386
    %6695 = vmatpush1.bf16.msra.mxu0 %v6385
    %6696 = vmatprep.subr.bf16.mxu0 %v6390
    %6697 = vmatpush1.bf16.msra.mxu0 %v6389
    %6698 = vmatprep.subr.bf16.mxu0 %v6394
    %6699 = vmatpush1.bf16.msra.mxu0 %v6393
    %6700 = vmatprep.subr.bf16.mxu0 %v6398
    %6701 = vmatpush1.bf16.msra.mxu0 %v6397
    %6702 = vmatprep.subr.bf16.mxu0 %v6402
    %6703 = vmatpush1.bf16.msra.mxu0 %v6401
    %6704 = vmatprep.subr.bf16.mxu0 %v6406
    %6705 = vmatpush1.bf16.msra.mxu0 %v6405
    %6706 = vmatprep.subr.bf16.mxu0 %v6410
    %6707 = vmatpush1.bf16.msra.mxu0 %v6409
    %6708 = vmatprep.subr.bf16.mxu0 %v6414
    %6709 = vmatpush1.bf16.msra.mxu0 %v6413
    %6710 = vmatprep.subr.bf16.mxu0 %v6418
    %6711 = vmatpush1.bf16.msra.mxu0 %v6417
    %6712 = vmatprep.subr.bf16.mxu0 %v6422
    %6713 = vmatpush1.bf16.msra.mxu0 %v6421
    %6714 = vmatprep.subr.bf16.mxu0 %v6426
    %6715 = vmatpush1.bf16.msra.mxu0 %v6425
    %6716 = vmatprep.subr.bf16.mxu0 %v6430
    %6717 = vmatpush1.bf16.msra.mxu0 %v6429
    %6718 = vmatprep.subr.bf16.mxu0 %v6434
    %6719 = vmatpush1.bf16.msra.mxu0 %v6433
    %6720 = vmatprep.subr.bf16.mxu0 %v6438
    %6721 = vmatpush1.bf16.msra.mxu0 %v6437
    %6722 = vmatprep.mubr.bf16.mxu0 %v90
    %6723 = vmatmul.mubr.bf16.gmra.mrb[0].mxu0 %v89
    %v6724 = vpop.f32.mrb[0].mxu0
    %v6725 = vadd.f32 %v6684, %v6724
    %v6726 = vpop.f32.mrb[0].mxu0
    %v6727 = vadd.f32 %v6686, %v6726
    %v6728 = vpop.f32.mrb[0].mxu0
    %v6729 = vpop.f32.mrb[0].mxu0
    %6730 = vdwg.mxu0
    %v6731 = vmax.f32 %v6643, 0.0
    %v6732 = vmax.f32 %v6645, 0.0
    %v6733 = vmax.f32 %v6725, 0.0
    %v6734 = vmax.f32 %v6727, 0.0
    %v6735 = vpack.c.bf16 %v6731, %v6731
    %v6736 = vpack.c.bf16 %v6732, %v6732
    %v6737 = vpack.c.bf16 %v6733, %v6733
    %v6738 = vpack.c.bf16 %v6734, %v6734
    %v6739 = vld [vmem:[#allocation8 + $0xc00] sm:$0xff]
    %v6740 = vld [vmem:[#allocation8 + $0xc08] sm:$0xff]
    %v6741 = vld [vmem:[#allocation8 + $0xc10] sm:$0xff]
    %v6742 = vld [vmem:[#allocation8 + $0xc18] sm:$0xff]
    %v6743 = vld [vmem:[#allocation8 + $0xc20] sm:$0xff]
    %v6744 = vld [vmem:[#allocation8 + $0xc28] sm:$0xff]
    %v6745 = vld [vmem:[#allocation8 + $0xc30] sm:$0xff]
    %v6746 = vld [vmem:[#allocation8 + $0xc38] sm:$0xff]
    %v6747 = vld [vmem:[#allocation8 + $0xc40] sm:$0xff]
    %v6748 = vld [vmem:[#allocation8 + $0xc48] sm:$0xff]
    %v6749 = vld [vmem:[#allocation8 + $0xc50] sm:$0xff]
    %v6750 = vld [vmem:[#allocation8 + $0xc58] sm:$0xff]
    %v6751 = vld [vmem:[#allocation8 + $0xc60] sm:$0xff]
    %v6752 = vld [vmem:[#allocation8 + $0xc68] sm:$0xff]
    %v6753 = vld [vmem:[#allocation8 + $0xc70] sm:$0xff]
    %v6754 = vld [vmem:[#allocation8 + $0xc78] sm:$0xff]
    %v6755 = vld [vmem:[#allocation8 + $0xc80] sm:$0xff]
    %v6756 = vld [vmem:[#allocation8 + $0xc88] sm:$0xff]
    %v6757 = vld [vmem:[#allocation8 + $0xc90] sm:$0xff]
    %v6758 = vld [vmem:[#allocation8 + $0xc98] sm:$0xff]
    %v6759 = vld [vmem:[#allocation8 + $0xca0] sm:$0xff]
    %v6760 = vld [vmem:[#allocation8 + $0xca8] sm:$0xff]
    %v6761 = vld [vmem:[#allocation8 + $0xcb0] sm:$0xff]
    %v6762 = vld [vmem:[#allocation8 + $0xcb8] sm:$0xff]
    %v6763 = vld [vmem:[#allocation8 + $0xcc0] sm:$0xff]
    %v6764 = vld [vmem:[#allocation8 + $0xcc8] sm:$0xff]
    %v6765 = vld [vmem:[#allocation8 + $0xcd0] sm:$0xff]
    %v6766 = vld [vmem:[#allocation8 + $0xcd8] sm:$0xff]
    %v6767 = vld [vmem:[#allocation8 + $0xce0] sm:$0xff]
    %v6768 = vld [vmem:[#allocation8 + $0xce8] sm:$0xff]
    %v6769 = vld [vmem:[#allocation8 + $0xcf0] sm:$0xff]
    %v6770 = vld [vmem:[#allocation8 + $0xcf8] sm:$0xff]
    %v6771 = vld [vmem:[#allocation8 + $0xd00] sm:$0xff]
    %v6772 = vld [vmem:[#allocation8 + $0xd08] sm:$0xff]
    %v6773 = vld [vmem:[#allocation8 + $0xd10] sm:$0xff]
    %v6774 = vld [vmem:[#allocation8 + $0xd18] sm:$0xff]
    %v6775 = vld [vmem:[#allocation8 + $0xd20] sm:$0xff]
    %v6776 = vld [vmem:[#allocation8 + $0xd28] sm:$0xff]
    %v6777 = vld [vmem:[#allocation8 + $0xd30] sm:$0xff]
    %v6778 = vld [vmem:[#allocation8 + $0xd38] sm:$0xff]
    %v6779 = vld [vmem:[#allocation8 + $0xd40] sm:$0xff]
    %v6780 = vld [vmem:[#allocation8 + $0xd48] sm:$0xff]
    %v6781 = vld [vmem:[#allocation8 + $0xd50] sm:$0xff]
    %v6782 = vld [vmem:[#allocation8 + $0xd58] sm:$0xff]
    %v6783 = vld [vmem:[#allocation8 + $0xd60] sm:$0xff]
    %v6784 = vld [vmem:[#allocation8 + $0xd68] sm:$0xff]
    %v6785 = vld [vmem:[#allocation8 + $0xd70] sm:$0xff]
    %v6786 = vld [vmem:[#allocation8 + $0xd78] sm:$0xff]
    %v6787 = vld [vmem:[#allocation8 + $0xd80] sm:$0xff]
    %v6788 = vld [vmem:[#allocation8 + $0xd88] sm:$0xff]
    %v6789 = vld [vmem:[#allocation8 + $0xd90] sm:$0xff]
    %v6790 = vld [vmem:[#allocation8 + $0xd98] sm:$0xff]
    %v6791 = vld [vmem:[#allocation8 + $0xda0] sm:$0xff]
    %v6792 = vld [vmem:[#allocation8 + $0xda8] sm:$0xff]
    %v6793 = vld [vmem:[#allocation8 + $0xdb0] sm:$0xff]
    %v6794 = vld [vmem:[#allocation8 + $0xdb8] sm:$0xff]
    %v6795 = vld [vmem:[#allocation8 + $0xdc0] sm:$0xff]
    %v6796 = vld [vmem:[#allocation8 + $0xdc8] sm:$0xff]
    %v6797 = vld [vmem:[#allocation8 + $0xdd0] sm:$0xff]
    %v6798 = vld [vmem:[#allocation8 + $0xdd8] sm:$0xff]
    %v6799 = vld [vmem:[#allocation8 + $0xde0] sm:$0xff]
    %v6800 = vld [vmem:[#allocation8 + $0xde8] sm:$0xff]
    %v6801 = vld [vmem:[#allocation8 + $0xdf0] sm:$0xff]
    %v6802 = vld [vmem:[#allocation8 + $0xdf8] sm:$0xff]
    %v6803 = vld [vmem:[#allocation8 + $0xe00] sm:$0xff]
    %v6804 = vld [vmem:[#allocation8 + $0xe08] sm:$0xff]
    %v6805 = vld [vmem:[#allocation8 + $0xe10] sm:$0xff]
    %v6806 = vld [vmem:[#allocation8 + $0xe18] sm:$0xff]
    %v6807 = vld [vmem:[#allocation8 + $0xe20] sm:$0xff]
    %v6808 = vld [vmem:[#allocation8 + $0xe28] sm:$0xff]
    %v6809 = vld [vmem:[#allocation8 + $0xe30] sm:$0xff]
    %v6810 = vld [vmem:[#allocation8 + $0xe38] sm:$0xff]
    %v6811 = vld [vmem:[#allocation8 + $0xe40] sm:$0xff]
    %v6812 = vld [vmem:[#allocation8 + $0xe48] sm:$0xff]
    %v6813 = vld [vmem:[#allocation8 + $0xe50] sm:$0xff]
    %v6814 = vld [vmem:[#allocation8 + $0xe58] sm:$0xff]
    %v6815 = vld [vmem:[#allocation8 + $0xe60] sm:$0xff]
    %v6816 = vld [vmem:[#allocation8 + $0xe68] sm:$0xff]
    %v6817 = vld [vmem:[#allocation8 + $0xe70] sm:$0xff]
    %v6818 = vld [vmem:[#allocation8 + $0xe78] sm:$0xff]
    %v6819 = vld [vmem:[#allocation8 + $0xe80] sm:$0xff]
    %v6820 = vld [vmem:[#allocation8 + $0xe88] sm:$0xff]
    %v6821 = vld [vmem:[#allocation8 + $0xe90] sm:$0xff]
    %v6822 = vld [vmem:[#allocation8 + $0xe98] sm:$0xff]
    %v6823 = vld [vmem:[#allocation8 + $0xea0] sm:$0xff]
    %v6824 = vld [vmem:[#allocation8 + $0xea8] sm:$0xff]
    %v6825 = vld [vmem:[#allocation8 + $0xeb0] sm:$0xff]
    %v6826 = vld [vmem:[#allocation8 + $0xeb8] sm:$0xff]
    %v6827 = vld [vmem:[#allocation8 + $0xec0] sm:$0xff]
    %v6828 = vld [vmem:[#allocation8 + $0xec8] sm:$0xff]
    %v6829 = vld [vmem:[#allocation8 + $0xed0] sm:$0xff]
    %v6830 = vld [vmem:[#allocation8 + $0xed8] sm:$0xff]
    %v6831 = vld [vmem:[#allocation8 + $0xee0] sm:$0xff]
    %v6832 = vld [vmem:[#allocation8 + $0xee8] sm:$0xff]
    %v6833 = vld [vmem:[#allocation8 + $0xef0] sm:$0xff]
    %v6834 = vld [vmem:[#allocation8 + $0xef8] sm:$0xff]
    %v6835 = vld [vmem:[#allocation8 + $0xf00] sm:$0xff]
    %v6836 = vld [vmem:[#allocation8 + $0xf08] sm:$0xff]
    %v6837 = vld [vmem:[#allocation8 + $0xf10] sm:$0xff]
    %v6838 = vld [vmem:[#allocation8 + $0xf18] sm:$0xff]
    %v6839 = vld [vmem:[#allocation8 + $0xf20] sm:$0xff]
    %v6840 = vld [vmem:[#allocation8 + $0xf28] sm:$0xff]
    %v6841 = vld [vmem:[#allocation8 + $0xf30] sm:$0xff]
    %v6842 = vld [vmem:[#allocation8 + $0xf38] sm:$0xff]
    %v6843 = vld [vmem:[#allocation8 + $0xf40] sm:$0xff]
    %v6844 = vld [vmem:[#allocation8 + $0xf48] sm:$0xff]
    %v6845 = vld [vmem:[#allocation8 + $0xf50] sm:$0xff]
    %v6846 = vld [vmem:[#allocation8 + $0xf58] sm:$0xff]
    %v6847 = vld [vmem:[#allocation8 + $0xf60] sm:$0xff]
    %v6848 = vld [vmem:[#allocation8 + $0xf68] sm:$0xff]
    %v6849 = vld [vmem:[#allocation8 + $0xf70] sm:$0xff]
    %v6850 = vld [vmem:[#allocation8 + $0xf78] sm:$0xff]
    %v6851 = vld [vmem:[#allocation8 + $0xf80] sm:$0xff]
    %v6852 = vld [vmem:[#allocation8 + $0xf88] sm:$0xff]
    %v6853 = vld [vmem:[#allocation8 + $0xf90] sm:$0xff]
    %v6854 = vld [vmem:[#allocation8 + $0xf98] sm:$0xff]
    %v6855 = vld [vmem:[#allocation8 + $0xfa0] sm:$0xff]
    %v6856 = vld [vmem:[#allocation8 + $0xfa8] sm:$0xff]
    %v6857 = vld [vmem:[#allocation8 + $0xfb0] sm:$0xff]
    %v6858 = vld [vmem:[#allocation8 + $0xfb8] sm:$0xff]
    %v6859 = vld [vmem:[#allocation8 + $0xfc0] sm:$0xff]
    %v6860 = vld [vmem:[#allocation8 + $0xfc8] sm:$0xff]
    %v6861 = vld [vmem:[#allocation8 + $0xfd0] sm:$0xff]
    %v6862 = vld [vmem:[#allocation8 + $0xfd8] sm:$0xff]
    %v6863 = vld [vmem:[#allocation8 + $0xfe0] sm:$0xff]
    %v6864 = vld [vmem:[#allocation8 + $0xfe8] sm:$0xff]
    %v6865 = vld [vmem:[#allocation8 + $0xff0] sm:$0xff]
    %v6866 = vld [vmem:[#allocation8 + $0xff8] sm:$0xff]
    %v6995 = vunpack.c.l.b16 %v6739
    %v6996 = vunpack.c.h.b16 %v6739
    %v6997 = vunpack.c.l.b16 %v6740
    %v6998 = vunpack.c.h.b16 %v6740
    %v6999 = vunpack.c.l.b16 %v6741
    %v7000 = vunpack.c.h.b16 %v6741
    %v7001 = vunpack.c.l.b16 %v6742
    %v7002 = vunpack.c.h.b16 %v6742
    %v7003 = vunpack.c.l.b16 %v6743
    %v7004 = vunpack.c.h.b16 %v6743
    %v7005 = vunpack.c.l.b16 %v6744
    %v7006 = vunpack.c.h.b16 %v6744
    %v7007 = vunpack.c.l.b16 %v6745
    %v7008 = vunpack.c.h.b16 %v6745
    %v7009 = vunpack.c.l.b16 %v6746
    %v7010 = vunpack.c.h.b16 %v6746
    %v7011 = vunpack.c.l.b16 %v6747
    %v7012 = vunpack.c.h.b16 %v6747
    %v7013 = vunpack.c.l.b16 %v6748
    %v7014 = vunpack.c.h.b16 %v6748
    %v7015 = vunpack.c.l.b16 %v6749
    %v7016 = vunpack.c.h.b16 %v6749
    %v7017 = vunpack.c.l.b16 %v6750
    %v7018 = vunpack.c.h.b16 %v6750
    %v7019 = vunpack.c.l.b16 %v6751
    %v7020 = vunpack.c.h.b16 %v6751
    %v7021 = vunpack.c.l.b16 %v6752
    %v7022 = vunpack.c.h.b16 %v6752
    %v7023 = vunpack.c.l.b16 %v6753
    %v7024 = vunpack.c.h.b16 %v6753
    %v7025 = vunpack.c.l.b16 %v6754
    %v7026 = vunpack.c.h.b16 %v6754
    %v7027 = vunpack.c.l.b16 %v6755
    %v7028 = vunpack.c.h.b16 %v6755
    %v7029 = vunpack.c.l.b16 %v6756
    %v7030 = vunpack.c.h.b16 %v6756
    %v7031 = vunpack.c.l.b16 %v6757
    %v7032 = vunpack.c.h.b16 %v6757
    %v7033 = vunpack.c.l.b16 %v6758
    %v7034 = vunpack.c.h.b16 %v6758
    %v7035 = vunpack.c.l.b16 %v6759
    %v7036 = vunpack.c.h.b16 %v6759
    %v7037 = vunpack.c.l.b16 %v6760
    %v7038 = vunpack.c.h.b16 %v6760
    %v7039 = vunpack.c.l.b16 %v6761
    %v7040 = vunpack.c.h.b16 %v6761
    %v7041 = vunpack.c.l.b16 %v6762
    %v7042 = vunpack.c.h.b16 %v6762
    %v7043 = vunpack.c.l.b16 %v6763
    %v7044 = vunpack.c.h.b16 %v6763
    %v7045 = vunpack.c.l.b16 %v6764
    %v7046 = vunpack.c.h.b16 %v6764
    %v7047 = vunpack.c.l.b16 %v6765
    %v7048 = vunpack.c.h.b16 %v6765
    %v7049 = vunpack.c.l.b16 %v6766
    %v7050 = vunpack.c.h.b16 %v6766
    %v7051 = vunpack.c.l.b16 %v6767
    %v7052 = vunpack.c.h.b16 %v6767
    %v7053 = vunpack.c.l.b16 %v6768
    %v7054 = vunpack.c.h.b16 %v6768
    %v7055 = vunpack.c.l.b16 %v6769
    %v7056 = vunpack.c.h.b16 %v6769
    %v7057 = vunpack.c.l.b16 %v6770
    %v7058 = vunpack.c.h.b16 %v6770
    %v7059 = vunpack.c.l.b16 %v6771
    %v7060 = vunpack.c.h.b16 %v6771
    %v7061 = vunpack.c.l.b16 %v6772
    %v7062 = vunpack.c.h.b16 %v6772
    %v7063 = vunpack.c.l.b16 %v6773
    %v7064 = vunpack.c.h.b16 %v6773
    %v7065 = vunpack.c.l.b16 %v6774
    %v7066 = vunpack.c.h.b16 %v6774
    %v7067 = vunpack.c.l.b16 %v6775
    %v7068 = vunpack.c.h.b16 %v6775
    %v7069 = vunpack.c.l.b16 %v6776
    %v7070 = vunpack.c.h.b16 %v6776
    %v7071 = vunpack.c.l.b16 %v6777
    %v7072 = vunpack.c.h.b16 %v6777
    %v7073 = vunpack.c.l.b16 %v6778
    %v7074 = vunpack.c.h.b16 %v6778
    %v7075 = vunpack.c.l.b16 %v6779
    %v7076 = vunpack.c.h.b16 %v6779
    %v7077 = vunpack.c.l.b16 %v6780
    %v7078 = vunpack.c.h.b16 %v6780
    %v7079 = vunpack.c.l.b16 %v6781
    %v7080 = vunpack.c.h.b16 %v6781
    %v7081 = vunpack.c.l.b16 %v6782
    %v7082 = vunpack.c.h.b16 %v6782
    %v7083 = vunpack.c.l.b16 %v6783
    %v7084 = vunpack.c.h.b16 %v6783
    %v7085 = vunpack.c.l.b16 %v6784
    %v7086 = vunpack.c.h.b16 %v6784
    %v7087 = vunpack.c.l.b16 %v6785
    %v7088 = vunpack.c.h.b16 %v6785
    %v7089 = vunpack.c.l.b16 %v6786
    %v7090 = vunpack.c.h.b16 %v6786
    %v7091 = vunpack.c.l.b16 %v6787
    %v7092 = vunpack.c.h.b16 %v6787
    %v7093 = vunpack.c.l.b16 %v6788
    %v7094 = vunpack.c.h.b16 %v6788
    %v7095 = vunpack.c.l.b16 %v6789
    %v7096 = vunpack.c.h.b16 %v6789
    %v7097 = vunpack.c.l.b16 %v6790
    %v7098 = vunpack.c.h.b16 %v6790
    %v7099 = vunpack.c.l.b16 %v6791
    %v7100 = vunpack.c.h.b16 %v6791
    %v7101 = vunpack.c.l.b16 %v6792
    %v7102 = vunpack.c.h.b16 %v6792
    %v7103 = vunpack.c.l.b16 %v6793
    %v7104 = vunpack.c.h.b16 %v6793
    %v7105 = vunpack.c.l.b16 %v6794
    %v7106 = vunpack.c.h.b16 %v6794
    %v7107 = vunpack.c.l.b16 %v6795
    %v7108 = vunpack.c.h.b16 %v6795
    %v7109 = vunpack.c.l.b16 %v6796
    %v7110 = vunpack.c.h.b16 %v6796
    %v7111 = vunpack.c.l.b16 %v6797
    %v7112 = vunpack.c.h.b16 %v6797
    %v7113 = vunpack.c.l.b16 %v6798
    %v7114 = vunpack.c.h.b16 %v6798
    %v7115 = vunpack.c.l.b16 %v6799
    %v7116 = vunpack.c.h.b16 %v6799
    %v7117 = vunpack.c.l.b16 %v6800
    %v7118 = vunpack.c.h.b16 %v6800
    %v7119 = vunpack.c.l.b16 %v6801
    %v7120 = vunpack.c.h.b16 %v6801
    %v7121 = vunpack.c.l.b16 %v6802
    %v7122 = vunpack.c.h.b16 %v6802
    %v7123 = vunpack.c.l.b16 %v6803
    %v7124 = vunpack.c.h.b16 %v6803
    %v7125 = vunpack.c.l.b16 %v6804
    %v7126 = vunpack.c.h.b16 %v6804
    %v7127 = vunpack.c.l.b16 %v6805
    %v7128 = vunpack.c.h.b16 %v6805
    %v7129 = vunpack.c.l.b16 %v6806
    %v7130 = vunpack.c.h.b16 %v6806
    %v7131 = vunpack.c.l.b16 %v6807
    %v7132 = vunpack.c.h.b16 %v6807
    %v7133 = vunpack.c.l.b16 %v6808
    %v7134 = vunpack.c.h.b16 %v6808
    %v7135 = vunpack.c.l.b16 %v6809
    %v7136 = vunpack.c.h.b16 %v6809
    %v7137 = vunpack.c.l.b16 %v6810
    %v7138 = vunpack.c.h.b16 %v6810
    %v7139 = vunpack.c.l.b16 %v6811
    %v7140 = vunpack.c.h.b16 %v6811
    %v7141 = vunpack.c.l.b16 %v6812
    %v7142 = vunpack.c.h.b16 %v6812
    %v7143 = vunpack.c.l.b16 %v6813
    %v7144 = vunpack.c.h.b16 %v6813
    %v7145 = vunpack.c.l.b16 %v6814
    %v7146 = vunpack.c.h.b16 %v6814
    %v7147 = vunpack.c.l.b16 %v6815
    %v7148 = vunpack.c.h.b16 %v6815
    %v7149 = vunpack.c.l.b16 %v6816
    %v7150 = vunpack.c.h.b16 %v6816
    %v7151 = vunpack.c.l.b16 %v6817
    %v7152 = vunpack.c.h.b16 %v6817
    %v7153 = vunpack.c.l.b16 %v6818
    %v7154 = vunpack.c.h.b16 %v6818
    %v7155 = vunpack.c.l.b16 %v6819
    %v7156 = vunpack.c.h.b16 %v6819
    %v7157 = vunpack.c.l.b16 %v6820
    %v7158 = vunpack.c.h.b16 %v6820
    %v7159 = vunpack.c.l.b16 %v6821
    %v7160 = vunpack.c.h.b16 %v6821
    %v7161 = vunpack.c.l.b16 %v6822
    %v7162 = vunpack.c.h.b16 %v6822
    %v7163 = vunpack.c.l.b16 %v6823
    %v7164 = vunpack.c.h.b16 %v6823
    %v7165 = vunpack.c.l.b16 %v6824
    %v7166 = vunpack.c.h.b16 %v6824
    %v7167 = vunpack.c.l.b16 %v6825
    %v7168 = vunpack.c.h.b16 %v6825
    %v7169 = vunpack.c.l.b16 %v6826
    %v7170 = vunpack.c.h.b16 %v6826
    %v7171 = vunpack.c.l.b16 %v6827
    %v7172 = vunpack.c.h.b16 %v6827
    %v7173 = vunpack.c.l.b16 %v6828
    %v7174 = vunpack.c.h.b16 %v6828
    %v7175 = vunpack.c.l.b16 %v6829
    %v7176 = vunpack.c.h.b16 %v6829
    %v7177 = vunpack.c.l.b16 %v6830
    %v7178 = vunpack.c.h.b16 %v6830
    %v7179 = vunpack.c.l.b16 %v6831
    %v7180 = vunpack.c.h.b16 %v6831
    %v7181 = vunpack.c.l.b16 %v6832
    %v7182 = vunpack.c.h.b16 %v6832
    %v7183 = vunpack.c.l.b16 %v6833
    %v7184 = vunpack.c.h.b16 %v6833
    %v7185 = vunpack.c.l.b16 %v6834
    %v7186 = vunpack.c.h.b16 %v6834
    %v7187 = vunpack.c.l.b16 %v6835
    %v7188 = vunpack.c.h.b16 %v6835
    %v7189 = vunpack.c.l.b16 %v6836
    %v7190 = vunpack.c.h.b16 %v6836
    %v7191 = vunpack.c.l.b16 %v6837
    %v7192 = vunpack.c.h.b16 %v6837
    %v7193 = vunpack.c.l.b16 %v6838
    %v7194 = vunpack.c.h.b16 %v6838
    %v7195 = vunpack.c.l.b16 %v6839
    %v7196 = vunpack.c.h.b16 %v6839
    %v7197 = vunpack.c.l.b16 %v6840
    %v7198 = vunpack.c.h.b16 %v6840
    %v7199 = vunpack.c.l.b16 %v6841
    %v7200 = vunpack.c.h.b16 %v6841
    %v7201 = vunpack.c.l.b16 %v6842
    %v7202 = vunpack.c.h.b16 %v6842
    %v7203 = vunpack.c.l.b16 %v6843
    %v7204 = vunpack.c.h.b16 %v6843
    %v7205 = vunpack.c.l.b16 %v6844
    %v7206 = vunpack.c.h.b16 %v6844
    %v7207 = vunpack.c.l.b16 %v6845
    %v7208 = vunpack.c.h.b16 %v6845
    %v7209 = vunpack.c.l.b16 %v6846
    %v7210 = vunpack.c.h.b16 %v6846
    %v7211 = vunpack.c.l.b16 %v6847
    %v7212 = vunpack.c.h.b16 %v6847
    %v7213 = vunpack.c.l.b16 %v6848
    %v7214 = vunpack.c.h.b16 %v6848
    %v7215 = vunpack.c.l.b16 %v6849
    %v7216 = vunpack.c.h.b16 %v6849
    %v7217 = vunpack.c.l.b16 %v6850
    %v7218 = vunpack.c.h.b16 %v6850
    %v7219 = vunpack.c.l.b16 %v6851
    %v7220 = vunpack.c.h.b16 %v6851
    %v7221 = vunpack.c.l.b16 %v6852
    %v7222 = vunpack.c.h.b16 %v6852
    %v7223 = vunpack.c.l.b16 %v6853
    %v7224 = vunpack.c.h.b16 %v6853
    %v7225 = vunpack.c.l.b16 %v6854
    %v7226 = vunpack.c.h.b16 %v6854
    %v7227 = vunpack.c.l.b16 %v6855
    %v7228 = vunpack.c.h.b16 %v6855
    %v7229 = vunpack.c.l.b16 %v6856
    %v7230 = vunpack.c.h.b16 %v6856
    %v7231 = vunpack.c.l.b16 %v6857
    %v7232 = vunpack.c.h.b16 %v6857
    %v7233 = vunpack.c.l.b16 %v6858
    %v7234 = vunpack.c.h.b16 %v6858
    %v7235 = vunpack.c.l.b16 %v6859
    %v7236 = vunpack.c.h.b16 %v6859
    %v7237 = vunpack.c.l.b16 %v6860
    %v7238 = vunpack.c.h.b16 %v6860
    %v7239 = vunpack.c.l.b16 %v6861
    %v7240 = vunpack.c.h.b16 %v6861
    %v7241 = vunpack.c.l.b16 %v6862
    %v7242 = vunpack.c.h.b16 %v6862
    %v7243 = vunpack.c.l.b16 %v6863
    %v7244 = vunpack.c.h.b16 %v6863
    %v7245 = vunpack.c.l.b16 %v6864
    %v7246 = vunpack.c.h.b16 %v6864
    %v7247 = vunpack.c.l.b16 %v6865
    %v7248 = vunpack.c.h.b16 %v6865
    %v7249 = vunpack.c.l.b16 %v6866
    %v7250 = vunpack.c.h.b16 %v6866
    %v7251 = vpack.c.b16 %v6999, %v6995
    %v7252 = vpack.c.b16 %v7000, %v6996
    %v7253 = vpack.c.b16 %v7001, %v6997
    %v7254 = vpack.c.b16 %v7002, %v6998
    %v7255 = vpack.c.b16 %v7007, %v7003
    %v7256 = vpack.c.b16 %v7008, %v7004
    %v7257 = vpack.c.b16 %v7009, %v7005
    %v7258 = vpack.c.b16 %v7010, %v7006
    %v7259 = vpack.c.b16 %v7015, %v7011
    %v7260 = vpack.c.b16 %v7016, %v7012
    %v7261 = vpack.c.b16 %v7017, %v7013
    %v7262 = vpack.c.b16 %v7018, %v7014
    %v7263 = vpack.c.b16 %v7023, %v7019
    %v7264 = vpack.c.b16 %v7024, %v7020
    %v7265 = vpack.c.b16 %v7025, %v7021
    %v7266 = vpack.c.b16 %v7026, %v7022
    %v7267 = vpack.c.b16 %v7031, %v7027
    %v7268 = vpack.c.b16 %v7032, %v7028
    %v7269 = vpack.c.b16 %v7033, %v7029
    %v7270 = vpack.c.b16 %v7034, %v7030
    %v7271 = vpack.c.b16 %v7039, %v7035
    %v7272 = vpack.c.b16 %v7040, %v7036
    %v7273 = vpack.c.b16 %v7041, %v7037
    %v7274 = vpack.c.b16 %v7042, %v7038
    %v7275 = vpack.c.b16 %v7047, %v7043
    %v7276 = vpack.c.b16 %v7048, %v7044
    %v7277 = vpack.c.b16 %v7049, %v7045
    %v7278 = vpack.c.b16 %v7050, %v7046
    %v7279 = vpack.c.b16 %v7055, %v7051
    %v7280 = vpack.c.b16 %v7056, %v7052
    %v7281 = vpack.c.b16 %v7057, %v7053
    %v7282 = vpack.c.b16 %v7058, %v7054
    %v7283 = vpack.c.b16 %v7063, %v7059
    %v7284 = vpack.c.b16 %v7064, %v7060
    %v7285 = vpack.c.b16 %v7065, %v7061
    %v7286 = vpack.c.b16 %v7066, %v7062
    %v7287 = vpack.c.b16 %v7071, %v7067
    %v7288 = vpack.c.b16 %v7072, %v7068
    %v7289 = vpack.c.b16 %v7073, %v7069
    %v7290 = vpack.c.b16 %v7074, %v7070
    %v7291 = vpack.c.b16 %v7079, %v7075
    %v7292 = vpack.c.b16 %v7080, %v7076
    %v7293 = vpack.c.b16 %v7081, %v7077
    %v7294 = vpack.c.b16 %v7082, %v7078
    %v7295 = vpack.c.b16 %v7087, %v7083
    %v7296 = vpack.c.b16 %v7088, %v7084
    %v7297 = vpack.c.b16 %v7089, %v7085
    %v7298 = vpack.c.b16 %v7090, %v7086
    %v7299 = vpack.c.b16 %v7095, %v7091
    %v7300 = vpack.c.b16 %v7096, %v7092
    %v7301 = vpack.c.b16 %v7097, %v7093
    %v7302 = vpack.c.b16 %v7098, %v7094
    %v7303 = vpack.c.b16 %v7103, %v7099
    %v7304 = vpack.c.b16 %v7104, %v7100
    %v7305 = vpack.c.b16 %v7105, %v7101
    %v7306 = vpack.c.b16 %v7106, %v7102
    %v7307 = vpack.c.b16 %v7111, %v7107
    %v7308 = vpack.c.b16 %v7112, %v7108
    %v7309 = vpack.c.b16 %v7113, %v7109
    %v7310 = vpack.c.b16 %v7114, %v7110
    %v7311 = vpack.c.b16 %v7119, %v7115
    %v7312 = vpack.c.b16 %v7120, %v7116
    %v7313 = vpack.c.b16 %v7121, %v7117
    %v7314 = vpack.c.b16 %v7122, %v7118
    %v7315 = vpack.c.b16 %v7127, %v7123
    %v7316 = vpack.c.b16 %v7128, %v7124
    %v7317 = vpack.c.b16 %v7129, %v7125
    %v7318 = vpack.c.b16 %v7130, %v7126
    %v7319 = vpack.c.b16 %v7135, %v7131
    %v7320 = vpack.c.b16 %v7136, %v7132
    %v7321 = vpack.c.b16 %v7137, %v7133
    %v7322 = vpack.c.b16 %v7138, %v7134
    %v7323 = vpack.c.b16 %v7143, %v7139
    %v7324 = vpack.c.b16 %v7144, %v7140
    %v7325 = vpack.c.b16 %v7145, %v7141
    %v7326 = vpack.c.b16 %v7146, %v7142
    %v7327 = vpack.c.b16 %v7151, %v7147
    %v7328 = vpack.c.b16 %v7152, %v7148
    %v7329 = vpack.c.b16 %v7153, %v7149
    %v7330 = vpack.c.b16 %v7154, %v7150
    %v7331 = vpack.c.b16 %v7159, %v7155
    %v7332 = vpack.c.b16 %v7160, %v7156
    %v7333 = vpack.c.b16 %v7161, %v7157
    %v7334 = vpack.c.b16 %v7162, %v7158
    %v7335 = vpack.c.b16 %v7167, %v7163
    %v7336 = vpack.c.b16 %v7168, %v7164
    %v7337 = vpack.c.b16 %v7169, %v7165
    %v7338 = vpack.c.b16 %v7170, %v7166
    %v7339 = vpack.c.b16 %v7175, %v7171
    %v7340 = vpack.c.b16 %v7176, %v7172
    %v7341 = vpack.c.b16 %v7177, %v7173
    %v7342 = vpack.c.b16 %v7178, %v7174
    %v7343 = vpack.c.b16 %v7183, %v7179
    %v7344 = vpack.c.b16 %v7184, %v7180
    %v7345 = vpack.c.b16 %v7185, %v7181
    %v7346 = vpack.c.b16 %v7186, %v7182
    %v7347 = vpack.c.b16 %v7191, %v7187
    %v7348 = vpack.c.b16 %v7192, %v7188
    %v7349 = vpack.c.b16 %v7193, %v7189
    %v7350 = vpack.c.b16 %v7194, %v7190
    %v7351 = vpack.c.b16 %v7199, %v7195
    %v7352 = vpack.c.b16 %v7200, %v7196
    %v7353 = vpack.c.b16 %v7201, %v7197
    %v7354 = vpack.c.b16 %v7202, %v7198
    %v7355 = vpack.c.b16 %v7207, %v7203
    %v7356 = vpack.c.b16 %v7208, %v7204
    %v7357 = vpack.c.b16 %v7209, %v7205
    %v7358 = vpack.c.b16 %v7210, %v7206
    %v7359 = vpack.c.b16 %v7215, %v7211
    %v7360 = vpack.c.b16 %v7216, %v7212
    %v7361 = vpack.c.b16 %v7217, %v7213
    %v7362 = vpack.c.b16 %v7218, %v7214
    %v7363 = vpack.c.b16 %v7223, %v7219
    %v7364 = vpack.c.b16 %v7224, %v7220
    %v7365 = vpack.c.b16 %v7225, %v7221
    %v7366 = vpack.c.b16 %v7226, %v7222
    %v7367 = vpack.c.b16 %v7231, %v7227
    %v7368 = vpack.c.b16 %v7232, %v7228
    %v7369 = vpack.c.b16 %v7233, %v7229
    %v7370 = vpack.c.b16 %v7234, %v7230
    %v7371 = vpack.c.b16 %v7239, %v7235
    %v7372 = vpack.c.b16 %v7240, %v7236
    %v7373 = vpack.c.b16 %v7241, %v7237
    %v7374 = vpack.c.b16 %v7242, %v7238
    %v7375 = vpack.c.b16 %v7247, %v7243
    %v7376 = vpack.c.b16 %v7248, %v7244
    %v7377 = vpack.c.b16 %v7249, %v7245
    %v7378 = vpack.c.b16 %v7250, %v7246
    %7507 = vmatprep.subr.bf16.mxu0 %v7252
    %7508 = vmatpush1.bf16.msra.mxu0 %v7251
    %7509 = vmatprep.subr.bf16.mxu0 %v7256
    %7510 = vmatpush1.bf16.msra.mxu0 %v7255
    %7511 = vmatprep.subr.bf16.mxu0 %v7260
    %7512 = vmatpush1.bf16.msra.mxu0 %v7259
    %7513 = vmatprep.subr.bf16.mxu0 %v7264
    %7514 = vmatpush1.bf16.msra.mxu0 %v7263
    %7515 = vmatprep.subr.bf16.mxu0 %v7268
    %7516 = vmatpush1.bf16.msra.mxu0 %v7267
    %7517 = vmatprep.subr.bf16.mxu0 %v7272
    %7518 = vmatpush1.bf16.msra.mxu0 %v7271
    %7519 = vmatprep.subr.bf16.mxu0 %v7276
    %7520 = vmatpush1.bf16.msra.mxu0 %v7275
    %7521 = vmatprep.subr.bf16.mxu0 %v7280
    %7522 = vmatpush1.bf16.msra.mxu0 %v7279
    %7523 = vmatprep.subr.bf16.mxu0 %v7284
    %7524 = vmatpush1.bf16.msra.mxu0 %v7283
    %7525 = vmatprep.subr.bf16.mxu0 %v7288
    %7526 = vmatpush1.bf16.msra.mxu0 %v7287
    %7527 = vmatprep.subr.bf16.mxu0 %v7292
    %7528 = vmatpush1.bf16.msra.mxu0 %v7291
    %7529 = vmatprep.subr.bf16.mxu0 %v7296
    %7530 = vmatpush1.bf16.msra.mxu0 %v7295
    %7531 = vmatprep.subr.bf16.mxu0 %v7300
    %7532 = vmatpush1.bf16.msra.mxu0 %v7299
    %7533 = vmatprep.subr.bf16.mxu0 %v7304
    %7534 = vmatpush1.bf16.msra.mxu0 %v7303
    %7535 = vmatprep.subr.bf16.mxu0 %v7308
    %7536 = vmatpush1.bf16.msra.mxu0 %v7307
    %7537 = vmatprep.subr.bf16.mxu0 %v7312
    %7538 = vmatpush1.bf16.msra.mxu0 %v7311
    %7539 = vmatprep.mubr.bf16.mxu0 %v6736
    %7540 = vmatmul.mubr.bf16.gmra.mrb[0].mxu0 %v6735
    %v7541 = vpop.f32.mrb[0].mxu0
    %v7542 = vadd.f32 0.0, %v7541
    %v7543 = vpop.f32.mrb[0].mxu0
    %v7544 = vadd.f32 0.0, %v7543
    %v7545 = vpop.f32.mrb[0].mxu0
    %v7546 = vpop.f32.mrb[0].mxu0
    %7547 = vdwg.mxu0
    %7548 = vmatprep.subr.bf16.mxu0 %v7316
    %7549 = vmatpush1.bf16.msra.mxu0 %v7315
    %7550 = vmatprep.subr.bf16.mxu0 %v7320
    %7551 = vmatpush1.bf16.msra.mxu0 %v7319
    %7552 = vmatprep.subr.bf16.mxu0 %v7324
    %7553 = vmatpush1.bf16.msra.mxu0 %v7323
    %7554 = vmatprep.subr.bf16.mxu0 %v7328
    %7555 = vmatpush1.bf16.msra.mxu0 %v7327
    %7556 = vmatprep.subr.bf16.mxu0 %v7332
    %7557 = vmatpush1.bf16.msra.mxu0 %v7331
    %7558 = vmatprep.subr.bf16.mxu0 %v7336
    %7559 = vmatpush1.bf16.msra.mxu0 %v7335
    %7560 = vmatprep.subr.bf16.mxu0 %v7340
    %7561 = vmatpush1.bf16.msra.mxu0 %v7339
    %7562 = vmatprep.subr.bf16.mxu0 %v7344
    %7563 = vmatpush1.bf16.msra.mxu0 %v7343
    %7564 = vmatprep.subr.bf16.mxu0 %v7348
    %7565 = vmatpush1.bf16.msra.mxu0 %v7347
    %7566 = vmatprep.subr.bf16.mxu0 %v7352
    %7567 = vmatpush1.bf16.msra.mxu0 %v7351
    %7568 = vmatprep.subr.bf16.mxu0 %v7356
    %7569 = vmatpush1.bf16.msra.mxu0 %v7355
    %7570 = vmatprep.subr.bf16.mxu0 %v7360
    %7571 = vmatpush1.bf16.msra.mxu0 %v7359
    %7572 = vmatprep.subr.bf16.mxu0 %v7364
    %7573 = vmatpush1.bf16.msra.mxu0 %v7363
    %7574 = vmatprep.subr.bf16.mxu0 %v7368
    %7575 = vmatpush1.bf16.msra.mxu0 %v7367
    %7576 = vmatprep.subr.bf16.mxu0 %v7372
    %7577 = vmatpush1.bf16.msra.mxu0 %v7371
    %7578 = vmatprep.subr.bf16.mxu0 %v7376
    %7579 = vmatpush1.bf16.msra.mxu0 %v7375
    %7580 = vmatprep.mubr.bf16.mxu0 %v6738
    %7581 = vmatmul.mubr.bf16.gmra.mrb[0].mxu0 %v6737
    %v7582 = vpop.f32.mrb[0].mxu0
    %v7583 = vadd.f32 %v7542, %v7582
    %v7584 = vpop.f32.mrb[0].mxu0
    %v7585 = vadd.f32 %v7544, %v7584
    %v7586 = vpop.f32.mrb[0].mxu0
    %v7587 = vpop.f32.mrb[0].mxu0
    %7588 = vdwg.mxu0
    %7589 = vmatprep.subr.bf16.mxu0 %v7254
    %7590 = vmatpush1.bf16.msra.mxu0 %v7253
    %7591 = vmatprep.subr.bf16.mxu0 %v7258
    %7592 = vmatpush1.bf16.msra.mxu0 %v7257
    %7593 = vmatprep.subr.bf16.mxu0 %v7262
    %7594 = vmatpush1.bf16.msra.mxu0 %v7261
    %7595 = vmatprep.subr.bf16.mxu0 %v7266
    %7596 = vmatpush1.bf16.msra.mxu0 %v7265
    %7597 = vmatprep.subr.bf16.mxu0 %v7270
    %7598 = vmatpush1.bf16.msra.mxu0 %v7269
    %7599 = vmatprep.subr.bf16.mxu0 %v7274
    %7600 = vmatpush1.bf16.msra.mxu0 %v7273
    %7601 = vmatprep.subr.bf16.mxu0 %v7278
    %7602 = vmatpush1.bf16.msra.mxu0 %v7277
    %7603 = vmatprep.subr.bf16.mxu0 %v7282
    %7604 = vmatpush1.bf16.msra.mxu0 %v7281
    %7605 = vmatprep.subr.bf16.mxu0 %v7286
    %7606 = vmatpush1.bf16.msra.mxu0 %v7285
    %7607 = vmatprep.subr.bf16.mxu0 %v7290
    %7608 = vmatpush1.bf16.msra.mxu0 %v7289
    %7609 = vmatprep.subr.bf16.mxu0 %v7294
    %7610 = vmatpush1.bf16.msra.mxu0 %v7293
    %7611 = vmatprep.subr.bf16.mxu0 %v7298
    %7612 = vmatpush1.bf16.msra.mxu0 %v7297
    %7613 = vmatprep.subr.bf16.mxu0 %v7302
    %7614 = vmatpush1.bf16.msra.mxu0 %v7301
    %7615 = vmatprep.subr.bf16.mxu0 %v7306
    %7616 = vmatpush1.bf16.msra.mxu0 %v7305
    %7617 = vmatprep.subr.bf16.mxu0 %v7310
    %7618 = vmatpush1.bf16.msra.mxu0 %v7309
    %7619 = vmatprep.subr.bf16.mxu0 %v7314
    %7620 = vmatpush1.bf16.msra.mxu0 %v7313
    %7621 = vmatprep.mubr.bf16.mxu0 %v6736
    %7622 = vmatmul.mubr.bf16.gmra.mrb[0].mxu0 %v6735
    %v7623 = vpop.f32.mrb[0].mxu0
    %v7624 = vadd.f32 0.0, %v7623
    %v7625 = vpop.f32.mrb[0].mxu0
    %v7626 = vadd.f32 0.0, %v7625
    %v7627 = vpop.f32.mrb[0].mxu0
    %v7628 = vpop.f32.mrb[0].mxu0
    %7629 = vdwg.mxu0
    %7630 = vmatprep.subr.bf16.mxu0 %v7318
    %7631 = vmatpush1.bf16.msra.mxu0 %v7317
    %7632 = vmatprep.subr.bf16.mxu0 %v7322
    %7633 = vmatpush1.bf16.msra.mxu0 %v7321
    %7634 = vmatprep.subr.bf16.mxu0 %v7326
    %7635 = vmatpush1.bf16.msra.mxu0 %v7325
    %7636 = vmatprep.subr.bf16.mxu0 %v7330
    %7637 = vmatpush1.bf16.msra.mxu0 %v7329
    %7638 = vmatprep.subr.bf16.mxu0 %v7334
    %7639 = vmatpush1.bf16.msra.mxu0 %v7333
    %7640 = vmatprep.subr.bf16.mxu0 %v7338
    %7641 = vmatpush1.bf16.msra.mxu0 %v7337
    %7642 = vmatprep.subr.bf16.mxu0 %v7342
    %7643 = vmatpush1.bf16.msra.mxu0 %v7341
    %7644 = vmatprep.subr.bf16.mxu0 %v7346
    %7645 = vmatpush1.bf16.msra.mxu0 %v7345
    %7646 = vmatprep.subr.bf16.mxu0 %v7350
    %7647 = vmatpush1.bf16.msra.mxu0 %v7349
    %7648 = vmatprep.subr.bf16.mxu0 %v7354
    %7649 = vmatpush1.bf16.msra.mxu0 %v7353
    %7650 = vmatprep.subr.bf16.mxu0 %v7358
    %7651 = vmatpush1.bf16.msra.mxu0 %v7357
    %7652 = vmatprep.subr.bf16.mxu0 %v7362
    %7653 = vmatpush1.bf16.msra.mxu0 %v7361
    %7654 = vmatprep.subr.bf16.mxu0 %v7366
    %7655 = vmatpush1.bf16.msra.mxu0 %v7365
    %7656 = vmatprep.subr.bf16.mxu0 %v7370
    %7657 = vmatpush1.bf16.msra.mxu0 %v7369
    %7658 = vmatprep.subr.bf16.mxu0 %v7374
    %7659 = vmatpush1.bf16.msra.mxu0 %v7373
    %7660 = vmatprep.subr.bf16.mxu0 %v7378
    %7661 = vmatpush1.bf16.msra.mxu0 %v7377
    %7662 = vmatprep.mubr.bf16.mxu0 %v6738
    %7663 = vmatmul.mubr.bf16.gmra.mrb[0].mxu0 %v6737
    %v7664 = vpop.f32.mrb[0].mxu0
    %v7665 = vadd.f32 %v7624, %v7664
    %v7666 = vpop.f32.mrb[0].mxu0
    %v7667 = vadd.f32 %v7626, %v7666
    %v7668 = vpop.f32.mrb[0].mxu0
    %v7669 = vpop.f32.mrb[0].mxu0
    %7670 = vdwg.mxu0
    %v7671 = vadd.f32 %v5773, %v7583
    %v7672 = vadd.f32 %v5774, %v7585
    %v7673 = vadd.f32 %v5775, %v7665
    %v7674 = vadd.f32 %v5776, %v7667
    %v7675 = vld [vmem:[#allocation10] sm:$0xf]
    %v7677 = vlaneseq
    %v7678 = vshrl.u32 %v7677, 7
    %v7679 = vsub.s32 0, %v7678
    %v7680 = vrot.slane %v7675, %v7679
    %v7681 = vlaneseq
    %v7682 = vshrl.u32 %v7681, 7
    %v7683 = vsub.s32 1, %v7682
    %v7684 = vrot.slane %v7675, %v7683
    %v7685 = vlaneseq
    %v7686 = vshrl.u32 %v7685, 7
    %v7687 = vsub.s32 2, %v7686
    %v7688 = vrot.slane %v7675, %v7687
    %v7689 = vlaneseq
    %v7690 = vshrl.u32 %v7689, 7
    %v7691 = vsub.s32 3, %v7690
    %v7692 = vrot.slane %v7675, %v7691
    %v7697 = vadd.f32 %v7671, %v7680
    %v7698 = vadd.f32 %v7672, %v7684
    %v7699 = vadd.f32 %v7673, %v7688
    %v7700 = vadd.f32 %v7674, %v7692
    %7701 = vst [vmem:[#allocation11] sm:$0xff] %v7697
    %7702 = vst [vmem:[#allocation11 + $0x8] sm:$0xff] %v7698
    %7703 = vst [vmem:[#allocation11 + $0x10] sm:$0xff] %v7699
    %7704 = vst [vmem:[#allocation11 + $0x18] sm:$0xff] %v7700
    // Predicated region
    $region42: #{tpu_custom_call.1} parent=1 // pred_check
      _
    $region43: #{tpu_custom_call.1} parent=1 // pred_check_branch
      %7706 = sbr.rel (0) target = $region45
    $region44: #{tpu_custom_call.1} parent=1 // pred_region
      %s7708 = ssub.s32 512, 512
      %7709 = vsyncadd [#allocation4], %s7708
      %s7711 = sshll.u32 [#allocation11], 4
      %s7712 = int_to_ptr.vmem [resolvable:$true] %s7711
      %7714 = dma.vmem_to_hbm [thread:$0]  %s7712, 512, %s5, [#allocation4]
    $region45: #{tpu_custom_call.1} parent=1 // pred_fallthru
      _
    // Predicated region
    $region46: #{tpu_custom_call.1} parent=1 // pred_check
      _
    $region47: #{tpu_custom_call.1} parent=1 // pred_check_branch
      %7716 = sbr.rel (0) target = $region49
    $region48: #{tpu_custom_call.1} parent=1 // pred_region
      %7717 = dma.done [#allocation4], 512
    $region49: #{tpu_custom_call.1} parent=1 // pred_fallthru
      _
    %7718 = vsyncpa [#allocation3], 1
    %7719 = vsyncpa [#allocation6], 1
    %7720 = vsyncpa [#allocation9], 1
    %7721 = vsyncpa [#allocation4], 1

</llo_original>
